<compile_context>
chip_gen: v6e
topology: v6e:2x2x1
jax: 0.10.0
libtpu: 0.0.40
codegen_flags: <defaults>
</compile_context>

<pallas_src>
import jax
import jax.numpy as jnp
from jax.experimental import pallas as pl
from jax.experimental.pallas import tpu as pltpu

HIDDEN = 128           # LSTM hidden size
INPUT = 11             # raw input feature size
KIN = 128              # lane-padded feature width for every activation
BP = 8                 # batch padded to one full sublane group
GATES = 4 * HIDDEN

_VMEM = pl.BlockSpec(memory_space=pltpu.MemorySpace.VMEM)


# ------------------------------ fused kernel ---------------------------------
def _make_fused_kernel(T):
    H = HIDDEN

    def _tree(vals, op):
        # pairwise (log-depth) reduction over a static python list of values
        vals = list(vals)
        while len(vals) > 1:
            nxt = [op(vals[i], vals[i + 1]) for i in range(0, len(vals) - 1, 2)]
            if len(vals) % 2:
                nxt.append(vals[-1])
            vals = nxt
        return vals[0]

    def kernel(x_ref, wih_ref, whh_ref, bl_ref, wlin_ref, blin_ref, o_ref):
        f32 = jnp.float32

        def mm(a, w):
            return jnp.dot(a, w, preferred_element_type=f32)

        def sigmoid(v):                       # tanh form: single EUP push
            return 0.5 * jnp.tanh(0.5 * v) + 0.5

        def lstm(xseq, h, c):
            # Hoisted input projection (+bias) for all T steps in ONE matmul.
            # wih rows >= INPUT are zero, so padded input lanes contribute 0.
            xg = mm(xseq, wih_ref[...]) + bl_ref[...]          # (T*BP, 4H)
            outs = []
            for t in range(T):                                 # static unroll
                g = xg[t * BP:(t + 1) * BP, :] + mm(h, whh_ref[...])
                sfo = sigmoid(g[:, :3 * H])                    # i|f|o in one pass
                i_g = sfo[:, 0 * H:1 * H]
                f_g = sfo[:, 1 * H:2 * H]
                o_g = sfo[:, 2 * H:3 * H]
                c = f_g * c + i_g * jnp.tanh(g[:, 3 * H:4 * H])
                h = o_g * jnp.tanh(c)
                outs.append(h)                                 # stays in vregs
            return jnp.concatenate(outs, axis=0), h, c         # (T*BP, H)

        def lin_logsoftmax(y, idx):
            # z = y @ W[idx] + b[idx]; LogSoftmax over the sequence axis
            # (PyTorch's implicit dim=0 on a 3-D input).
            z = mm(y, wlin_ref[idx]) + blin_ref[idx]           # (T*BP, 128)
            zs = [z[t * BP:(t + 1) * BP, :] for t in range(T)]
            m = _tree(zs, jnp.maximum)
            s = _tree([jnp.exp(zt - m) for zt in zs], jnp.add)
            lse = m + jnp.log(s)
            return jnp.concatenate([zt - lse for zt in zs], axis=0)

        h0 = jnp.zeros((BP, H), f32)
        c0 = jnp.zeros((BP, H), f32)

        x = x_ref[...]                                         # (T*BP, 128)
        o1, hT, cT = lstm(x, h0, c0)          # x, tup = self.lstm(x)
        conv = lin_logsoftmax(o1, 0)          # self.convert(x)
        o2, _, _ = lstm(conv, hT, cT)         # x, _ = self.lstm(convert(x), tup)
        y = lin_logsoftmax(o2, 1)             # Linear(128,64) + LogSoftmax
        y = lin_logsoftmax(y, 2)              # Linear(64,32)  + LogSoftmax
        y = lin_logsoftmax(y, 3)              # Linear(32,2)   + LogSoftmax
        o_ref[...] = y                        # lane-dense (64,128) store

    return kernel


# ------------------------- host-side weight prep ------------------------------
def _permute_gates(w):
    # PyTorch LSTM row order [i, f, g, o]  ->  [i, f, o, g]
    i, f, g, o = jnp.split(w, 4, axis=0)
    return jnp.concatenate([i, f, o, g], axis=0)


def prep_params(params):
    """One-time prep: transpose, gate-permute, zero-pad to 128 lanes, pack."""
    f32 = jnp.float32
    l = params['lstm']
    wih_t = jnp.zeros((KIN, GATES), f32).at[:INPUT, :].set(
        jnp.transpose(_permute_gates(l['w_ih'])))              # (128, 512)
    whh_t = jnp.transpose(_permute_gates(l['w_hh']))           # (128, 512)
    bl = _permute_gates(l['b_ih'] + l['b_hh']).reshape(1, GATES)

    def pad_lin(p, din, dout):
        # Zero rows beyond din guarantee padded input lanes never leak,
        # zero cols beyond dout keep padded output lanes at exactly 0 pre-bias.
        w = jnp.zeros((KIN, KIN), f32).at[:din, :dout].set(jnp.transpose(p['w']))
        b = jnp.zeros((1, KIN), f32).at[0, :dout].set(p['b'])
        return w, b

    wc, bc = pad_lin(params['convert'], HIDDEN, INPUT)
    w0, b0 = pad_lin(params['lin0'], HIDDEN, 64)
    w1, b1 = pad_lin(params['lin1'], 64, 32)
    w2, b2 = pad_lin(params['lin2'], 32, 2)
    wlin = jnp.stack([wc, w0, w1, w2], axis=0)                 # (4, 128, 128)
    blin = jnp.stack([bc, b0, b1, b2], axis=0)                 # (4, 1, 128)
    return (wih_t, whh_t, bl, wlin, blin)


def net_forward(x, prepped):
    T, B, Din = x.shape
    # Pad batch to a full sublane group and features to a full lane width.
    xp = jnp.zeros((T, BP, KIN), jnp.float32).at[:, :B, :Din].set(x)
    out = pl.pallas_call(
        _make_fused_kernel(T),
        out_shape=jax.ShapeDtypeStruct((T * BP, KIN), jnp.float32),
        in_specs=[_VMEM] * 6,
        out_specs=_VMEM,
    )(xp.reshape(T * BP, KIN), *prepped)
    return out.reshape(T, BP, KIN)[:, :B, :2]


# ------------------------------ parameters ------------------------------------
def init_params(key):
    def uniform(k, shape, fan_in):
        s = 1.0 / (fan_in ** 0.5)
        return jax.random.uniform(k, shape, jnp.float32, -s, s)

    ks = jax.random.split(key, 12)
    return {
        'lstm': dict(w_ih=uniform(ks[0], (4 * HIDDEN, INPUT), HIDDEN),
                     w_hh=uniform(ks[1], (4 * HIDDEN, HIDDEN), HIDDEN),
                     b_ih=uniform(ks[2], (4 * HIDDEN,), HIDDEN),
                     b_hh=uniform(ks[3], (4 * HIDDEN,), HIDDEN)),
        'convert': dict(w=uniform(ks[4], (INPUT, HIDDEN), HIDDEN),
                        b=uniform(ks[5], (INPUT,), HIDDEN)),
        'lin0': dict(w=uniform(ks[6], (64, 128), 128), b=uniform(ks[7], (64,), 128)),
        'lin1': dict(w=uniform(ks[8], (32, 64), 64), b=uniform(ks[9], (32,), 64)),
        'lin2': dict(w=uniform(ks[10], (2, 32), 32), b=uniform(ks[11], (2,), 32)),
    }


# ------------------------- pure-JAX reference (check) --------------------------
def net_reference(x, params):
    T, B, _ = x.shape
    H = HIDDEN
    l = params['lstm']
    hp = jax.lax.Precision.HIGHEST

    def lstm(seq, h, c):
        outs = []
        for t in range(T):
            g = (jnp.dot(seq[t], l['w_ih'].T, precision=hp)
                 + jnp.dot(h, l['w_hh'].T, precision=hp)
                 + l['b_ih'] + l['b_hh'])
            i = jax.nn.sigmoid(g[:, 0 * H:1 * H])
            f = jax.nn.sigmoid(g[:, 1 * H:2 * H])
            gg = jnp.tanh(g[:, 2 * H:3 * H])
            o = jax.nn.sigmoid(g[:, 3 * H:4 * H])
            c = f * c + i * gg
            h = o * jnp.tanh(c)
            outs.append(h)
        return jnp.stack(outs, 0), h, c

    def lin_ls(y, p):
        z = jnp.einsum('tbi,oi->tbo', y, p['w'], precision=hp) + p['b']
        return jax.nn.log_softmax(z, axis=0)      # PyTorch implicit dim=0 for 3-D

    h0 = jnp.zeros((B, H), jnp.float32)
    c0 = jnp.zeros((B, H), jnp.float32)
    o1, hT, cT = lstm(x, h0, c0)
    conv = lin_ls(o1, params['convert'])
    o2, _, _ = lstm(conv, hT, cT)
    y = lin_ls(o2, params['lin0'])
    y = lin_ls(y, params['lin1'])
    y = lin_ls(y, params['lin2'])
    return y


if __name__ == "__main__":
    key = jax.random.PRNGKey(0)
    pkey, xkey = jax.random.split(key)
    params = init_params(pkey)
    prepped = prep_params(params)        # hoisted out of the jitted forward

    T, B = 8, 2
    x = jax.random.normal(xkey, (T, B, INPUT), jnp.float32)

    fwd = jax.jit(net_forward)
    y = fwd(x, prepped)
    jax.block_until_ready(y)
    assert y.shape == (T, B, 2), y.shape
    assert bool(jnp.all(jnp.isfinite(y)))

    y_ref = jax.jit(net_reference)(x, params)
    err = float(jnp.max(jnp.abs(y - y_ref)))
    assert jnp.allclose(y, y_ref, atol=1e-2, rtol=1e-2), err

    print("KERNEL_OK")
</pallas_src>

<mosaic_0001>
module attributes {stable_mosaic.version = 11 : i64} {
  func.func @kernel(%arg0: memref<64x128xf32, #tpu.memory_space<vmem>>, %arg1: memref<128x512xf32, #tpu.memory_space<vmem>>, %arg2: memref<128x512xf32, #tpu.memory_space<vmem>>, %arg3: memref<1x512xf32, #tpu.memory_space<vmem>>, %arg4: memref<4x128x128xf32, #tpu.memory_space<vmem>>, %arg5: memref<4x1x128xf32, #tpu.memory_space<vmem>>, %arg6: memref<64x128xf32, #tpu.memory_space<vmem>>) attributes {dimension_semantics = [], scalar_prefetch = 0 : i64, scratch_operands = 0 : i64, tpu.core_type = #tpu.core_type<tc>} {
    %cst = arith.constant 0.000000e+00 : f32
    %0 = vector.broadcast %cst : f32 to vector<8x128xf32>
    %cst_0 = arith.constant 0.000000e+00 : f32
    %1 = vector.broadcast %cst_0 : f32 to vector<8x128xf32>
    %c0 = arith.constant 0 : index
    %c0_1 = arith.constant 0 : index
    %2 = vector.load %arg0[%c0, %c0_1] : memref<64x128xf32, #tpu.memory_space<vmem>>, vector<64x128xf32>
    %c0_2 = arith.constant 0 : index
    %c0_3 = arith.constant 0 : index
    %3 = vector.load %arg1[%c0_2, %c0_3] : memref<128x512xf32, #tpu.memory_space<vmem>>, vector<128x512xf32>
    %cst_4 = arith.constant dense<0.000000e+00> : vector<64x512xf32>
    %4 = tpu.matmul %2, %3, %cst_4 {dimension_numbers = #tpu.dot_dimension_numbers<[1], [0], [0], [1], [0, 0, 1, 1], [], []>} : vector<64x128xf32>, vector<128x512xf32>, vector<64x512xf32> -> vector<64x512xf32>
    %c0_5 = arith.constant 0 : index
    %c0_6 = arith.constant 0 : index
    %5 = vector.load %arg3[%c0_5, %c0_6] : memref<1x512xf32, #tpu.memory_space<vmem>>, vector<1x512xf32>
    %6 = vector.broadcast %5 : vector<1x512xf32> to vector<64x512xf32>
    %7 = arith.addf %4, %6 : vector<64x512xf32>
    %8 = vector.extract_strided_slice %7 {offsets = [0, 0], sizes = [8, 512], strides = [1, 1]} : vector<64x512xf32> to vector<8x512xf32>
    %c0_7 = arith.constant 0 : index
    %c0_8 = arith.constant 0 : index
    %9 = vector.load %arg2[%c0_7, %c0_8] : memref<128x512xf32, #tpu.memory_space<vmem>>, vector<128x512xf32>
    %cst_9 = arith.constant dense<0.000000e+00> : vector<8x512xf32>
    %10 = tpu.matmul %0, %9, %cst_9 {dimension_numbers = #tpu.dot_dimension_numbers<[1], [0], [0], [1], [0, 0, 1, 1], [], []>} : vector<8x128xf32>, vector<128x512xf32>, vector<8x512xf32> -> vector<8x512xf32>
    %11 = arith.addf %8, %10 : vector<8x512xf32>
    %12 = vector.extract_strided_slice %11 {offsets = [0, 0], sizes = [8, 384], strides = [1, 1]} : vector<8x512xf32> to vector<8x384xf32>
    %cst_10 = arith.constant 5.000000e-01 : f32
    %13 = vector.broadcast %cst_10 : f32 to vector<8x384xf32>
    %14 = arith.mulf %13, %12 : vector<8x384xf32>
    %15 = math.tanh %14 : vector<8x384xf32>
    %cst_11 = arith.constant 5.000000e-01 : f32
    %16 = vector.broadcast %cst_11 : f32 to vector<8x384xf32>
    %17 = arith.mulf %16, %15 : vector<8x384xf32>
    %cst_12 = arith.constant 5.000000e-01 : f32
    %18 = vector.broadcast %cst_12 : f32 to vector<8x384xf32>
    %19 = arith.addf %17, %18 : vector<8x384xf32>
    %20 = vector.extract_strided_slice %19 {offsets = [0, 0], sizes = [8, 128], strides = [1, 1]} : vector<8x384xf32> to vector<8x128xf32>
    %21 = vector.extract_strided_slice %19 {offsets = [0, 128], sizes = [8, 128], strides = [1, 1]} : vector<8x384xf32> to vector<8x128xf32>
    %22 = vector.extract_strided_slice %19 {offsets = [0, 256], sizes = [8, 128], strides = [1, 1]} : vector<8x384xf32> to vector<8x128xf32>
    %23 = arith.mulf %21, %1 : vector<8x128xf32>
    %24 = vector.extract_strided_slice %11 {offsets = [0, 384], sizes = [8, 128], strides = [1, 1]} : vector<8x512xf32> to vector<8x128xf32>
    %25 = math.tanh %24 : vector<8x128xf32>
    %26 = arith.mulf %20, %25 : vector<8x128xf32>
    %27 = arith.addf %23, %26 : vector<8x128xf32>
    %28 = math.tanh %27 : vector<8x128xf32>
    %29 = arith.mulf %22, %28 : vector<8x128xf32>
    %30 = vector.extract_strided_slice %7 {offsets = [8, 0], sizes = [8, 512], strides = [1, 1]} : vector<64x512xf32> to vector<8x512xf32>
    %c0_13 = arith.constant 0 : index
    %c0_14 = arith.constant 0 : index
    %31 = vector.load %arg2[%c0_13, %c0_14] : memref<128x512xf32, #tpu.memory_space<vmem>>, vector<128x512xf32>
    %cst_15 = arith.constant dense<0.000000e+00> : vector<8x512xf32>
    %32 = tpu.matmul %29, %31, %cst_15 {dimension_numbers = #tpu.dot_dimension_numbers<[1], [0], [0], [1], [0, 0, 1, 1], [], []>} : vector<8x128xf32>, vector<128x512xf32>, vector<8x512xf32> -> vector<8x512xf32>
    %33 = arith.addf %30, %32 : vector<8x512xf32>
    %34 = vector.extract_strided_slice %33 {offsets = [0, 0], sizes = [8, 384], strides = [1, 1]} : vector<8x512xf32> to vector<8x384xf32>
    %cst_16 = arith.constant 5.000000e-01 : f32
    %35 = vector.broadcast %cst_16 : f32 to vector<8x384xf32>
    %36 = arith.mulf %35, %34 : vector<8x384xf32>
    %37 = math.tanh %36 : vector<8x384xf32>
    %cst_17 = arith.constant 5.000000e-01 : f32
    %38 = vector.broadcast %cst_17 : f32 to vector<8x384xf32>
    %39 = arith.mulf %38, %37 : vector<8x384xf32>
    %cst_18 = arith.constant 5.000000e-01 : f32
    %40 = vector.broadcast %cst_18 : f32 to vector<8x384xf32>
    %41 = arith.addf %39, %40 : vector<8x384xf32>
    %42 = vector.extract_strided_slice %41 {offsets = [0, 0], sizes = [8, 128], strides = [1, 1]} : vector<8x384xf32> to vector<8x128xf32>
    %43 = vector.extract_strided_slice %41 {offsets = [0, 128], sizes = [8, 128], strides = [1, 1]} : vector<8x384xf32> to vector<8x128xf32>
    %44 = vector.extract_strided_slice %41 {offsets = [0, 256], sizes = [8, 128], strides = [1, 1]} : vector<8x384xf32> to vector<8x128xf32>
    %45 = arith.mulf %43, %27 : vector<8x128xf32>
    %46 = vector.extract_strided_slice %33 {offsets = [0, 384], sizes = [8, 128], strides = [1, 1]} : vector<8x512xf32> to vector<8x128xf32>
    %47 = math.tanh %46 : vector<8x128xf32>
    %48 = arith.mulf %42, %47 : vector<8x128xf32>
    %49 = arith.addf %45, %48 : vector<8x128xf32>
    %50 = math.tanh %49 : vector<8x128xf32>
    %51 = arith.mulf %44, %50 : vector<8x128xf32>
    %52 = vector.extract_strided_slice %7 {offsets = [16, 0], sizes = [8, 512], strides = [1, 1]} : vector<64x512xf32> to vector<8x512xf32>
    %c0_19 = arith.constant 0 : index
    %c0_20 = arith.constant 0 : index
    %53 = vector.load %arg2[%c0_19, %c0_20] : memref<128x512xf32, #tpu.memory_space<vmem>>, vector<128x512xf32>
    %cst_21 = arith.constant dense<0.000000e+00> : vector<8x512xf32>
    %54 = tpu.matmul %51, %53, %cst_21 {dimension_numbers = #tpu.dot_dimension_numbers<[1], [0], [0], [1], [0, 0, 1, 1], [], []>} : vector<8x128xf32>, vector<128x512xf32>, vector<8x512xf32> -> vector<8x512xf32>
    %55 = arith.addf %52, %54 : vector<8x512xf32>
    %56 = vector.extract_strided_slice %55 {offsets = [0, 0], sizes = [8, 384], strides = [1, 1]} : vector<8x512xf32> to vector<8x384xf32>
    %cst_22 = arith.constant 5.000000e-01 : f32
    %57 = vector.broadcast %cst_22 : f32 to vector<8x384xf32>
    %58 = arith.mulf %57, %56 : vector<8x384xf32>
    %59 = math.tanh %58 : vector<8x384xf32>
    %cst_23 = arith.constant 5.000000e-01 : f32
    %60 = vector.broadcast %cst_23 : f32 to vector<8x384xf32>
    %61 = arith.mulf %60, %59 : vector<8x384xf32>
    %cst_24 = arith.constant 5.000000e-01 : f32
    %62 = vector.broadcast %cst_24 : f32 to vector<8x384xf32>
    %63 = arith.addf %61, %62 : vector<8x384xf32>
    %64 = vector.extract_strided_slice %63 {offsets = [0, 0], sizes = [8, 128], strides = [1, 1]} : vector<8x384xf32> to vector<8x128xf32>
    %65 = vector.extract_strided_slice %63 {offsets = [0, 128], sizes = [8, 128], strides = [1, 1]} : vector<8x384xf32> to vector<8x128xf32>
    %66 = vector.extract_strided_slice %63 {offsets = [0, 256], sizes = [8, 128], strides = [1, 1]} : vector<8x384xf32> to vector<8x128xf32>
    %67 = arith.mulf %65, %49 : vector<8x128xf32>
    %68 = vector.extract_strided_slice %55 {offsets = [0, 384], sizes = [8, 128], strides = [1, 1]} : vector<8x512xf32> to vector<8x128xf32>
    %69 = math.tanh %68 : vector<8x128xf32>
    %70 = arith.mulf %64, %69 : vector<8x128xf32>
    %71 = arith.addf %67, %70 : vector<8x128xf32>
    %72 = math.tanh %71 : vector<8x128xf32>
    %73 = arith.mulf %66, %72 : vector<8x128xf32>
    %74 = vector.extract_strided_slice %7 {offsets = [24, 0], sizes = [8, 512], strides = [1, 1]} : vector<64x512xf32> to vector<8x512xf32>
    %c0_25 = arith.constant 0 : index
    %c0_26 = arith.constant 0 : index
    %75 = vector.load %arg2[%c0_25, %c0_26] : memref<128x512xf32, #tpu.memory_space<vmem>>, vector<128x512xf32>
    %cst_27 = arith.constant dense<0.000000e+00> : vector<8x512xf32>
    %76 = tpu.matmul %73, %75, %cst_27 {dimension_numbers = #tpu.dot_dimension_numbers<[1], [0], [0], [1], [0, 0, 1, 1], [], []>} : vector<8x128xf32>, vector<128x512xf32>, vector<8x512xf32> -> vector<8x512xf32>
    %77 = arith.addf %74, %76 : vector<8x512xf32>
    %78 = vector.extract_strided_slice %77 {offsets = [0, 0], sizes = [8, 384], strides = [1, 1]} : vector<8x512xf32> to vector<8x384xf32>
    %cst_28 = arith.constant 5.000000e-01 : f32
    %79 = vector.broadcast %cst_28 : f32 to vector<8x384xf32>
    %80 = arith.mulf %79, %78 : vector<8x384xf32>
    %81 = math.tanh %80 : vector<8x384xf32>
    %cst_29 = arith.constant 5.000000e-01 : f32
    %82 = vector.broadcast %cst_29 : f32 to vector<8x384xf32>
    %83 = arith.mulf %82, %81 : vector<8x384xf32>
    %cst_30 = arith.constant 5.000000e-01 : f32
    %84 = vector.broadcast %cst_30 : f32 to vector<8x384xf32>
    %85 = arith.addf %83, %84 : vector<8x384xf32>
    %86 = vector.extract_strided_slice %85 {offsets = [0, 0], sizes = [8, 128], strides = [1, 1]} : vector<8x384xf32> to vector<8x128xf32>
    %87 = vector.extract_strided_slice %85 {offsets = [0, 128], sizes = [8, 128], strides = [1, 1]} : vector<8x384xf32> to vector<8x128xf32>
    %88 = vector.extract_strided_slice %85 {offsets = [0, 256], sizes = [8, 128], strides = [1, 1]} : vector<8x384xf32> to vector<8x128xf32>
    %89 = arith.mulf %87, %71 : vector<8x128xf32>
    %90 = vector.extract_strided_slice %77 {offsets = [0, 384], sizes = [8, 128], strides = [1, 1]} : vector<8x512xf32> to vector<8x128xf32>
    %91 = math.tanh %90 : vector<8x128xf32>
    %92 = arith.mulf %86, %91 : vector<8x128xf32>
    %93 = arith.addf %89, %92 : vector<8x128xf32>
    %94 = math.tanh %93 : vector<8x128xf32>
    %95 = arith.mulf %88, %94 : vector<8x128xf32>
    %96 = vector.extract_strided_slice %7 {offsets = [32, 0], sizes = [8, 512], strides = [1, 1]} : vector<64x512xf32> to vector<8x512xf32>
    %c0_31 = arith.constant 0 : index
    %c0_32 = arith.constant 0 : index
    %97 = vector.load %arg2[%c0_31, %c0_32] : memref<128x512xf32, #tpu.memory_space<vmem>>, vector<128x512xf32>
    %cst_33 = arith.constant dense<0.000000e+00> : vector<8x512xf32>
    %98 = tpu.matmul %95, %97, %cst_33 {dimension_numbers = #tpu.dot_dimension_numbers<[1], [0], [0], [1], [0, 0, 1, 1], [], []>} : vector<8x128xf32>, vector<128x512xf32>, vector<8x512xf32> -> vector<8x512xf32>
    %99 = arith.addf %96, %98 : vector<8x512xf32>
    %100 = vector.extract_strided_slice %99 {offsets = [0, 0], sizes = [8, 384], strides = [1, 1]} : vector<8x512xf32> to vector<8x384xf32>
    %cst_34 = arith.constant 5.000000e-01 : f32
    %101 = vector.broadcast %cst_34 : f32 to vector<8x384xf32>
    %102 = arith.mulf %101, %100 : vector<8x384xf32>
    %103 = math.tanh %102 : vector<8x384xf32>
    %cst_35 = arith.constant 5.000000e-01 : f32
    %104 = vector.broadcast %cst_35 : f32 to vector<8x384xf32>
    %105 = arith.mulf %104, %103 : vector<8x384xf32>
    %cst_36 = arith.constant 5.000000e-01 : f32
    %106 = vector.broadcast %cst_36 : f32 to vector<8x384xf32>
    %107 = arith.addf %105, %106 : vector<8x384xf32>
    %108 = vector.extract_strided_slice %107 {offsets = [0, 0], sizes = [8, 128], strides = [1, 1]} : vector<8x384xf32> to vector<8x128xf32>
    %109 = vector.extract_strided_slice %107 {offsets = [0, 128], sizes = [8, 128], strides = [1, 1]} : vector<8x384xf32> to vector<8x128xf32>
    %110 = vector.extract_strided_slice %107 {offsets = [0, 256], sizes = [8, 128], strides = [1, 1]} : vector<8x384xf32> to vector<8x128xf32>
    %111 = arith.mulf %109, %93 : vector<8x128xf32>
    %112 = vector.extract_strided_slice %99 {offsets = [0, 384], sizes = [8, 128], strides = [1, 1]} : vector<8x512xf32> to vector<8x128xf32>
    %113 = math.tanh %112 : vector<8x128xf32>
    %114 = arith.mulf %108, %113 : vector<8x128xf32>
    %115 = arith.addf %111, %114 : vector<8x128xf32>
    %116 = math.tanh %115 : vector<8x128xf32>
    %117 = arith.mulf %110, %116 : vector<8x128xf32>
    %118 = vector.extract_strided_slice %7 {offsets = [40, 0], sizes = [8, 512], strides = [1, 1]} : vector<64x512xf32> to vector<8x512xf32>
    %c0_37 = arith.constant 0 : index
    %c0_38 = arith.constant 0 : index
    %119 = vector.load %arg2[%c0_37, %c0_38] : memref<128x512xf32, #tpu.memory_space<vmem>>, vector<128x512xf32>
    %cst_39 = arith.constant dense<0.000000e+00> : vector<8x512xf32>
    %120 = tpu.matmul %117, %119, %cst_39 {dimension_numbers = #tpu.dot_dimension_numbers<[1], [0], [0], [1], [0, 0, 1, 1], [], []>} : vector<8x128xf32>, vector<128x512xf32>, vector<8x512xf32> -> vector<8x512xf32>
    %121 = arith.addf %118, %120 : vector<8x512xf32>
    %122 = vector.extract_strided_slice %121 {offsets = [0, 0], sizes = [8, 384], strides = [1, 1]} : vector<8x512xf32> to vector<8x384xf32>
    %cst_40 = arith.constant 5.000000e-01 : f32
    %123 = vector.broadcast %cst_40 : f32 to vector<8x384xf32>
    %124 = arith.mulf %123, %122 : vector<8x384xf32>
    %125 = math.tanh %124 : vector<8x384xf32>
    %cst_41 = arith.constant 5.000000e-01 : f32
    %126 = vector.broadcast %cst_41 : f32 to vector<8x384xf32>
    %127 = arith.mulf %126, %125 : vector<8x384xf32>
    %cst_42 = arith.constant 5.000000e-01 : f32
    %128 = vector.broadcast %cst_42 : f32 to vector<8x384xf32>
    %129 = arith.addf %127, %128 : vector<8x384xf32>
    %130 = vector.extract_strided_slice %129 {offsets = [0, 0], sizes = [8, 128], strides = [1, 1]} : vector<8x384xf32> to vector<8x128xf32>
    %131 = vector.extract_strided_slice %129 {offsets = [0, 128], sizes = [8, 128], strides = [1, 1]} : vector<8x384xf32> to vector<8x128xf32>
    %132 = vector.extract_strided_slice %129 {offsets = [0, 256], sizes = [8, 128], strides = [1, 1]} : vector<8x384xf32> to vector<8x128xf32>
    %133 = arith.mulf %131, %115 : vector<8x128xf32>
    %134 = vector.extract_strided_slice %121 {offsets = [0, 384], sizes = [8, 128], strides = [1, 1]} : vector<8x512xf32> to vector<8x128xf32>
    %135 = math.tanh %134 : vector<8x128xf32>
    %136 = arith.mulf %130, %135 : vector<8x128xf32>
    %137 = arith.addf %133, %136 : vector<8x128xf32>
    %138 = math.tanh %137 : vector<8x128xf32>
    %139 = arith.mulf %132, %138 : vector<8x128xf32>
    %140 = vector.extract_strided_slice %7 {offsets = [48, 0], sizes = [8, 512], strides = [1, 1]} : vector<64x512xf32> to vector<8x512xf32>
    %c0_43 = arith.constant 0 : index
    %c0_44 = arith.constant 0 : index
    %141 = vector.load %arg2[%c0_43, %c0_44] : memref<128x512xf32, #tpu.memory_space<vmem>>, vector<128x512xf32>
    %cst_45 = arith.constant dense<0.000000e+00> : vector<8x512xf32>
    %142 = tpu.matmul %139, %141, %cst_45 {dimension_numbers = #tpu.dot_dimension_numbers<[1], [0], [0], [1], [0, 0, 1, 1], [], []>} : vector<8x128xf32>, vector<128x512xf32>, vector<8x512xf32> -> vector<8x512xf32>
    %143 = arith.addf %140, %142 : vector<8x512xf32>
    %144 = vector.extract_strided_slice %143 {offsets = [0, 0], sizes = [8, 384], strides = [1, 1]} : vector<8x512xf32> to vector<8x384xf32>
    %cst_46 = arith.constant 5.000000e-01 : f32
    %145 = vector.broadcast %cst_46 : f32 to vector<8x384xf32>
    %146 = arith.mulf %145, %144 : vector<8x384xf32>
    %147 = math.tanh %146 : vector<8x384xf32>
    %cst_47 = arith.constant 5.000000e-01 : f32
    %148 = vector.broadcast %cst_47 : f32 to vector<8x384xf32>
    %149 = arith.mulf %148, %147 : vector<8x384xf32>
    %cst_48 = arith.constant 5.000000e-01 : f32
    %150 = vector.broadcast %cst_48 : f32 to vector<8x384xf32>
    %151 = arith.addf %149, %150 : vector<8x384xf32>
    %152 = vector.extract_strided_slice %151 {offsets = [0, 0], sizes = [8, 128], strides = [1, 1]} : vector<8x384xf32> to vector<8x128xf32>
    %153 = vector.extract_strided_slice %151 {offsets = [0, 128], sizes = [8, 128], strides = [1, 1]} : vector<8x384xf32> to vector<8x128xf32>
    %154 = vector.extract_strided_slice %151 {offsets = [0, 256], sizes = [8, 128], strides = [1, 1]} : vector<8x384xf32> to vector<8x128xf32>
    %155 = arith.mulf %153, %137 : vector<8x128xf32>
    %156 = vector.extract_strided_slice %143 {offsets = [0, 384], sizes = [8, 128], strides = [1, 1]} : vector<8x512xf32> to vector<8x128xf32>
    %157 = math.tanh %156 : vector<8x128xf32>
    %158 = arith.mulf %152, %157 : vector<8x128xf32>
    %159 = arith.addf %155, %158 : vector<8x128xf32>
    %160 = math.tanh %159 : vector<8x128xf32>
    %161 = arith.mulf %154, %160 : vector<8x128xf32>
    %162 = vector.extract_strided_slice %7 {offsets = [56, 0], sizes = [8, 512], strides = [1, 1]} : vector<64x512xf32> to vector<8x512xf32>
    %c0_49 = arith.constant 0 : index
    %c0_50 = arith.constant 0 : index
    %163 = vector.load %arg2[%c0_49, %c0_50] : memref<128x512xf32, #tpu.memory_space<vmem>>, vector<128x512xf32>
    %cst_51 = arith.constant dense<0.000000e+00> : vector<8x512xf32>
    %164 = tpu.matmul %161, %163, %cst_51 {dimension_numbers = #tpu.dot_dimension_numbers<[1], [0], [0], [1], [0, 0, 1, 1], [], []>} : vector<8x128xf32>, vector<128x512xf32>, vector<8x512xf32> -> vector<8x512xf32>
    %165 = arith.addf %162, %164 : vector<8x512xf32>
    %166 = vector.extract_strided_slice %165 {offsets = [0, 0], sizes = [8, 384], strides = [1, 1]} : vector<8x512xf32> to vector<8x384xf32>
    %cst_52 = arith.constant 5.000000e-01 : f32
    %167 = vector.broadcast %cst_52 : f32 to vector<8x384xf32>
    %168 = arith.mulf %167, %166 : vector<8x384xf32>
    %169 = math.tanh %168 : vector<8x384xf32>
    %cst_53 = arith.constant 5.000000e-01 : f32
    %170 = vector.broadcast %cst_53 : f32 to vector<8x384xf32>
    %171 = arith.mulf %170, %169 : vector<8x384xf32>
    %cst_54 = arith.constant 5.000000e-01 : f32
    %172 = vector.broadcast %cst_54 : f32 to vector<8x384xf32>
    %173 = arith.addf %171, %172 : vector<8x384xf32>
    %174 = vector.extract_strided_slice %173 {offsets = [0, 0], sizes = [8, 128], strides = [1, 1]} : vector<8x384xf32> to vector<8x128xf32>
    %175 = vector.extract_strided_slice %173 {offsets = [0, 128], sizes = [8, 128], strides = [1, 1]} : vector<8x384xf32> to vector<8x128xf32>
    %176 = vector.extract_strided_slice %173 {offsets = [0, 256], sizes = [8, 128], strides = [1, 1]} : vector<8x384xf32> to vector<8x128xf32>
    %177 = arith.mulf %175, %159 : vector<8x128xf32>
    %178 = vector.extract_strided_slice %165 {offsets = [0, 384], sizes = [8, 128], strides = [1, 1]} : vector<8x512xf32> to vector<8x128xf32>
    %179 = math.tanh %178 : vector<8x128xf32>
    %180 = arith.mulf %174, %179 : vector<8x128xf32>
    %181 = arith.addf %177, %180 : vector<8x128xf32>
    %182 = math.tanh %181 : vector<8x128xf32>
    %183 = arith.mulf %176, %182 : vector<8x128xf32>
    %184 = tpu.concatenate %29, %51, %73, %95, %117, %139, %161, %183 in 0 : vector<8x128xf32>, vector<8x128xf32>, vector<8x128xf32>, vector<8x128xf32>, vector<8x128xf32>, vector<8x128xf32>, vector<8x128xf32>, vector<8x128xf32> -> vector<64x128xf32>
    %c0_55 = arith.constant 0 : index
    %c0_56 = arith.constant 0 : index
    %c0_57 = arith.constant 0 : index
    %185 = vector.load %arg4[%c0_55, %c0_56, %c0_57] : memref<4x128x128xf32, #tpu.memory_space<vmem>>, vector<1x128x128xf32>
    %186 = vector.shape_cast %185 : vector<1x128x128xf32> to vector<128x128xf32>
    %cst_58 = arith.constant dense<0.000000e+00> : vector<64x128xf32>
    %187 = tpu.matmul %184, %186, %cst_58 {dimension_numbers = #tpu.dot_dimension_numbers<[1], [0], [0], [1], [0, 0, 1, 1], [], []>} : vector<64x128xf32>, vector<128x128xf32>, vector<64x128xf32> -> vector<64x128xf32>
    %c0_59 = arith.constant 0 : index
    %c0_60 = arith.constant 0 : index
    %c0_61 = arith.constant 0 : index
    %188 = vector.load %arg5[%c0_59, %c0_60, %c0_61] : memref<4x1x128xf32, #tpu.memory_space<vmem>>, vector<1x1x128xf32>
    %189 = vector.shape_cast %188 : vector<1x1x128xf32> to vector<1x128xf32>
    %190 = vector.broadcast %189 : vector<1x128xf32> to vector<64x128xf32>
    %191 = arith.addf %187, %190 : vector<64x128xf32>
    %192 = vector.extract_strided_slice %191 {offsets = [0, 0], sizes = [8, 128], strides = [1, 1]} : vector<64x128xf32> to vector<8x128xf32>
    %193 = vector.extract_strided_slice %191 {offsets = [8, 0], sizes = [8, 128], strides = [1, 1]} : vector<64x128xf32> to vector<8x128xf32>
    %194 = vector.extract_strided_slice %191 {offsets = [16, 0], sizes = [8, 128], strides = [1, 1]} : vector<64x128xf32> to vector<8x128xf32>
    %195 = vector.extract_strided_slice %191 {offsets = [24, 0], sizes = [8, 128], strides = [1, 1]} : vector<64x128xf32> to vector<8x128xf32>
    %196 = vector.extract_strided_slice %191 {offsets = [32, 0], sizes = [8, 128], strides = [1, 1]} : vector<64x128xf32> to vector<8x128xf32>
    %197 = vector.extract_strided_slice %191 {offsets = [40, 0], sizes = [8, 128], strides = [1, 1]} : vector<64x128xf32> to vector<8x128xf32>
    %198 = vector.extract_strided_slice %191 {offsets = [48, 0], sizes = [8, 128], strides = [1, 1]} : vector<64x128xf32> to vector<8x128xf32>
    %199 = vector.extract_strided_slice %191 {offsets = [56, 0], sizes = [8, 128], strides = [1, 1]} : vector<64x128xf32> to vector<8x128xf32>
    %200 = arith.maximumf %192, %193 : vector<8x128xf32>
    %201 = arith.maximumf %194, %195 : vector<8x128xf32>
    %202 = arith.maximumf %196, %197 : vector<8x128xf32>
    %203 = arith.maximumf %198, %199 : vector<8x128xf32>
    %204 = arith.maximumf %200, %201 : vector<8x128xf32>
    %205 = arith.maximumf %202, %203 : vector<8x128xf32>
    %206 = arith.maximumf %204, %205 : vector<8x128xf32>
    %207 = arith.subf %192, %206 : vector<8x128xf32>
    %208 = math.exp %207 : vector<8x128xf32>
    %209 = arith.subf %193, %206 : vector<8x128xf32>
    %210 = math.exp %209 : vector<8x128xf32>
    %211 = arith.subf %194, %206 : vector<8x128xf32>
    %212 = math.exp %211 : vector<8x128xf32>
    %213 = arith.subf %195, %206 : vector<8x128xf32>
    %214 = math.exp %213 : vector<8x128xf32>
    %215 = arith.subf %196, %206 : vector<8x128xf32>
    %216 = math.exp %215 : vector<8x128xf32>
    %217 = arith.subf %197, %206 : vector<8x128xf32>
    %218 = math.exp %217 : vector<8x128xf32>
    %219 = arith.subf %198, %206 : vector<8x128xf32>
    %220 = math.exp %219 : vector<8x128xf32>
    %221 = arith.subf %199, %206 : vector<8x128xf32>
    %222 = math.exp %221 : vector<8x128xf32>
    %223 = arith.addf %208, %210 : vector<8x128xf32>
    %224 = arith.addf %212, %214 : vector<8x128xf32>
    %225 = arith.addf %216, %218 : vector<8x128xf32>
    %226 = arith.addf %220, %222 : vector<8x128xf32>
    %227 = arith.addf %223, %224 : vector<8x128xf32>
    %228 = arith.addf %225, %226 : vector<8x128xf32>
    %229 = arith.addf %227, %228 : vector<8x128xf32>
    %230 = math.log %229 : vector<8x128xf32>
    %231 = arith.addf %206, %230 : vector<8x128xf32>
    %232 = arith.subf %192, %231 : vector<8x128xf32>
    %233 = arith.subf %193, %231 : vector<8x128xf32>
    %234 = arith.subf %194, %231 : vector<8x128xf32>
    %235 = arith.subf %195, %231 : vector<8x128xf32>
    %236 = arith.subf %196, %231 : vector<8x128xf32>
    %237 = arith.subf %197, %231 : vector<8x128xf32>
    %238 = arith.subf %198, %231 : vector<8x128xf32>
    %239 = arith.subf %199, %231 : vector<8x128xf32>
    %240 = tpu.concatenate %232, %233, %234, %235, %236, %237, %238, %239 in 0 : vector<8x128xf32>, vector<8x128xf32>, vector<8x128xf32>, vector<8x128xf32>, vector<8x128xf32>, vector<8x128xf32>, vector<8x128xf32>, vector<8x128xf32> -> vector<64x128xf32>
    %c0_62 = arith.constant 0 : index
    %c0_63 = arith.constant 0 : index
    %241 = vector.load %arg1[%c0_62, %c0_63] : memref<128x512xf32, #tpu.memory_space<vmem>>, vector<128x512xf32>
    %cst_64 = arith.constant dense<0.000000e+00> : vector<64x512xf32>
    %242 = tpu.matmul %240, %241, %cst_64 {dimension_numbers = #tpu.dot_dimension_numbers<[1], [0], [0], [1], [0, 0, 1, 1], [], []>} : vector<64x128xf32>, vector<128x512xf32>, vector<64x512xf32> -> vector<64x512xf32>
    %c0_65 = arith.constant 0 : index
    %c0_66 = arith.constant 0 : index
    %243 = vector.load %arg3[%c0_65, %c0_66] : memref<1x512xf32, #tpu.memory_space<vmem>>, vector<1x512xf32>
    %244 = vector.broadcast %243 : vector<1x512xf32> to vector<64x512xf32>
    %245 = arith.addf %242, %244 : vector<64x512xf32>
    %246 = vector.extract_strided_slice %245 {offsets = [0, 0], sizes = [8, 512], strides = [1, 1]} : vector<64x512xf32> to vector<8x512xf32>
    %c0_67 = arith.constant 0 : index
    %c0_68 = arith.constant 0 : index
    %247 = vector.load %arg2[%c0_67, %c0_68] : memref<128x512xf32, #tpu.memory_space<vmem>>, vector<128x512xf32>
    %cst_69 = arith.constant dense<0.000000e+00> : vector<8x512xf32>
    %248 = tpu.matmul %183, %247, %cst_69 {dimension_numbers = #tpu.dot_dimension_numbers<[1], [0], [0], [1], [0, 0, 1, 1], [], []>} : vector<8x128xf32>, vector<128x512xf32>, vector<8x512xf32> -> vector<8x512xf32>
    %249 = arith.addf %246, %248 : vector<8x512xf32>
    %250 = vector.extract_strided_slice %249 {offsets = [0, 0], sizes = [8, 384], strides = [1, 1]} : vector<8x512xf32> to vector<8x384xf32>
    %cst_70 = arith.constant 5.000000e-01 : f32
    %251 = vector.broadcast %cst_70 : f32 to vector<8x384xf32>
    %252 = arith.mulf %251, %250 : vector<8x384xf32>
    %253 = math.tanh %252 : vector<8x384xf32>
    %cst_71 = arith.constant 5.000000e-01 : f32
    %254 = vector.broadcast %cst_71 : f32 to vector<8x384xf32>
    %255 = arith.mulf %254, %253 : vector<8x384xf32>
    %cst_72 = arith.constant 5.000000e-01 : f32
    %256 = vector.broadcast %cst_72 : f32 to vector<8x384xf32>
    %257 = arith.addf %255, %256 : vector<8x384xf32>
    %258 = vector.extract_strided_slice %257 {offsets = [0, 0], sizes = [8, 128], strides = [1, 1]} : vector<8x384xf32> to vector<8x128xf32>
    %259 = vector.extract_strided_slice %257 {offsets = [0, 128], sizes = [8, 128], strides = [1, 1]} : vector<8x384xf32> to vector<8x128xf32>
    %260 = vector.extract_strided_slice %257 {offsets = [0, 256], sizes = [8, 128], strides = [1, 1]} : vector<8x384xf32> to vector<8x128xf32>
    %261 = arith.mulf %259, %181 : vector<8x128xf32>
    %262 = vector.extract_strided_slice %249 {offsets = [0, 384], sizes = [8, 128], strides = [1, 1]} : vector<8x512xf32> to vector<8x128xf32>
    %263 = math.tanh %262 : vector<8x128xf32>
    %264 = arith.mulf %258, %263 : vector<8x128xf32>
    %265 = arith.addf %261, %264 : vector<8x128xf32>
    %266 = math.tanh %265 : vector<8x128xf32>
    %267 = arith.mulf %260, %266 : vector<8x128xf32>
    %268 = vector.extract_strided_slice %245 {offsets = [8, 0], sizes = [8, 512], strides = [1, 1]} : vector<64x512xf32> to vector<8x512xf32>
    %c0_73 = arith.constant 0 : index
    %c0_74 = arith.constant 0 : index
    %269 = vector.load %arg2[%c0_73, %c0_74] : memref<128x512xf32, #tpu.memory_space<vmem>>, vector<128x512xf32>
    %cst_75 = arith.constant dense<0.000000e+00> : vector<8x512xf32>
    %270 = tpu.matmul %267, %269, %cst_75 {dimension_numbers = #tpu.dot_dimension_numbers<[1], [0], [0], [1], [0, 0, 1, 1], [], []>} : vector<8x128xf32>, vector<128x512xf32>, vector<8x512xf32> -> vector<8x512xf32>
    %271 = arith.addf %268, %270 : vector<8x512xf32>
    %272 = vector.extract_strided_slice %271 {offsets = [0, 0], sizes = [8, 384], strides = [1, 1]} : vector<8x512xf32> to vector<8x384xf32>
    %cst_76 = arith.constant 5.000000e-01 : f32
    %273 = vector.broadcast %cst_76 : f32 to vector<8x384xf32>
    %274 = arith.mulf %273, %272 : vector<8x384xf32>
    %275 = math.tanh %274 : vector<8x384xf32>
    %cst_77 = arith.constant 5.000000e-01 : f32
    %276 = vector.broadcast %cst_77 : f32 to vector<8x384xf32>
    %277 = arith.mulf %276, %275 : vector<8x384xf32>
    %cst_78 = arith.constant 5.000000e-01 : f32
    %278 = vector.broadcast %cst_78 : f32 to vector<8x384xf32>
    %279 = arith.addf %277, %278 : vector<8x384xf32>
    %280 = vector.extract_strided_slice %279 {offsets = [0, 0], sizes = [8, 128], strides = [1, 1]} : vector<8x384xf32> to vector<8x128xf32>
    %281 = vector.extract_strided_slice %279 {offsets = [0, 128], sizes = [8, 128], strides = [1, 1]} : vector<8x384xf32> to vector<8x128xf32>
    %282 = vector.extract_strided_slice %279 {offsets = [0, 256], sizes = [8, 128], strides = [1, 1]} : vector<8x384xf32> to vector<8x128xf32>
    %283 = arith.mulf %281, %265 : vector<8x128xf32>
    %284 = vector.extract_strided_slice %271 {offsets = [0, 384], sizes = [8, 128], strides = [1, 1]} : vector<8x512xf32> to vector<8x128xf32>
    %285 = math.tanh %284 : vector<8x128xf32>
    %286 = arith.mulf %280, %285 : vector<8x128xf32>
    %287 = arith.addf %283, %286 : vector<8x128xf32>
    %288 = math.tanh %287 : vector<8x128xf32>
    %289 = arith.mulf %282, %288 : vector<8x128xf32>
    %290 = vector.extract_strided_slice %245 {offsets = [16, 0], sizes = [8, 512], strides = [1, 1]} : vector<64x512xf32> to vector<8x512xf32>
    %c0_79 = arith.constant 0 : index
    %c0_80 = arith.constant 0 : index
    %291 = vector.load %arg2[%c0_79, %c0_80] : memref<128x512xf32, #tpu.memory_space<vmem>>, vector<128x512xf32>
    %cst_81 = arith.constant dense<0.000000e+00> : vector<8x512xf32>
    %292 = tpu.matmul %289, %291, %cst_81 {dimension_numbers = #tpu.dot_dimension_numbers<[1], [0], [0], [1], [0, 0, 1, 1], [], []>} : vector<8x128xf32>, vector<128x512xf32>, vector<8x512xf32> -> vector<8x512xf32>
    %293 = arith.addf %290, %292 : vector<8x512xf32>
    %294 = vector.extract_strided_slice %293 {offsets = [0, 0], sizes = [8, 384], strides = [1, 1]} : vector<8x512xf32> to vector<8x384xf32>
    %cst_82 = arith.constant 5.000000e-01 : f32
    %295 = vector.broadcast %cst_82 : f32 to vector<8x384xf32>
    %296 = arith.mulf %295, %294 : vector<8x384xf32>
    %297 = math.tanh %296 : vector<8x384xf32>
    %cst_83 = arith.constant 5.000000e-01 : f32
    %298 = vector.broadcast %cst_83 : f32 to vector<8x384xf32>
    %299 = arith.mulf %298, %297 : vector<8x384xf32>
    %cst_84 = arith.constant 5.000000e-01 : f32
    %300 = vector.broadcast %cst_84 : f32 to vector<8x384xf32>
    %301 = arith.addf %299, %300 : vector<8x384xf32>
    %302 = vector.extract_strided_slice %301 {offsets = [0, 0], sizes = [8, 128], strides = [1, 1]} : vector<8x384xf32> to vector<8x128xf32>
    %303 = vector.extract_strided_slice %301 {offsets = [0, 128], sizes = [8, 128], strides = [1, 1]} : vector<8x384xf32> to vector<8x128xf32>
    %304 = vector.extract_strided_slice %301 {offsets = [0, 256], sizes = [8, 128], strides = [1, 1]} : vector<8x384xf32> to vector<8x128xf32>
    %305 = arith.mulf %303, %287 : vector<8x128xf32>
    %306 = vector.extract_strided_slice %293 {offsets = [0, 384], sizes = [8, 128], strides = [1, 1]} : vector<8x512xf32> to vector<8x128xf32>
    %307 = math.tanh %306 : vector<8x128xf32>
    %308 = arith.mulf %302, %307 : vector<8x128xf32>
    %309 = arith.addf %305, %308 : vector<8x128xf32>
    %310 = math.tanh %309 : vector<8x128xf32>
    %311 = arith.mulf %304, %310 : vector<8x128xf32>
    %312 = vector.extract_strided_slice %245 {offsets = [24, 0], sizes = [8, 512], strides = [1, 1]} : vector<64x512xf32> to vector<8x512xf32>
    %c0_85 = arith.constant 0 : index
    %c0_86 = arith.constant 0 : index
    %313 = vector.load %arg2[%c0_85, %c0_86] : memref<128x512xf32, #tpu.memory_space<vmem>>, vector<128x512xf32>
    %cst_87 = arith.constant dense<0.000000e+00> : vector<8x512xf32>
    %314 = tpu.matmul %311, %313, %cst_87 {dimension_numbers = #tpu.dot_dimension_numbers<[1], [0], [0], [1], [0, 0, 1, 1], [], []>} : vector<8x128xf32>, vector<128x512xf32>, vector<8x512xf32> -> vector<8x512xf32>
    %315 = arith.addf %312, %314 : vector<8x512xf32>
    %316 = vector.extract_strided_slice %315 {offsets = [0, 0], sizes = [8, 384], strides = [1, 1]} : vector<8x512xf32> to vector<8x384xf32>
    %cst_88 = arith.constant 5.000000e-01 : f32
    %317 = vector.broadcast %cst_88 : f32 to vector<8x384xf32>
    %318 = arith.mulf %317, %316 : vector<8x384xf32>
    %319 = math.tanh %318 : vector<8x384xf32>
    %cst_89 = arith.constant 5.000000e-01 : f32
    %320 = vector.broadcast %cst_89 : f32 to vector<8x384xf32>
    %321 = arith.mulf %320, %319 : vector<8x384xf32>
    %cst_90 = arith.constant 5.000000e-01 : f32
    %322 = vector.broadcast %cst_90 : f32 to vector<8x384xf32>
    %323 = arith.addf %321, %322 : vector<8x384xf32>
    %324 = vector.extract_strided_slice %323 {offsets = [0, 0], sizes = [8, 128], strides = [1, 1]} : vector<8x384xf32> to vector<8x128xf32>
    %325 = vector.extract_strided_slice %323 {offsets = [0, 128], sizes = [8, 128], strides = [1, 1]} : vector<8x384xf32> to vector<8x128xf32>
    %326 = vector.extract_strided_slice %323 {offsets = [0, 256], sizes = [8, 128], strides = [1, 1]} : vector<8x384xf32> to vector<8x128xf32>
    %327 = arith.mulf %325, %309 : vector<8x128xf32>
    %328 = vector.extract_strided_slice %315 {offsets = [0, 384], sizes = [8, 128], strides = [1, 1]} : vector<8x512xf32> to vector<8x128xf32>
    %329 = math.tanh %328 : vector<8x128xf32>
    %330 = arith.mulf %324, %329 : vector<8x128xf32>
    %331 = arith.addf %327, %330 : vector<8x128xf32>
    %332 = math.tanh %331 : vector<8x128xf32>
    %333 = arith.mulf %326, %332 : vector<8x128xf32>
    %334 = vector.extract_strided_slice %245 {offsets = [32, 0], sizes = [8, 512], strides = [1, 1]} : vector<64x512xf32> to vector<8x512xf32>
    %c0_91 = arith.constant 0 : index
    %c0_92 = arith.constant 0 : index
    %335 = vector.load %arg2[%c0_91, %c0_92] : memref<128x512xf32, #tpu.memory_space<vmem>>, vector<128x512xf32>
    %cst_93 = arith.constant dense<0.000000e+00> : vector<8x512xf32>
    %336 = tpu.matmul %333, %335, %cst_93 {dimension_numbers = #tpu.dot_dimension_numbers<[1], [0], [0], [1], [0, 0, 1, 1], [], []>} : vector<8x128xf32>, vector<128x512xf32>, vector<8x512xf32> -> vector<8x512xf32>
    %337 = arith.addf %334, %336 : vector<8x512xf32>
    %338 = vector.extract_strided_slice %337 {offsets = [0, 0], sizes = [8, 384], strides = [1, 1]} : vector<8x512xf32> to vector<8x384xf32>
    %cst_94 = arith.constant 5.000000e-01 : f32
    %339 = vector.broadcast %cst_94 : f32 to vector<8x384xf32>
    %340 = arith.mulf %339, %338 : vector<8x384xf32>
    %341 = math.tanh %340 : vector<8x384xf32>
    %cst_95 = arith.constant 5.000000e-01 : f32
    %342 = vector.broadcast %cst_95 : f32 to vector<8x384xf32>
    %343 = arith.mulf %342, %341 : vector<8x384xf32>
    %cst_96 = arith.constant 5.000000e-01 : f32
    %344 = vector.broadcast %cst_96 : f32 to vector<8x384xf32>
    %345 = arith.addf %343, %344 : vector<8x384xf32>
    %346 = vector.extract_strided_slice %345 {offsets = [0, 0], sizes = [8, 128], strides = [1, 1]} : vector<8x384xf32> to vector<8x128xf32>
    %347 = vector.extract_strided_slice %345 {offsets = [0, 128], sizes = [8, 128], strides = [1, 1]} : vector<8x384xf32> to vector<8x128xf32>
    %348 = vector.extract_strided_slice %345 {offsets = [0, 256], sizes = [8, 128], strides = [1, 1]} : vector<8x384xf32> to vector<8x128xf32>
    %349 = arith.mulf %347, %331 : vector<8x128xf32>
    %350 = vector.extract_strided_slice %337 {offsets = [0, 384], sizes = [8, 128], strides = [1, 1]} : vector<8x512xf32> to vector<8x128xf32>
    %351 = math.tanh %350 : vector<8x128xf32>
    %352 = arith.mulf %346, %351 : vector<8x128xf32>
    %353 = arith.addf %349, %352 : vector<8x128xf32>
    %354 = math.tanh %353 : vector<8x128xf32>
    %355 = arith.mulf %348, %354 : vector<8x128xf32>
    %356 = vector.extract_strided_slice %245 {offsets = [40, 0], sizes = [8, 512], strides = [1, 1]} : vector<64x512xf32> to vector<8x512xf32>
    %c0_97 = arith.constant 0 : index
    %c0_98 = arith.constant 0 : index
    %357 = vector.load %arg2[%c0_97, %c0_98] : memref<128x512xf32, #tpu.memory_space<vmem>>, vector<128x512xf32>
    %cst_99 = arith.constant dense<0.000000e+00> : vector<8x512xf32>
    %358 = tpu.matmul %355, %357, %cst_99 {dimension_numbers = #tpu.dot_dimension_numbers<[1], [0], [0], [1], [0, 0, 1, 1], [], []>} : vector<8x128xf32>, vector<128x512xf32>, vector<8x512xf32> -> vector<8x512xf32>
    %359 = arith.addf %356, %358 : vector<8x512xf32>
    %360 = vector.extract_strided_slice %359 {offsets = [0, 0], sizes = [8, 384], strides = [1, 1]} : vector<8x512xf32> to vector<8x384xf32>
    %cst_100 = arith.constant 5.000000e-01 : f32
    %361 = vector.broadcast %cst_100 : f32 to vector<8x384xf32>
    %362 = arith.mulf %361, %360 : vector<8x384xf32>
    %363 = math.tanh %362 : vector<8x384xf32>
    %cst_101 = arith.constant 5.000000e-01 : f32
    %364 = vector.broadcast %cst_101 : f32 to vector<8x384xf32>
    %365 = arith.mulf %364, %363 : vector<8x384xf32>
    %cst_102 = arith.constant 5.000000e-01 : f32
    %366 = vector.broadcast %cst_102 : f32 to vector<8x384xf32>
    %367 = arith.addf %365, %366 : vector<8x384xf32>
    %368 = vector.extract_strided_slice %367 {offsets = [0, 0], sizes = [8, 128], strides = [1, 1]} : vector<8x384xf32> to vector<8x128xf32>
    %369 = vector.extract_strided_slice %367 {offsets = [0, 128], sizes = [8, 128], strides = [1, 1]} : vector<8x384xf32> to vector<8x128xf32>
    %370 = vector.extract_strided_slice %367 {offsets = [0, 256], sizes = [8, 128], strides = [1, 1]} : vector<8x384xf32> to vector<8x128xf32>
    %371 = arith.mulf %369, %353 : vector<8x128xf32>
    %372 = vector.extract_strided_slice %359 {offsets = [0, 384], sizes = [8, 128], strides = [1, 1]} : vector<8x512xf32> to vector<8x128xf32>
    %373 = math.tanh %372 : vector<8x128xf32>
    %374 = arith.mulf %368, %373 : vector<8x128xf32>
    %375 = arith.addf %371, %374 : vector<8x128xf32>
    %376 = math.tanh %375 : vector<8x128xf32>
    %377 = arith.mulf %370, %376 : vector<8x128xf32>
    %378 = vector.extract_strided_slice %245 {offsets = [48, 0], sizes = [8, 512], strides = [1, 1]} : vector<64x512xf32> to vector<8x512xf32>
    %c0_103 = arith.constant 0 : index
    %c0_104 = arith.constant 0 : index
    %379 = vector.load %arg2[%c0_103, %c0_104] : memref<128x512xf32, #tpu.memory_space<vmem>>, vector<128x512xf32>
    %cst_105 = arith.constant dense<0.000000e+00> : vector<8x512xf32>
    %380 = tpu.matmul %377, %379, %cst_105 {dimension_numbers = #tpu.dot_dimension_numbers<[1], [0], [0], [1], [0, 0, 1, 1], [], []>} : vector<8x128xf32>, vector<128x512xf32>, vector<8x512xf32> -> vector<8x512xf32>
    %381 = arith.addf %378, %380 : vector<8x512xf32>
    %382 = vector.extract_strided_slice %381 {offsets = [0, 0], sizes = [8, 384], strides = [1, 1]} : vector<8x512xf32> to vector<8x384xf32>
    %cst_106 = arith.constant 5.000000e-01 : f32
    %383 = vector.broadcast %cst_106 : f32 to vector<8x384xf32>
    %384 = arith.mulf %383, %382 : vector<8x384xf32>
    %385 = math.tanh %384 : vector<8x384xf32>
    %cst_107 = arith.constant 5.000000e-01 : f32
    %386 = vector.broadcast %cst_107 : f32 to vector<8x384xf32>
    %387 = arith.mulf %386, %385 : vector<8x384xf32>
    %cst_108 = arith.constant 5.000000e-01 : f32
    %388 = vector.broadcast %cst_108 : f32 to vector<8x384xf32>
    %389 = arith.addf %387, %388 : vector<8x384xf32>
    %390 = vector.extract_strided_slice %389 {offsets = [0, 0], sizes = [8, 128], strides = [1, 1]} : vector<8x384xf32> to vector<8x128xf32>
    %391 = vector.extract_strided_slice %389 {offsets = [0, 128], sizes = [8, 128], strides = [1, 1]} : vector<8x384xf32> to vector<8x128xf32>
    %392 = vector.extract_strided_slice %389 {offsets = [0, 256], sizes = [8, 128], strides = [1, 1]} : vector<8x384xf32> to vector<8x128xf32>
    %393 = arith.mulf %391, %375 : vector<8x128xf32>
    %394 = vector.extract_strided_slice %381 {offsets = [0, 384], sizes = [8, 128], strides = [1, 1]} : vector<8x512xf32> to vector<8x128xf32>
    %395 = math.tanh %394 : vector<8x128xf32>
    %396 = arith.mulf %390, %395 : vector<8x128xf32>
    %397 = arith.addf %393, %396 : vector<8x128xf32>
    %398 = math.tanh %397 : vector<8x128xf32>
    %399 = arith.mulf %392, %398 : vector<8x128xf32>
    %400 = vector.extract_strided_slice %245 {offsets = [56, 0], sizes = [8, 512], strides = [1, 1]} : vector<64x512xf32> to vector<8x512xf32>
    %c0_109 = arith.constant 0 : index
    %c0_110 = arith.constant 0 : index
    %401 = vector.load %arg2[%c0_109, %c0_110] : memref<128x512xf32, #tpu.memory_space<vmem>>, vector<128x512xf32>
    %cst_111 = arith.constant dense<0.000000e+00> : vector<8x512xf32>
    %402 = tpu.matmul %399, %401, %cst_111 {dimension_numbers = #tpu.dot_dimension_numbers<[1], [0], [0], [1], [0, 0, 1, 1], [], []>} : vector<8x128xf32>, vector<128x512xf32>, vector<8x512xf32> -> vector<8x512xf32>
    %403 = arith.addf %400, %402 : vector<8x512xf32>
    %404 = vector.extract_strided_slice %403 {offsets = [0, 0], sizes = [8, 384], strides = [1, 1]} : vector<8x512xf32> to vector<8x384xf32>
    %cst_112 = arith.constant 5.000000e-01 : f32
    %405 = vector.broadcast %cst_112 : f32 to vector<8x384xf32>
    %406 = arith.mulf %405, %404 : vector<8x384xf32>
    %407 = math.tanh %406 : vector<8x384xf32>
    %cst_113 = arith.constant 5.000000e-01 : f32
    %408 = vector.broadcast %cst_113 : f32 to vector<8x384xf32>
    %409 = arith.mulf %408, %407 : vector<8x384xf32>
    %cst_114 = arith.constant 5.000000e-01 : f32
    %410 = vector.broadcast %cst_114 : f32 to vector<8x384xf32>
    %411 = arith.addf %409, %410 : vector<8x384xf32>
    %412 = vector.extract_strided_slice %411 {offsets = [0, 0], sizes = [8, 128], strides = [1, 1]} : vector<8x384xf32> to vector<8x128xf32>
    %413 = vector.extract_strided_slice %411 {offsets = [0, 128], sizes = [8, 128], strides = [1, 1]} : vector<8x384xf32> to vector<8x128xf32>
    %414 = vector.extract_strided_slice %411 {offsets = [0, 256], sizes = [8, 128], strides = [1, 1]} : vector<8x384xf32> to vector<8x128xf32>
    %415 = arith.mulf %413, %397 : vector<8x128xf32>
    %416 = vector.extract_strided_slice %403 {offsets = [0, 384], sizes = [8, 128], strides = [1, 1]} : vector<8x512xf32> to vector<8x128xf32>
    %417 = math.tanh %416 : vector<8x128xf32>
    %418 = arith.mulf %412, %417 : vector<8x128xf32>
    %419 = arith.addf %415, %418 : vector<8x128xf32>
    %420 = math.tanh %419 : vector<8x128xf32>
    %421 = arith.mulf %414, %420 : vector<8x128xf32>
    %422 = tpu.concatenate %267, %289, %311, %333, %355, %377, %399, %421 in 0 : vector<8x128xf32>, vector<8x128xf32>, vector<8x128xf32>, vector<8x128xf32>, vector<8x128xf32>, vector<8x128xf32>, vector<8x128xf32>, vector<8x128xf32> -> vector<64x128xf32>
    %c1 = arith.constant 1 : index
    %c0_115 = arith.constant 0 : index
    %c0_116 = arith.constant 0 : index
    %423 = vector.load %arg4[%c1, %c0_115, %c0_116] : memref<4x128x128xf32, #tpu.memory_space<vmem>>, vector<1x128x128xf32>
    %424 = vector.shape_cast %423 : vector<1x128x128xf32> to vector<128x128xf32>
    %cst_117 = arith.constant dense<0.000000e+00> : vector<64x128xf32>
    %425 = tpu.matmul %422, %424, %cst_117 {dimension_numbers = #tpu.dot_dimension_numbers<[1], [0], [0], [1], [0, 0, 1, 1], [], []>} : vector<64x128xf32>, vector<128x128xf32>, vector<64x128xf32> -> vector<64x128xf32>
    %c1_118 = arith.constant 1 : index
    %c0_119 = arith.constant 0 : index
    %c0_120 = arith.constant 0 : index
    %426 = vector.load %arg5[%c1_118, %c0_119, %c0_120] : memref<4x1x128xf32, #tpu.memory_space<vmem>>, vector<1x1x128xf32>
    %427 = vector.shape_cast %426 : vector<1x1x128xf32> to vector<1x128xf32>
    %428 = vector.broadcast %427 : vector<1x128xf32> to vector<64x128xf32>
    %429 = arith.addf %425, %428 : vector<64x128xf32>
    %430 = vector.extract_strided_slice %429 {offsets = [0, 0], sizes = [8, 128], strides = [1, 1]} : vector<64x128xf32> to vector<8x128xf32>
    %431 = vector.extract_strided_slice %429 {offsets = [8, 0], sizes = [8, 128], strides = [1, 1]} : vector<64x128xf32> to vector<8x128xf32>
    %432 = vector.extract_strided_slice %429 {offsets = [16, 0], sizes = [8, 128], strides = [1, 1]} : vector<64x128xf32> to vector<8x128xf32>
    %433 = vector.extract_strided_slice %429 {offsets = [24, 0], sizes = [8, 128], strides = [1, 1]} : vector<64x128xf32> to vector<8x128xf32>
    %434 = vector.extract_strided_slice %429 {offsets = [32, 0], sizes = [8, 128], strides = [1, 1]} : vector<64x128xf32> to vector<8x128xf32>
    %435 = vector.extract_strided_slice %429 {offsets = [40, 0], sizes = [8, 128], strides = [1, 1]} : vector<64x128xf32> to vector<8x128xf32>
    %436 = vector.extract_strided_slice %429 {offsets = [48, 0], sizes = [8, 128], strides = [1, 1]} : vector<64x128xf32> to vector<8x128xf32>
    %437 = vector.extract_strided_slice %429 {offsets = [56, 0], sizes = [8, 128], strides = [1, 1]} : vector<64x128xf32> to vector<8x128xf32>
    %438 = arith.maximumf %430, %431 : vector<8x128xf32>
    %439 = arith.maximumf %432, %433 : vector<8x128xf32>
    %440 = arith.maximumf %434, %435 : vector<8x128xf32>
    %441 = arith.maximumf %436, %437 : vector<8x128xf32>
    %442 = arith.maximumf %438, %439 : vector<8x128xf32>
    %443 = arith.maximumf %440, %441 : vector<8x128xf32>
    %444 = arith.maximumf %442, %443 : vector<8x128xf32>
    %445 = arith.subf %430, %444 : vector<8x128xf32>
    %446 = math.exp %445 : vector<8x128xf32>
    %447 = arith.subf %431, %444 : vector<8x128xf32>
    %448 = math.exp %447 : vector<8x128xf32>
    %449 = arith.subf %432, %444 : vector<8x128xf32>
    %450 = math.exp %449 : vector<8x128xf32>
    %451 = arith.subf %433, %444 : vector<8x128xf32>
    %452 = math.exp %451 : vector<8x128xf32>
    %453 = arith.subf %434, %444 : vector<8x128xf32>
    %454 = math.exp %453 : vector<8x128xf32>
    %455 = arith.subf %435, %444 : vector<8x128xf32>
    %456 = math.exp %455 : vector<8x128xf32>
    %457 = arith.subf %436, %444 : vector<8x128xf32>
    %458 = math.exp %457 : vector<8x128xf32>
    %459 = arith.subf %437, %444 : vector<8x128xf32>
    %460 = math.exp %459 : vector<8x128xf32>
    %461 = arith.addf %446, %448 : vector<8x128xf32>
    %462 = arith.addf %450, %452 : vector<8x128xf32>
    %463 = arith.addf %454, %456 : vector<8x128xf32>
    %464 = arith.addf %458, %460 : vector<8x128xf32>
    %465 = arith.addf %461, %462 : vector<8x128xf32>
    %466 = arith.addf %463, %464 : vector<8x128xf32>
    %467 = arith.addf %465, %466 : vector<8x128xf32>
    %468 = math.log %467 : vector<8x128xf32>
    %469 = arith.addf %444, %468 : vector<8x128xf32>
    %470 = arith.subf %430, %469 : vector<8x128xf32>
    %471 = arith.subf %431, %469 : vector<8x128xf32>
    %472 = arith.subf %432, %469 : vector<8x128xf32>
    %473 = arith.subf %433, %469 : vector<8x128xf32>
    %474 = arith.subf %434, %469 : vector<8x128xf32>
    %475 = arith.subf %435, %469 : vector<8x128xf32>
    %476 = arith.subf %436, %469 : vector<8x128xf32>
    %477 = arith.subf %437, %469 : vector<8x128xf32>
    %478 = tpu.concatenate %470, %471, %472, %473, %474, %475, %476, %477 in 0 : vector<8x128xf32>, vector<8x128xf32>, vector<8x128xf32>, vector<8x128xf32>, vector<8x128xf32>, vector<8x128xf32>, vector<8x128xf32>, vector<8x128xf32> -> vector<64x128xf32>
    %c2 = arith.constant 2 : index
    %c0_121 = arith.constant 0 : index
    %c0_122 = arith.constant 0 : index
    %479 = vector.load %arg4[%c2, %c0_121, %c0_122] : memref<4x128x128xf32, #tpu.memory_space<vmem>>, vector<1x128x128xf32>
    %480 = vector.shape_cast %479 : vector<1x128x128xf32> to vector<128x128xf32>
    %cst_123 = arith.constant dense<0.000000e+00> : vector<64x128xf32>
    %481 = tpu.matmul %478, %480, %cst_123 {dimension_numbers = #tpu.dot_dimension_numbers<[1], [0], [0], [1], [0, 0, 1, 1], [], []>} : vector<64x128xf32>, vector<128x128xf32>, vector<64x128xf32> -> vector<64x128xf32>
    %c2_124 = arith.constant 2 : index
    %c0_125 = arith.constant 0 : index
    %c0_126 = arith.constant 0 : index
    %482 = vector.load %arg5[%c2_124, %c0_125, %c0_126] : memref<4x1x128xf32, #tpu.memory_space<vmem>>, vector<1x1x128xf32>
    %483 = vector.shape_cast %482 : vector<1x1x128xf32> to vector<1x128xf32>
    %484 = vector.broadcast %483 : vector<1x128xf32> to vector<64x128xf32>
    %485 = arith.addf %481, %484 : vector<64x128xf32>
    %486 = vector.extract_strided_slice %485 {offsets = [0, 0], sizes = [8, 128], strides = [1, 1]} : vector<64x128xf32> to vector<8x128xf32>
    %487 = vector.extract_strided_slice %485 {offsets = [8, 0], sizes = [8, 128], strides = [1, 1]} : vector<64x128xf32> to vector<8x128xf32>
    %488 = vector.extract_strided_slice %485 {offsets = [16, 0], sizes = [8, 128], strides = [1, 1]} : vector<64x128xf32> to vector<8x128xf32>
    %489 = vector.extract_strided_slice %485 {offsets = [24, 0], sizes = [8, 128], strides = [1, 1]} : vector<64x128xf32> to vector<8x128xf32>
    %490 = vector.extract_strided_slice %485 {offsets = [32, 0], sizes = [8, 128], strides = [1, 1]} : vector<64x128xf32> to vector<8x128xf32>
    %491 = vector.extract_strided_slice %485 {offsets = [40, 0], sizes = [8, 128], strides = [1, 1]} : vector<64x128xf32> to vector<8x128xf32>
    %492 = vector.extract_strided_slice %485 {offsets = [48, 0], sizes = [8, 128], strides = [1, 1]} : vector<64x128xf32> to vector<8x128xf32>
    %493 = vector.extract_strided_slice %485 {offsets = [56, 0], sizes = [8, 128], strides = [1, 1]} : vector<64x128xf32> to vector<8x128xf32>
    %494 = arith.maximumf %486, %487 : vector<8x128xf32>
    %495 = arith.maximumf %488, %489 : vector<8x128xf32>
    %496 = arith.maximumf %490, %491 : vector<8x128xf32>
    %497 = arith.maximumf %492, %493 : vector<8x128xf32>
    %498 = arith.maximumf %494, %495 : vector<8x128xf32>
    %499 = arith.maximumf %496, %497 : vector<8x128xf32>
    %500 = arith.maximumf %498, %499 : vector<8x128xf32>
    %501 = arith.subf %486, %500 : vector<8x128xf32>
    %502 = math.exp %501 : vector<8x128xf32>
    %503 = arith.subf %487, %500 : vector<8x128xf32>
    %504 = math.exp %503 : vector<8x128xf32>
    %505 = arith.subf %488, %500 : vector<8x128xf32>
    %506 = math.exp %505 : vector<8x128xf32>
    %507 = arith.subf %489, %500 : vector<8x128xf32>
    %508 = math.exp %507 : vector<8x128xf32>
    %509 = arith.subf %490, %500 : vector<8x128xf32>
    %510 = math.exp %509 : vector<8x128xf32>
    %511 = arith.subf %491, %500 : vector<8x128xf32>
    %512 = math.exp %511 : vector<8x128xf32>
    %513 = arith.subf %492, %500 : vector<8x128xf32>
    %514 = math.exp %513 : vector<8x128xf32>
    %515 = arith.subf %493, %500 : vector<8x128xf32>
    %516 = math.exp %515 : vector<8x128xf32>
    %517 = arith.addf %502, %504 : vector<8x128xf32>
    %518 = arith.addf %506, %508 : vector<8x128xf32>
    %519 = arith.addf %510, %512 : vector<8x128xf32>
    %520 = arith.addf %514, %516 : vector<8x128xf32>
    %521 = arith.addf %517, %518 : vector<8x128xf32>
    %522 = arith.addf %519, %520 : vector<8x128xf32>
    %523 = arith.addf %521, %522 : vector<8x128xf32>
    %524 = math.log %523 : vector<8x128xf32>
    %525 = arith.addf %500, %524 : vector<8x128xf32>
    %526 = arith.subf %486, %525 : vector<8x128xf32>
    %527 = arith.subf %487, %525 : vector<8x128xf32>
    %528 = arith.subf %488, %525 : vector<8x128xf32>
    %529 = arith.subf %489, %525 : vector<8x128xf32>
    %530 = arith.subf %490, %525 : vector<8x128xf32>
    %531 = arith.subf %491, %525 : vector<8x128xf32>
    %532 = arith.subf %492, %525 : vector<8x128xf32>
    %533 = arith.subf %493, %525 : vector<8x128xf32>
    %534 = tpu.concatenate %526, %527, %528, %529, %530, %531, %532, %533 in 0 : vector<8x128xf32>, vector<8x128xf32>, vector<8x128xf32>, vector<8x128xf32>, vector<8x128xf32>, vector<8x128xf32>, vector<8x128xf32>, vector<8x128xf32> -> vector<64x128xf32>
    %c3 = arith.constant 3 : index
    %c0_127 = arith.constant 0 : index
    %c0_128 = arith.constant 0 : index
    %535 = vector.load %arg4[%c3, %c0_127, %c0_128] : memref<4x128x128xf32, #tpu.memory_space<vmem>>, vector<1x128x128xf32>
    %536 = vector.shape_cast %535 : vector<1x128x128xf32> to vector<128x128xf32>
    %cst_129 = arith.constant dense<0.000000e+00> : vector<64x128xf32>
    %537 = tpu.matmul %534, %536, %cst_129 {dimension_numbers = #tpu.dot_dimension_numbers<[1], [0], [0], [1], [0, 0, 1, 1], [], []>} : vector<64x128xf32>, vector<128x128xf32>, vector<64x128xf32> -> vector<64x128xf32>
    %c3_130 = arith.constant 3 : index
    %c0_131 = arith.constant 0 : index
    %c0_132 = arith.constant 0 : index
    %538 = vector.load %arg5[%c3_130, %c0_131, %c0_132] : memref<4x1x128xf32, #tpu.memory_space<vmem>>, vector<1x1x128xf32>
    %539 = vector.shape_cast %538 : vector<1x1x128xf32> to vector<1x128xf32>
    %540 = vector.broadcast %539 : vector<1x128xf32> to vector<64x128xf32>
    %541 = arith.addf %537, %540 : vector<64x128xf32>
    %542 = vector.extract_strided_slice %541 {offsets = [0, 0], sizes = [8, 128], strides = [1, 1]} : vector<64x128xf32> to vector<8x128xf32>
    %543 = vector.extract_strided_slice %541 {offsets = [8, 0], sizes = [8, 128], strides = [1, 1]} : vector<64x128xf32> to vector<8x128xf32>
    %544 = vector.extract_strided_slice %541 {offsets = [16, 0], sizes = [8, 128], strides = [1, 1]} : vector<64x128xf32> to vector<8x128xf32>
    %545 = vector.extract_strided_slice %541 {offsets = [24, 0], sizes = [8, 128], strides = [1, 1]} : vector<64x128xf32> to vector<8x128xf32>
    %546 = vector.extract_strided_slice %541 {offsets = [32, 0], sizes = [8, 128], strides = [1, 1]} : vector<64x128xf32> to vector<8x128xf32>
    %547 = vector.extract_strided_slice %541 {offsets = [40, 0], sizes = [8, 128], strides = [1, 1]} : vector<64x128xf32> to vector<8x128xf32>
    %548 = vector.extract_strided_slice %541 {offsets = [48, 0], sizes = [8, 128], strides = [1, 1]} : vector<64x128xf32> to vector<8x128xf32>
    %549 = vector.extract_strided_slice %541 {offsets = [56, 0], sizes = [8, 128], strides = [1, 1]} : vector<64x128xf32> to vector<8x128xf32>
    %550 = arith.maximumf %542, %543 : vector<8x128xf32>
    %551 = arith.maximumf %544, %545 : vector<8x128xf32>
    %552 = arith.maximumf %546, %547 : vector<8x128xf32>
    %553 = arith.maximumf %548, %549 : vector<8x128xf32>
    %554 = arith.maximumf %550, %551 : vector<8x128xf32>
    %555 = arith.maximumf %552, %553 : vector<8x128xf32>
    %556 = arith.maximumf %554, %555 : vector<8x128xf32>
    %557 = arith.subf %542, %556 : vector<8x128xf32>
    %558 = math.exp %557 : vector<8x128xf32>
    %559 = arith.subf %543, %556 : vector<8x128xf32>
    %560 = math.exp %559 : vector<8x128xf32>
    %561 = arith.subf %544, %556 : vector<8x128xf32>
    %562 = math.exp %561 : vector<8x128xf32>
    %563 = arith.subf %545, %556 : vector<8x128xf32>
    %564 = math.exp %563 : vector<8x128xf32>
    %565 = arith.subf %546, %556 : vector<8x128xf32>
    %566 = math.exp %565 : vector<8x128xf32>
    %567 = arith.subf %547, %556 : vector<8x128xf32>
    %568 = math.exp %567 : vector<8x128xf32>
    %569 = arith.subf %548, %556 : vector<8x128xf32>
    %570 = math.exp %569 : vector<8x128xf32>
    %571 = arith.subf %549, %556 : vector<8x128xf32>
    %572 = math.exp %571 : vector<8x128xf32>
    %573 = arith.addf %558, %560 : vector<8x128xf32>
    %574 = arith.addf %562, %564 : vector<8x128xf32>
    %575 = arith.addf %566, %568 : vector<8x128xf32>
    %576 = arith.addf %570, %572 : vector<8x128xf32>
    %577 = arith.addf %573, %574 : vector<8x128xf32>
    %578 = arith.addf %575, %576 : vector<8x128xf32>
    %579 = arith.addf %577, %578 : vector<8x128xf32>
    %580 = math.log %579 : vector<8x128xf32>
    %581 = arith.addf %556, %580 : vector<8x128xf32>
    %582 = arith.subf %542, %581 : vector<8x128xf32>
    %583 = arith.subf %543, %581 : vector<8x128xf32>
    %584 = arith.subf %544, %581 : vector<8x128xf32>
    %585 = arith.subf %545, %581 : vector<8x128xf32>
    %586 = arith.subf %546, %581 : vector<8x128xf32>
    %587 = arith.subf %547, %581 : vector<8x128xf32>
    %588 = arith.subf %548, %581 : vector<8x128xf32>
    %589 = arith.subf %549, %581 : vector<8x128xf32>
    %590 = tpu.concatenate %582, %583, %584, %585, %586, %587, %588, %589 in 0 : vector<8x128xf32>, vector<8x128xf32>, vector<8x128xf32>, vector<8x128xf32>, vector<8x128xf32>, vector<8x128xf32>, vector<8x128xf32>, vector<8x128xf32> -> vector<64x128xf32>
    %c0_133 = arith.constant 0 : index
    %c0_134 = arith.constant 0 : index
    %591 = vector.load %arg6[%c0_133, %c0_134] : memref<64x128xf32, #tpu.memory_space<vmem>>, vector<64x128xf32>
    tpu.vector_store %arg6[%c0_133, %c0_134], %590 {strides = array<i32>} : memref<64x128xf32, #tpu.memory_space<vmem>>, vector<64x128xf32>,
    return
  }
}

</mosaic_0001>

<llo_original>
// kernel: net_forward.1
$region0: #{net_forward.1}
  #allocation0 [shape = 'u32[]', space=smem, size = 0x4, offset = 0x4, fixed_abs, tag = 'smem constant byte address 0x4 - core index']
  #allocation1 [shape = 'u32[144,128]{1,0:T(1,128)}', space=vmem, size = 0x12000, scoped, tag = 'internal scratch']
  %s0 = inlined_call_operand.vmem [shape: f32[64,128], index: 0, kind: input, shape index: {}]
  %s1 = inlined_call_operand.hbm [shape: f32[128,512], index: 1, kind: input, shape index: {}]
  %s2 = inlined_call_operand.hbm [shape: f32[128,512], index: 2, kind: input, shape index: {}]
  %s3 = inlined_call_operand.vmem [shape: f32[1,512], index: 3, kind: input, shape index: {}]
  %s4 = inlined_call_operand.hbm [shape: f32[4,128,128], index: 4, kind: input, shape index: {}]
  %s5 = inlined_call_operand.vmem [shape: f32[4,1,128], index: 5, kind: input, shape index: {}]
  %s6 = inlined_call_operand.vmem [shape: f32[64,128], index: 6, kind: output, shape index: {}]
  %s7 = sld [smem:[#allocation0]]
  $region46: #{net_forward.1} parent=0
    _
  %s9 = ssub.s32 1, %s7
  %s10 = scalar_select 0, %s9, %s7
  $region1: #{net_forward.1} parent=0
    #allocation2 [shape = 'u8[262144]{0}', space=vmem, size = 0x40000, scoped, tag = 'input window, operand 1, single buffered']
    #allocation3 [shape = 's32[1]{0}', space=sflag, size = 0x4, scoped, tag = 'scoped memory for net_forward.1']
    #allocation4 [shape = 'u8[262144]{0}', space=vmem, size = 0x40000, scoped, tag = 'input window, operand 2, single buffered']
    #allocation5 [shape = 's32[1]{0}', space=sflag, size = 0x4, scoped, tag = 'scoped memory for net_forward.1']
    #allocation6 [shape = 'u8[262144]{0}', space=vmem, size = 0x40000, scoped, tag = 'input window, operand 4, single buffered']
    %11 = vsyncpa [#allocation3], 0
    %12 = vsyncpa [#allocation5], 0
    // Predicated region
    $region2: #{net_forward.1} parent=1 // pred_check
      _
    $region3: #{net_forward.1} parent=1 // pred_check_branch
      %14 = sbr.rel (0) target = $region5
    $region4: #{net_forward.1} parent=1 // pred_region
      _
    $region5: #{net_forward.1} parent=1 // pred_fallthru
      _
    // Predicated region
    $region6: #{net_forward.1} parent=1 // pred_check
      _
    $region7: #{net_forward.1} parent=1 // pred_check_branch
      %16 = sbr.rel (0) target = $region9
    $region8: #{net_forward.1} parent=1 // pred_region
      %s18 = ssub.s32 8192, 8192
      %19 = vsyncadd [#allocation3], %s18
      %s20 = sshll.u32 [#allocation2], 4
      %s21 = int_to_ptr.vmem [resolvable:$true] %s20
      %26 = dma.hbm_to_vmem [thread:$0]  %s1, 8192, %s21, [#allocation3], 512, 512, 32
    $region9: #{net_forward.1} parent=1 // pred_fallthru
      _
    // Predicated region
    $region10: #{net_forward.1} parent=1 // pred_check
      _
    $region11: #{net_forward.1} parent=1 // pred_check_branch
      %28 = sbr.rel (0) target = $region13
    $region12: #{net_forward.1} parent=1 // pred_region
      %s30 = ssub.s32 8192, 8192
      %31 = vsyncadd [#allocation5], %s30
      %s32 = sshll.u32 [#allocation4], 4
      %s33 = int_to_ptr.vmem [resolvable:$true] %s32
      %38 = dma.hbm_to_vmem [thread:$0]  %s2, 8192, %s33, [#allocation5], 512, 512, 32
    $region13: #{net_forward.1} parent=1 // pred_fallthru
      _
    // Predicated region
    $region14: #{net_forward.1} parent=1 // pred_check
      _
    $region15: #{net_forward.1} parent=1 // pred_check_branch
      %40 = sbr.rel (0) target = $region17
    $region16: #{net_forward.1} parent=1 // pred_region
      _
    $region17: #{net_forward.1} parent=1 // pred_fallthru
      _
    // Predicated region
    $region18: #{net_forward.1} parent=1 // pred_check
      _
    $region19: #{net_forward.1} parent=1 // pred_check_branch
      %42 = sbr.rel (0) target = $region21
    $region20: #{net_forward.1} parent=1 // pred_region
      %s44 = ssub.s32 8192, 8192
      %45 = vsyncadd [#allocation5], %s44
      %s46 = sshll.u32 [#allocation6], 4
      %s47 = int_to_ptr.vmem [resolvable:$true] %s46
      %52 = dma.hbm_to_vmem [thread:$0]  %s4, 8192, %s47, [#allocation5], 128, 128, 8
    $region21: #{net_forward.1} parent=1 // pred_fallthru
      _
    // Predicated region
    $region22: #{net_forward.1} parent=1 // pred_check
      _
    $region23: #{net_forward.1} parent=1 // pred_check_branch
      %54 = sbr.rel (0) target = $region25
    $region24: #{net_forward.1} parent=1 // pred_region
      _
    $region25: #{net_forward.1} parent=1 // pred_fallthru
      _
    // Predicated region
    $region26: #{net_forward.1} parent=1 // pred_check
      _
    $region27: #{net_forward.1} parent=1 // pred_check_branch
      %56 = sbr.rel (0) target = $region29
    $region28: #{net_forward.1} parent=1 // pred_region
      %57 = dma.done [#allocation3], 8192
    $region29: #{net_forward.1} parent=1 // pred_fallthru
      _
    // Predicated region
    $region30: #{net_forward.1} parent=1 // pred_check
      _
    $region31: #{net_forward.1} parent=1 // pred_check_branch
      %59 = sbr.rel (0) target = $region33
    $region32: #{net_forward.1} parent=1 // pred_region
      %60 = dma.done [#allocation5], 8192
    $region33: #{net_forward.1} parent=1 // pred_fallthru
      _
    // Predicated region
    $region34: #{net_forward.1} parent=1 // pred_check
      _
    $region35: #{net_forward.1} parent=1 // pred_check_branch
      %62 = sbr.rel (0) target = $region37
    $region36: #{net_forward.1} parent=1 // pred_region
      %63 = dma.done [#allocation5], 8192
    $region37: #{net_forward.1} parent=1 // pred_fallthru
      _
    %v64 = vld [vmem:[%s0] sm:$0xff]
    %v65 = vld [vmem:[%s0 + $0x8] sm:$0xff]
    %v66 = vld [vmem:[%s0 + $0x10] sm:$0xff]
    %v67 = vld [vmem:[%s0 + $0x18] sm:$0xff]
    %v68 = vld [vmem:[%s0 + $0x20] sm:$0xff]
    %v69 = vld [vmem:[%s0 + $0x28] sm:$0xff]
    %v70 = vld [vmem:[%s0 + $0x30] sm:$0xff]
    %v71 = vld [vmem:[%s0 + $0x38] sm:$0xff]
    %v72 = vld [vmem:[#allocation2] sm:$0xff]
    %v73 = vld [vmem:[#allocation2 + $0x8] sm:$0xff]
    %v74 = vld [vmem:[#allocation2 + $0x10] sm:$0xff]
    %v75 = vld [vmem:[#allocation2 + $0x18] sm:$0xff]
    %v76 = vld [vmem:[#allocation2 + $0x20] sm:$0xff]
    %v77 = vld [vmem:[#allocation2 + $0x28] sm:$0xff]
    %v78 = vld [vmem:[#allocation2 + $0x30] sm:$0xff]
    %v79 = vld [vmem:[#allocation2 + $0x38] sm:$0xff]
    %v80 = vld [vmem:[#allocation2 + $0x40] sm:$0xff]
    %v81 = vld [vmem:[#allocation2 + $0x48] sm:$0xff]
    %v82 = vld [vmem:[#allocation2 + $0x50] sm:$0xff]
    %v83 = vld [vmem:[#allocation2 + $0x58] sm:$0xff]
    %v84 = vld [vmem:[#allocation2 + $0x60] sm:$0xff]
    %v85 = vld [vmem:[#allocation2 + $0x68] sm:$0xff]
    %v86 = vld [vmem:[#allocation2 + $0x70] sm:$0xff]
    %v87 = vld [vmem:[#allocation2 + $0x78] sm:$0xff]
    %v88 = vld [vmem:[#allocation2 + $0x80] sm:$0xff]
    %v89 = vld [vmem:[#allocation2 + $0x88] sm:$0xff]
    %v90 = vld [vmem:[#allocation2 + $0x90] sm:$0xff]
    %v91 = vld [vmem:[#allocation2 + $0x98] sm:$0xff]
    %v92 = vld [vmem:[#allocation2 + $0xa0] sm:$0xff]
    %v93 = vld [vmem:[#allocation2 + $0xa8] sm:$0xff]
    %v94 = vld [vmem:[#allocation2 + $0xb0] sm:$0xff]
    %v95 = vld [vmem:[#allocation2 + $0xb8] sm:$0xff]
    %v96 = vld [vmem:[#allocation2 + $0xc0] sm:$0xff]
    %v97 = vld [vmem:[#allocation2 + $0xc8] sm:$0xff]
    %v98 = vld [vmem:[#allocation2 + $0xd0] sm:$0xff]
    %v99 = vld [vmem:[#allocation2 + $0xd8] sm:$0xff]
    %v100 = vld [vmem:[#allocation2 + $0xe0] sm:$0xff]
    %v101 = vld [vmem:[#allocation2 + $0xe8] sm:$0xff]
    %v102 = vld [vmem:[#allocation2 + $0xf0] sm:$0xff]
    %v103 = vld [vmem:[#allocation2 + $0xf8] sm:$0xff]
    %v104 = vld [vmem:[#allocation2 + $0x100] sm:$0xff]
    %v105 = vld [vmem:[#allocation2 + $0x108] sm:$0xff]
    %v106 = vld [vmem:[#allocation2 + $0x110] sm:$0xff]
    %v107 = vld [vmem:[#allocation2 + $0x118] sm:$0xff]
    %v108 = vld [vmem:[#allocation2 + $0x120] sm:$0xff]
    %v109 = vld [vmem:[#allocation2 + $0x128] sm:$0xff]
    %v110 = vld [vmem:[#allocation2 + $0x130] sm:$0xff]
    %v111 = vld [vmem:[#allocation2 + $0x138] sm:$0xff]
    %v112 = vld [vmem:[#allocation2 + $0x140] sm:$0xff]
    %v113 = vld [vmem:[#allocation2 + $0x148] sm:$0xff]
    %v114 = vld [vmem:[#allocation2 + $0x150] sm:$0xff]
    %v115 = vld [vmem:[#allocation2 + $0x158] sm:$0xff]
    %v116 = vld [vmem:[#allocation2 + $0x160] sm:$0xff]
    %v117 = vld [vmem:[#allocation2 + $0x168] sm:$0xff]
    %v118 = vld [vmem:[#allocation2 + $0x170] sm:$0xff]
    %v119 = vld [vmem:[#allocation2 + $0x178] sm:$0xff]
    %v120 = vld [vmem:[#allocation2 + $0x180] sm:$0xff]
    %v121 = vld [vmem:[#allocation2 + $0x188] sm:$0xff]
    %v122 = vld [vmem:[#allocation2 + $0x190] sm:$0xff]
    %v123 = vld [vmem:[#allocation2 + $0x198] sm:$0xff]
    %v124 = vld [vmem:[#allocation2 + $0x1a0] sm:$0xff]
    %v125 = vld [vmem:[#allocation2 + $0x1a8] sm:$0xff]
    %v126 = vld [vmem:[#allocation2 + $0x1b0] sm:$0xff]
    %v127 = vld [vmem:[#allocation2 + $0x1b8] sm:$0xff]
    %v128 = vld [vmem:[#allocation2 + $0x1c0] sm:$0xff]
    %v129 = vld [vmem:[#allocation2 + $0x1c8] sm:$0xff]
    %v130 = vld [vmem:[#allocation2 + $0x1d0] sm:$0xff]
    %v131 = vld [vmem:[#allocation2 + $0x1d8] sm:$0xff]
    %v132 = vld [vmem:[#allocation2 + $0x1e0] sm:$0xff]
    %v133 = vld [vmem:[#allocation2 + $0x1e8] sm:$0xff]
    %v134 = vld [vmem:[#allocation2 + $0x1f0] sm:$0xff]
    %v135 = vld [vmem:[#allocation2 + $0x1f8] sm:$0xff]
    %v136 = vld [vmem:[%s3] sm:$0xf]
    %v138 = vlaneseq
    %v139 = vshrl.u32 %v138, 7
    %v140 = vsub.s32 0, %v139
    %v141 = vrot.slane %v136, %v140
    %v142 = vlaneseq
    %v143 = vshrl.u32 %v142, 7
    %v144 = vsub.s32 1, %v143
    %v145 = vrot.slane %v136, %v144
    %v146 = vlaneseq
    %v147 = vshrl.u32 %v146, 7
    %v148 = vsub.s32 2, %v147
    %v149 = vrot.slane %v136, %v148
    %v150 = vlaneseq
    %v151 = vshrl.u32 %v150, 7
    %v152 = vsub.s32 3, %v151
    %v153 = vrot.slane %v136, %v152
    %158 = vmatprep.subr.mxu0 %v133
    %159 = vmatpush1.msra.mxu0 %v132
    %160 = vmatprep.subr.mxu0 %v129
    %161 = vmatpush1.msra.mxu0 %v128
    %162 = vmatprep.subr.mxu0 %v125
    %163 = vmatpush1.msra.mxu0 %v124
    %164 = vmatprep.subr.mxu0 %v121
    %165 = vmatpush1.msra.mxu0 %v120
    %166 = vmatprep.subr.mxu0 %v117
    %167 = vmatpush1.msra.mxu0 %v116
    %168 = vmatprep.subr.mxu0 %v113
    %169 = vmatpush1.msra.mxu0 %v112
    %170 = vmatprep.subr.mxu0 %v109
    %171 = vmatpush1.msra.mxu0 %v108
    %172 = vmatprep.subr.mxu0 %v105
    %173 = vmatpush1.msra.mxu0 %v104
    %174 = vmatprep.subr.mxu0 %v101
    %175 = vmatpush1.msra.mxu0 %v100
    %176 = vmatprep.subr.mxu0 %v97
    %177 = vmatpush1.msra.mxu0 %v96
    %178 = vmatprep.subr.mxu0 %v93
    %179 = vmatpush1.msra.mxu0 %v92
    %180 = vmatprep.subr.mxu0 %v89
    %181 = vmatpush1.msra.mxu0 %v88
    %182 = vmatprep.subr.mxu0 %v85
    %183 = vmatpush1.msra.mxu0 %v84
    %184 = vmatprep.subr.mxu0 %v81
    %185 = vmatpush1.msra.mxu0 %v80
    %186 = vmatprep.subr.mxu0 %v77
    %187 = vmatpush1.msra.mxu0 %v76
    %188 = vmatprep.subr.mxu0 %v73
    %189 = vmatpush1.msra.mxu0 %v72
    %190 = vmatprep.subr.mxu0 0.0
    %191 = vmatpush2.msra.mxu0 0.0
    %192 = vmatprep.subr.mxu0 0.0
    %193 = vmatpush2.msra.mxu0 0.0
    %194 = vmatprep.subr.mxu0 0.0
    %195 = vmatpush2.msra.mxu0 0.0
    %196 = vmatprep.subr.mxu0 0.0
    %197 = vmatpush2.msra.mxu0 0.0
    %198 = vmatprep.subr.mxu0 0.0
    %199 = vmatpush2.msra.mxu0 0.0
    %200 = vmatprep.subr.mxu0 0.0
    %201 = vmatpush2.msra.mxu0 0.0
    %202 = vmatprep.subr.mxu0 0.0
    %203 = vmatpush2.msra.mxu0 0.0
    %204 = vmatprep.subr.mxu0 0.0
    %205 = vmatpush2.msra.mxu0 0.0
    %206 = vmatprep.subr.mxu0 0.0
    %207 = vmatpush2.msra.mxu0 0.0
    %208 = vmatprep.subr.mxu0 0.0
    %209 = vmatpush2.msra.mxu0 0.0
    %210 = vmatprep.subr.mxu0 0.0
    %211 = vmatpush2.msra.mxu0 0.0
    %212 = vmatprep.subr.mxu0 0.0
    %213 = vmatpush2.msra.mxu0 0.0
    %214 = vmatprep.subr.mxu0 0.0
    %215 = vmatpush2.msra.mxu0 0.0
    %216 = vmatprep.subr.mxu0 0.0
    %217 = vmatpush2.msra.mxu0 0.0
    %218 = vmatprep.subr.mxu0 0.0
    %219 = vmatpush2.msra.mxu0 0.0
    %220 = vmatprep.subr.mxu0 0.0
    %221 = vmatpush2.msra.mxu0 0.0
    %222 = vmatprep.mubr.f32.mxu0 0.0
    %223 = vmatmul.mubr.f32.gmra.mxu0 %v64
    %v224 = vpop.f32.mrf.mxu0
    %v225 = vadd.f32 %v141, %v224
    %v226 = vpop.f32.mrf.mxu0
    %v227 = vadd.f32 %v145, %v226
    %228 = vmatprep.mubr.f32.mxu0 0.0
    %229 = vmatmul.mubr.f32.gmra.mxu0 %v65
    %v230 = vpop.f32.mrf.mxu0
    %v231 = vadd.f32 %v141, %v230
    %v232 = vpop.f32.mrf.mxu0
    %v233 = vadd.f32 %v145, %v232
    %234 = vmatprep.mubr.f32.mxu0 0.0
    %235 = vmatmul.mubr.f32.gmra.mxu0 %v66
    %v236 = vpop.f32.mrf.mxu0
    %v237 = vadd.f32 %v141, %v236
    %v238 = vpop.f32.mrf.mxu0
    %v239 = vadd.f32 %v145, %v238
    %240 = vmatprep.mubr.f32.mxu0 0.0
    %241 = vmatmul.mubr.f32.gmra.mxu0 %v67
    %v242 = vpop.f32.mrf.mxu0
    %v243 = vadd.f32 %v141, %v242
    %v244 = vpop.f32.mrf.mxu0
    %v245 = vadd.f32 %v145, %v244
    %246 = vmatprep.mubr.f32.mxu0 0.0
    %247 = vmatmul.mubr.f32.gmra.mxu0 %v68
    %v248 = vpop.f32.mrf.mxu0
    %v249 = vadd.f32 %v141, %v248
    %v250 = vpop.f32.mrf.mxu0
    %v251 = vadd.f32 %v145, %v250
    %252 = vmatprep.mubr.f32.mxu0 0.0
    %253 = vmatmul.mubr.f32.gmra.mxu0 %v69
    %v254 = vpop.f32.mrf.mxu0
    %v255 = vadd.f32 %v141, %v254
    %v256 = vpop.f32.mrf.mxu0
    %v257 = vadd.f32 %v145, %v256
    %258 = vmatprep.mubr.f32.mxu0 0.0
    %259 = vmatmul.mubr.f32.gmra.mxu0 %v70
    %v260 = vpop.f32.mrf.mxu0
    %v261 = vadd.f32 %v141, %v260
    %v262 = vpop.f32.mrf.mxu0
    %v263 = vadd.f32 %v145, %v262
    %264 = vmatprep.mubr.f32.mxu0 0.0
    %265 = vmatmul.mubr.f32.gmra.mxu0 %v71
    %v266 = vpop.f32.mrf.mxu0
    %v267 = vadd.f32 %v141, %v266
    %v268 = vpop.f32.mrf.mxu0
    %v269 = vadd.f32 %v145, %v268
    %270 = vdwg.mxu0
    %271 = vmatprep.subr.mxu0 %v135
    %272 = vmatpush1.msra.mxu0 %v134
    %273 = vmatprep.subr.mxu0 %v131
    %274 = vmatpush1.msra.mxu0 %v130
    %275 = vmatprep.subr.mxu0 %v127
    %276 = vmatpush1.msra.mxu0 %v126
    %277 = vmatprep.subr.mxu0 %v123
    %278 = vmatpush1.msra.mxu0 %v122
    %279 = vmatprep.subr.mxu0 %v119
    %280 = vmatpush1.msra.mxu0 %v118
    %281 = vmatprep.subr.mxu0 %v115
    %282 = vmatpush1.msra.mxu0 %v114
    %283 = vmatprep.subr.mxu0 %v111
    %284 = vmatpush1.msra.mxu0 %v110
    %285 = vmatprep.subr.mxu0 %v107
    %286 = vmatpush1.msra.mxu0 %v106
    %287 = vmatprep.subr.mxu0 %v103
    %288 = vmatpush1.msra.mxu0 %v102
    %289 = vmatprep.subr.mxu0 %v99
    %290 = vmatpush1.msra.mxu0 %v98
    %291 = vmatprep.subr.mxu0 %v95
    %292 = vmatpush1.msra.mxu0 %v94
    %293 = vmatprep.subr.mxu0 %v91
    %294 = vmatpush1.msra.mxu0 %v90
    %295 = vmatprep.subr.mxu0 %v87
    %296 = vmatpush1.msra.mxu0 %v86
    %297 = vmatprep.subr.mxu0 %v83
    %298 = vmatpush1.msra.mxu0 %v82
    %299 = vmatprep.subr.mxu0 %v79
    %300 = vmatpush1.msra.mxu0 %v78
    %301 = vmatprep.subr.mxu0 %v75
    %302 = vmatpush1.msra.mxu0 %v74
    %303 = vmatprep.subr.mxu0 0.0
    %304 = vmatpush2.msra.mxu0 0.0
    %305 = vmatprep.subr.mxu0 0.0
    %306 = vmatpush2.msra.mxu0 0.0
    %307 = vmatprep.subr.mxu0 0.0
    %308 = vmatpush2.msra.mxu0 0.0
    %309 = vmatprep.subr.mxu0 0.0
    %310 = vmatpush2.msra.mxu0 0.0
    %311 = vmatprep.subr.mxu0 0.0
    %312 = vmatpush2.msra.mxu0 0.0
    %313 = vmatprep.subr.mxu0 0.0
    %314 = vmatpush2.msra.mxu0 0.0
    %315 = vmatprep.subr.mxu0 0.0
    %316 = vmatpush2.msra.mxu0 0.0
    %317 = vmatprep.subr.mxu0 0.0
    %318 = vmatpush2.msra.mxu0 0.0
    %319 = vmatprep.subr.mxu0 0.0
    %320 = vmatpush2.msra.mxu0 0.0
    %321 = vmatprep.subr.mxu0 0.0
    %322 = vmatpush2.msra.mxu0 0.0
    %323 = vmatprep.subr.mxu0 0.0
    %324 = vmatpush2.msra.mxu0 0.0
    %325 = vmatprep.subr.mxu0 0.0
    %326 = vmatpush2.msra.mxu0 0.0
    %327 = vmatprep.subr.mxu0 0.0
    %328 = vmatpush2.msra.mxu0 0.0
    %329 = vmatprep.subr.mxu0 0.0
    %330 = vmatpush2.msra.mxu0 0.0
    %331 = vmatprep.subr.mxu0 0.0
    %332 = vmatpush2.msra.mxu0 0.0
    %333 = vmatprep.subr.mxu0 0.0
    %334 = vmatpush2.msra.mxu0 0.0
    %335 = vmatprep.mubr.f32.mxu0 0.0
    %336 = vmatmul.mubr.f32.gmra.mxu0 %v64
    %v337 = vpop.f32.mrf.mxu0
    %v338 = vadd.f32 %v149, %v337
    %v339 = vpop.f32.mrf.mxu0
    %v340 = vadd.f32 %v153, %v339
    %341 = vmatprep.mubr.f32.mxu0 0.0
    %342 = vmatmul.mubr.f32.gmra.mxu0 %v65
    %v343 = vpop.f32.mrf.mxu0
    %v344 = vadd.f32 %v149, %v343
    %v345 = vpop.f32.mrf.mxu0
    %v346 = vadd.f32 %v153, %v345
    %347 = vmatprep.mubr.f32.mxu0 0.0
    %348 = vmatmul.mubr.f32.gmra.mxu0 %v66
    %v349 = vpop.f32.mrf.mxu0
    %v350 = vadd.f32 %v149, %v349
    %v351 = vpop.f32.mrf.mxu0
    %v352 = vadd.f32 %v153, %v351
    %353 = vmatprep.mubr.f32.mxu0 0.0
    %354 = vmatmul.mubr.f32.gmra.mxu0 %v67
    %v355 = vpop.f32.mrf.mxu0
    %v356 = vadd.f32 %v149, %v355
    %v357 = vpop.f32.mrf.mxu0
    %v358 = vadd.f32 %v153, %v357
    %359 = vmatprep.mubr.f32.mxu0 0.0
    %360 = vmatmul.mubr.f32.gmra.mxu0 %v68
    %v361 = vpop.f32.mrf.mxu0
    %v362 = vadd.f32 %v149, %v361
    %v363 = vpop.f32.mrf.mxu0
    %v364 = vadd.f32 %v153, %v363
    %365 = vmatprep.mubr.f32.mxu0 0.0
    %366 = vmatmul.mubr.f32.gmra.mxu0 %v69
    %v367 = vpop.f32.mrf.mxu0
    %v368 = vadd.f32 %v149, %v367
    %v369 = vpop.f32.mrf.mxu0
    %v370 = vadd.f32 %v153, %v369
    %371 = vmatprep.mubr.f32.mxu0 0.0
    %372 = vmatmul.mubr.f32.gmra.mxu0 %v70
    %v373 = vpop.f32.mrf.mxu0
    %v374 = vadd.f32 %v149, %v373
    %v375 = vpop.f32.mrf.mxu0
    %v376 = vadd.f32 %v153, %v375
    %377 = vmatprep.mubr.f32.mxu0 0.0
    %378 = vmatmul.mubr.f32.gmra.mxu0 %v71
    %v379 = vpop.f32.mrf.mxu0
    %v380 = vadd.f32 %v149, %v379
    %v381 = vpop.f32.mrf.mxu0
    %v382 = vadd.f32 %v153, %v381
    %383 = vdwg.mxu0
    %v384 = vld [vmem:[#allocation4] sm:$0xff]
    %v385 = vld [vmem:[#allocation4 + $0x8] sm:$0xff]
    %v386 = vld [vmem:[#allocation4 + $0x10] sm:$0xff]
    %v387 = vld [vmem:[#allocation4 + $0x18] sm:$0xff]
    %v388 = vld [vmem:[#allocation4 + $0x20] sm:$0xff]
    %v389 = vld [vmem:[#allocation4 + $0x28] sm:$0xff]
    %v390 = vld [vmem:[#allocation4 + $0x30] sm:$0xff]
    %v391 = vld [vmem:[#allocation4 + $0x38] sm:$0xff]
    %v392 = vld [vmem:[#allocation4 + $0x40] sm:$0xff]
    %v393 = vld [vmem:[#allocation4 + $0x48] sm:$0xff]
    %v394 = vld [vmem:[#allocation4 + $0x50] sm:$0xff]
    %v395 = vld [vmem:[#allocation4 + $0x58] sm:$0xff]
    %v396 = vld [vmem:[#allocation4 + $0x60] sm:$0xff]
    %v397 = vld [vmem:[#allocation4 + $0x68] sm:$0xff]
    %v398 = vld [vmem:[#allocation4 + $0x70] sm:$0xff]
    %v399 = vld [vmem:[#allocation4 + $0x78] sm:$0xff]
    %v400 = vld [vmem:[#allocation4 + $0x80] sm:$0xff]
    %v401 = vld [vmem:[#allocation4 + $0x88] sm:$0xff]
    %v402 = vld [vmem:[#allocation4 + $0x90] sm:$0xff]
    %v403 = vld [vmem:[#allocation4 + $0x98] sm:$0xff]
    %v404 = vld [vmem:[#allocation4 + $0xa0] sm:$0xff]
    %v405 = vld [vmem:[#allocation4 + $0xa8] sm:$0xff]
    %v406 = vld [vmem:[#allocation4 + $0xb0] sm:$0xff]
    %v407 = vld [vmem:[#allocation4 + $0xb8] sm:$0xff]
    %v408 = vld [vmem:[#allocation4 + $0xc0] sm:$0xff]
    %v409 = vld [vmem:[#allocation4 + $0xc8] sm:$0xff]
    %v410 = vld [vmem:[#allocation4 + $0xd0] sm:$0xff]
    %v411 = vld [vmem:[#allocation4 + $0xd8] sm:$0xff]
    %v412 = vld [vmem:[#allocation4 + $0xe0] sm:$0xff]
    %v413 = vld [vmem:[#allocation4 + $0xe8] sm:$0xff]
    %v414 = vld [vmem:[#allocation4 + $0xf0] sm:$0xff]
    %v415 = vld [vmem:[#allocation4 + $0xf8] sm:$0xff]
    %v416 = vld [vmem:[#allocation4 + $0x100] sm:$0xff]
    %v417 = vld [vmem:[#allocation4 + $0x108] sm:$0xff]
    %v418 = vld [vmem:[#allocation4 + $0x110] sm:$0xff]
    %v419 = vld [vmem:[#allocation4 + $0x118] sm:$0xff]
    %v420 = vld [vmem:[#allocation4 + $0x120] sm:$0xff]
    %v421 = vld [vmem:[#allocation4 + $0x128] sm:$0xff]
    %v422 = vld [vmem:[#allocation4 + $0x130] sm:$0xff]
    %v423 = vld [vmem:[#allocation4 + $0x138] sm:$0xff]
    %v424 = vld [vmem:[#allocation4 + $0x140] sm:$0xff]
    %v425 = vld [vmem:[#allocation4 + $0x148] sm:$0xff]
    %v426 = vld [vmem:[#allocation4 + $0x150] sm:$0xff]
    %v427 = vld [vmem:[#allocation4 + $0x158] sm:$0xff]
    %v428 = vld [vmem:[#allocation4 + $0x160] sm:$0xff]
    %v429 = vld [vmem:[#allocation4 + $0x168] sm:$0xff]
    %v430 = vld [vmem:[#allocation4 + $0x170] sm:$0xff]
    %v431 = vld [vmem:[#allocation4 + $0x178] sm:$0xff]
    %v432 = vld [vmem:[#allocation4 + $0x180] sm:$0xff]
    %v433 = vld [vmem:[#allocation4 + $0x188] sm:$0xff]
    %v434 = vld [vmem:[#allocation4 + $0x190] sm:$0xff]
    %v435 = vld [vmem:[#allocation4 + $0x198] sm:$0xff]
    %v436 = vld [vmem:[#allocation4 + $0x1a0] sm:$0xff]
    %v437 = vld [vmem:[#allocation4 + $0x1a8] sm:$0xff]
    %v438 = vld [vmem:[#allocation4 + $0x1b0] sm:$0xff]
    %v439 = vld [vmem:[#allocation4 + $0x1b8] sm:$0xff]
    %v440 = vld [vmem:[#allocation4 + $0x1c0] sm:$0xff]
    %v441 = vld [vmem:[#allocation4 + $0x1c8] sm:$0xff]
    %v442 = vld [vmem:[#allocation4 + $0x1d0] sm:$0xff]
    %v443 = vld [vmem:[#allocation4 + $0x1d8] sm:$0xff]
    %v444 = vld [vmem:[#allocation4 + $0x1e0] sm:$0xff]
    %v445 = vld [vmem:[#allocation4 + $0x1e8] sm:$0xff]
    %v446 = vld [vmem:[#allocation4 + $0x1f0] sm:$0xff]
    %v447 = vld [vmem:[#allocation4 + $0x1f8] sm:$0xff]
    %448 = vmatprep.subr.mxu0 %v445
    %449 = vmatpush1.msra.mxu0 %v444
    %450 = vmatprep.subr.mxu0 %v441
    %451 = vmatpush1.msra.mxu0 %v440
    %452 = vmatprep.subr.mxu0 %v437
    %453 = vmatpush1.msra.mxu0 %v436
    %454 = vmatprep.subr.mxu0 %v433
    %455 = vmatpush1.msra.mxu0 %v432
    %456 = vmatprep.subr.mxu0 %v429
    %457 = vmatpush1.msra.mxu0 %v428
    %458 = vmatprep.subr.mxu0 %v425
    %459 = vmatpush1.msra.mxu0 %v424
    %460 = vmatprep.subr.mxu0 %v421
    %461 = vmatpush1.msra.mxu0 %v420
    %462 = vmatprep.subr.mxu0 %v417
    %463 = vmatpush1.msra.mxu0 %v416
    %464 = vmatprep.subr.mxu0 %v413
    %465 = vmatpush1.msra.mxu0 %v412
    %466 = vmatprep.subr.mxu0 %v409
    %467 = vmatpush1.msra.mxu0 %v408
    %468 = vmatprep.subr.mxu0 %v405
    %469 = vmatpush1.msra.mxu0 %v404
    %470 = vmatprep.subr.mxu0 %v401
    %471 = vmatpush1.msra.mxu0 %v400
    %472 = vmatprep.subr.mxu0 %v397
    %473 = vmatpush1.msra.mxu0 %v396
    %474 = vmatprep.subr.mxu0 %v393
    %475 = vmatpush1.msra.mxu0 %v392
    %476 = vmatprep.subr.mxu0 %v389
    %477 = vmatpush1.msra.mxu0 %v388
    %478 = vmatprep.subr.mxu0 %v385
    %479 = vmatpush1.msra.mxu0 %v384
    %480 = vmatprep.subr.mxu0 0.0
    %481 = vmatpush2.msra.mxu0 0.0
    %482 = vmatprep.subr.mxu0 0.0
    %483 = vmatpush2.msra.mxu0 0.0
    %484 = vmatprep.subr.mxu0 0.0
    %485 = vmatpush2.msra.mxu0 0.0
    %486 = vmatprep.subr.mxu0 0.0
    %487 = vmatpush2.msra.mxu0 0.0
    %488 = vmatprep.subr.mxu0 0.0
    %489 = vmatpush2.msra.mxu0 0.0
    %490 = vmatprep.subr.mxu0 0.0
    %491 = vmatpush2.msra.mxu0 0.0
    %492 = vmatprep.subr.mxu0 0.0
    %493 = vmatpush2.msra.mxu0 0.0
    %494 = vmatprep.subr.mxu0 0.0
    %495 = vmatpush2.msra.mxu0 0.0
    %496 = vmatprep.subr.mxu0 0.0
    %497 = vmatpush2.msra.mxu0 0.0
    %498 = vmatprep.subr.mxu0 0.0
    %499 = vmatpush2.msra.mxu0 0.0
    %500 = vmatprep.subr.mxu0 0.0
    %501 = vmatpush2.msra.mxu0 0.0
    %502 = vmatprep.subr.mxu0 0.0
    %503 = vmatpush2.msra.mxu0 0.0
    %504 = vmatprep.subr.mxu0 0.0
    %505 = vmatpush2.msra.mxu0 0.0
    %506 = vmatprep.subr.mxu0 0.0
    %507 = vmatpush2.msra.mxu0 0.0
    %508 = vmatprep.subr.mxu0 0.0
    %509 = vmatpush2.msra.mxu0 0.0
    %510 = vmatprep.subr.mxu0 0.0
    %511 = vmatpush2.msra.mxu0 0.0
    %512 = vmatprep.mubr.f32.mxu0 0.0
    %513 = vmatmul.mubr.f32.gmra.mxu0 0.0
    %v514 = vpop.f32.mrf.mxu0
    %v515 = vadd.f32 0.0, %v514
    %v516 = vpop.f32.mrf.mxu0
    %v517 = vadd.f32 0.0, %v516
    %518 = vdwg.mxu0
    %519 = vmatprep.subr.mxu0 %v447
    %520 = vmatpush1.msra.mxu0 %v446
    %521 = vmatprep.subr.mxu0 %v443
    %522 = vmatpush1.msra.mxu0 %v442
    %523 = vmatprep.subr.mxu0 %v439
    %524 = vmatpush1.msra.mxu0 %v438
    %525 = vmatprep.subr.mxu0 %v435
    %526 = vmatpush1.msra.mxu0 %v434
    %527 = vmatprep.subr.mxu0 %v431
    %528 = vmatpush1.msra.mxu0 %v430
    %529 = vmatprep.subr.mxu0 %v427
    %530 = vmatpush1.msra.mxu0 %v426
    %531 = vmatprep.subr.mxu0 %v423
    %532 = vmatpush1.msra.mxu0 %v422
    %533 = vmatprep.subr.mxu0 %v419
    %534 = vmatpush1.msra.mxu0 %v418
    %535 = vmatprep.subr.mxu0 %v415
    %536 = vmatpush1.msra.mxu0 %v414
    %537 = vmatprep.subr.mxu0 %v411
    %538 = vmatpush1.msra.mxu0 %v410
    %539 = vmatprep.subr.mxu0 %v407
    %540 = vmatpush1.msra.mxu0 %v406
    %541 = vmatprep.subr.mxu0 %v403
    %542 = vmatpush1.msra.mxu0 %v402
    %543 = vmatprep.subr.mxu0 %v399
    %544 = vmatpush1.msra.mxu0 %v398
    %545 = vmatprep.subr.mxu0 %v395
    %546 = vmatpush1.msra.mxu0 %v394
    %547 = vmatprep.subr.mxu0 %v391
    %548 = vmatpush1.msra.mxu0 %v390
    %549 = vmatprep.subr.mxu0 %v387
    %550 = vmatpush1.msra.mxu0 %v386
    %551 = vmatprep.subr.mxu0 0.0
    %552 = vmatpush2.msra.mxu0 0.0
    %553 = vmatprep.subr.mxu0 0.0
    %554 = vmatpush2.msra.mxu0 0.0
    %555 = vmatprep.subr.mxu0 0.0
    %556 = vmatpush2.msra.mxu0 0.0
    %557 = vmatprep.subr.mxu0 0.0
    %558 = vmatpush2.msra.mxu0 0.0
    %559 = vmatprep.subr.mxu0 0.0
    %560 = vmatpush2.msra.mxu0 0.0
    %561 = vmatprep.subr.mxu0 0.0
    %562 = vmatpush2.msra.mxu0 0.0
    %563 = vmatprep.subr.mxu0 0.0
    %564 = vmatpush2.msra.mxu0 0.0
    %565 = vmatprep.subr.mxu0 0.0
    %566 = vmatpush2.msra.mxu0 0.0
    %567 = vmatprep.subr.mxu0 0.0
    %568 = vmatpush2.msra.mxu0 0.0
    %569 = vmatprep.subr.mxu0 0.0
    %570 = vmatpush2.msra.mxu0 0.0
    %571 = vmatprep.subr.mxu0 0.0
    %572 = vmatpush2.msra.mxu0 0.0
    %573 = vmatprep.subr.mxu0 0.0
    %574 = vmatpush2.msra.mxu0 0.0
    %575 = vmatprep.subr.mxu0 0.0
    %576 = vmatpush2.msra.mxu0 0.0
    %577 = vmatprep.subr.mxu0 0.0
    %578 = vmatpush2.msra.mxu0 0.0
    %579 = vmatprep.subr.mxu0 0.0
    %580 = vmatpush2.msra.mxu0 0.0
    %581 = vmatprep.subr.mxu0 0.0
    %582 = vmatpush2.msra.mxu0 0.0
    %583 = vmatprep.mubr.f32.mxu0 0.0
    %584 = vmatmul.mubr.f32.gmra.mxu0 0.0
    %v585 = vpop.f32.mrf.mxu0
    %v586 = vadd.f32 0.0, %v585
    %v587 = vpop.f32.mrf.mxu0
    %v588 = vadd.f32 0.0, %v587
    %589 = vdwg.mxu0
    %v590 = vadd.f32 %v225, %v515
    %v591 = vadd.f32 %v227, %v517
    %v592 = vadd.f32 %v338, %v586
    %v593 = vadd.f32 %v340, %v588
    %v594 = vmul.f32 %v590, 0.5
    %v595 = vmul.f32 %v591, 0.5
    %v596 = vmul.f32 %v592, 0.5
    %v597 = vtanh.pop %v594
    %v598 = vtanh.pop %v595
    %v599 = vtanh.pop %v596
    %v600 = vmul.f32 %v597, 0.5
    %v601 = vmul.f32 %v598, 0.5
    %v602 = vmul.f32 %v599, 0.5
    %v603 = vadd.f32 %v600, 0.5
    %v604 = vadd.f32 %v601, 0.5
    %v605 = vadd.f32 %v602, 0.5
    %v606 = vmul.f32 %v604, 0.0
    %v607 = vtanh.pop %v593
    %v608 = vmul.f32 %v603, %v607
    %v609 = vadd.f32 %v606, %v608
    %v610 = vtanh.pop %v609
    %v611 = vmul.f32 %v605, %v610
    %612 = vmatprep.subr.mxu0 %v445
    %613 = vmatpush1.msra.mxu0 %v444
    %614 = vmatprep.subr.mxu0 %v441
    %615 = vmatpush1.msra.mxu0 %v440
    %616 = vmatprep.subr.mxu0 %v437
    %617 = vmatpush1.msra.mxu0 %v436
    %618 = vmatprep.subr.mxu0 %v433
    %619 = vmatpush1.msra.mxu0 %v432
    %620 = vmatprep.subr.mxu0 %v429
    %621 = vmatpush1.msra.mxu0 %v428
    %622 = vmatprep.subr.mxu0 %v425
    %623 = vmatpush1.msra.mxu0 %v424
    %624 = vmatprep.subr.mxu0 %v421
    %625 = vmatpush1.msra.mxu0 %v420
    %626 = vmatprep.subr.mxu0 %v417
    %627 = vmatpush1.msra.mxu0 %v416
    %628 = vmatprep.subr.mxu0 %v413
    %629 = vmatpush1.msra.mxu0 %v412
    %630 = vmatprep.subr.mxu0 %v409
    %631 = vmatpush1.msra.mxu0 %v408
    %632 = vmatprep.subr.mxu0 %v405
    %633 = vmatpush1.msra.mxu0 %v404
    %634 = vmatprep.subr.mxu0 %v401
    %635 = vmatpush1.msra.mxu0 %v400
    %636 = vmatprep.subr.mxu0 %v397
    %637 = vmatpush1.msra.mxu0 %v396
    %638 = vmatprep.subr.mxu0 %v393
    %639 = vmatpush1.msra.mxu0 %v392
    %640 = vmatprep.subr.mxu0 %v389
    %641 = vmatpush1.msra.mxu0 %v388
    %642 = vmatprep.subr.mxu0 %v385
    %643 = vmatpush1.msra.mxu0 %v384
    %644 = vmatprep.subr.mxu0 0.0
    %645 = vmatpush2.msra.mxu0 0.0
    %646 = vmatprep.subr.mxu0 0.0
    %647 = vmatpush2.msra.mxu0 0.0
    %648 = vmatprep.subr.mxu0 0.0
    %649 = vmatpush2.msra.mxu0 0.0
    %650 = vmatprep.subr.mxu0 0.0
    %651 = vmatpush2.msra.mxu0 0.0
    %652 = vmatprep.subr.mxu0 0.0
    %653 = vmatpush2.msra.mxu0 0.0
    %654 = vmatprep.subr.mxu0 0.0
    %655 = vmatpush2.msra.mxu0 0.0
    %656 = vmatprep.subr.mxu0 0.0
    %657 = vmatpush2.msra.mxu0 0.0
    %658 = vmatprep.subr.mxu0 0.0
    %659 = vmatpush2.msra.mxu0 0.0
    %660 = vmatprep.subr.mxu0 0.0
    %661 = vmatpush2.msra.mxu0 0.0
    %662 = vmatprep.subr.mxu0 0.0
    %663 = vmatpush2.msra.mxu0 0.0
    %664 = vmatprep.subr.mxu0 0.0
    %665 = vmatpush2.msra.mxu0 0.0
    %666 = vmatprep.subr.mxu0 0.0
    %667 = vmatpush2.msra.mxu0 0.0
    %668 = vmatprep.subr.mxu0 0.0
    %669 = vmatpush2.msra.mxu0 0.0
    %670 = vmatprep.subr.mxu0 0.0
    %671 = vmatpush2.msra.mxu0 0.0
    %672 = vmatprep.subr.mxu0 0.0
    %673 = vmatpush2.msra.mxu0 0.0
    %674 = vmatprep.subr.mxu0 0.0
    %675 = vmatpush2.msra.mxu0 0.0
    %676 = vmatprep.mubr.f32.mxu0 0.0
    %677 = vmatmul.mubr.f32.gmra.mxu0 %v611
    %v678 = vpop.f32.mrf.mxu0
    %v679 = vadd.f32 0.0, %v678
    %v680 = vpop.f32.mrf.mxu0
    %v681 = vadd.f32 0.0, %v680
    %682 = vdwg.mxu0
    %683 = vmatprep.subr.mxu0 %v447
    %684 = vmatpush1.msra.mxu0 %v446
    %685 = vmatprep.subr.mxu0 %v443
    %686 = vmatpush1.msra.mxu0 %v442
    %687 = vmatprep.subr.mxu0 %v439
    %688 = vmatpush1.msra.mxu0 %v438
    %689 = vmatprep.subr.mxu0 %v435
    %690 = vmatpush1.msra.mxu0 %v434
    %691 = vmatprep.subr.mxu0 %v431
    %692 = vmatpush1.msra.mxu0 %v430
    %693 = vmatprep.subr.mxu0 %v427
    %694 = vmatpush1.msra.mxu0 %v426
    %695 = vmatprep.subr.mxu0 %v423
    %696 = vmatpush1.msra.mxu0 %v422
    %697 = vmatprep.subr.mxu0 %v419
    %698 = vmatpush1.msra.mxu0 %v418
    %699 = vmatprep.subr.mxu0 %v415
    %700 = vmatpush1.msra.mxu0 %v414
    %701 = vmatprep.subr.mxu0 %v411
    %702 = vmatpush1.msra.mxu0 %v410
    %703 = vmatprep.subr.mxu0 %v407
    %704 = vmatpush1.msra.mxu0 %v406
    %705 = vmatprep.subr.mxu0 %v403
    %706 = vmatpush1.msra.mxu0 %v402
    %707 = vmatprep.subr.mxu0 %v399
    %708 = vmatpush1.msra.mxu0 %v398
    %709 = vmatprep.subr.mxu0 %v395
    %710 = vmatpush1.msra.mxu0 %v394
    %711 = vmatprep.subr.mxu0 %v391
    %712 = vmatpush1.msra.mxu0 %v390
    %713 = vmatprep.subr.mxu0 %v387
    %714 = vmatpush1.msra.mxu0 %v386
    %715 = vmatprep.subr.mxu0 0.0
    %716 = vmatpush2.msra.mxu0 0.0
    %717 = vmatprep.subr.mxu0 0.0
    %718 = vmatpush2.msra.mxu0 0.0
    %719 = vmatprep.subr.mxu0 0.0
    %720 = vmatpush2.msra.mxu0 0.0
    %721 = vmatprep.subr.mxu0 0.0
    %722 = vmatpush2.msra.mxu0 0.0
    %723 = vmatprep.subr.mxu0 0.0
    %724 = vmatpush2.msra.mxu0 0.0
    %725 = vmatprep.subr.mxu0 0.0
    %726 = vmatpush2.msra.mxu0 0.0
    %727 = vmatprep.subr.mxu0 0.0
    %728 = vmatpush2.msra.mxu0 0.0
    %729 = vmatprep.subr.mxu0 0.0
    %730 = vmatpush2.msra.mxu0 0.0
    %731 = vmatprep.subr.mxu0 0.0
    %732 = vmatpush2.msra.mxu0 0.0
    %733 = vmatprep.subr.mxu0 0.0
    %734 = vmatpush2.msra.mxu0 0.0
    %735 = vmatprep.subr.mxu0 0.0
    %736 = vmatpush2.msra.mxu0 0.0
    %737 = vmatprep.subr.mxu0 0.0
    %738 = vmatpush2.msra.mxu0 0.0
    %739 = vmatprep.subr.mxu0 0.0
    %740 = vmatpush2.msra.mxu0 0.0
    %741 = vmatprep.subr.mxu0 0.0
    %742 = vmatpush2.msra.mxu0 0.0
    %743 = vmatprep.subr.mxu0 0.0
    %744 = vmatpush2.msra.mxu0 0.0
    %745 = vmatprep.subr.mxu0 0.0
    %746 = vmatpush2.msra.mxu0 0.0
    %747 = vmatprep.mubr.f32.mxu0 0.0
    %748 = vmatmul.mubr.f32.gmra.mxu0 %v611
    %v749 = vpop.f32.mrf.mxu0
    %v750 = vadd.f32 0.0, %v749
    %v751 = vpop.f32.mrf.mxu0
    %v752 = vadd.f32 0.0, %v751
    %753 = vdwg.mxu0
    %v754 = vadd.f32 %v231, %v679
    %v755 = vadd.f32 %v233, %v681
    %v756 = vadd.f32 %v344, %v750
    %v757 = vadd.f32 %v346, %v752
    %v758 = vmul.f32 %v754, 0.5
    %v759 = vmul.f32 %v755, 0.5
    %v760 = vmul.f32 %v756, 0.5
    %v761 = vtanh.pop %v758
    %v762 = vtanh.pop %v759
    %v763 = vtanh.pop %v760
    %v764 = vmul.f32 %v761, 0.5
    %v765 = vmul.f32 %v762, 0.5
    %v766 = vmul.f32 %v763, 0.5
    %v767 = vadd.f32 %v764, 0.5
    %v768 = vadd.f32 %v765, 0.5
    %v769 = vadd.f32 %v766, 0.5
    %v770 = vmul.f32 %v768, %v609
    %v771 = vtanh.pop %v757
    %v772 = vmul.f32 %v767, %v771
    %v773 = vadd.f32 %v770, %v772
    %v774 = vtanh.pop %v773
    %v775 = vmul.f32 %v769, %v774
    %776 = vmatprep.subr.mxu0 %v445
    %777 = vmatpush1.msra.mxu0 %v444
    %778 = vmatprep.subr.mxu0 %v441
    %779 = vmatpush1.msra.mxu0 %v440
    %780 = vmatprep.subr.mxu0 %v437
    %781 = vmatpush1.msra.mxu0 %v436
    %782 = vmatprep.subr.mxu0 %v433
    %783 = vmatpush1.msra.mxu0 %v432
    %784 = vmatprep.subr.mxu0 %v429
    %785 = vmatpush1.msra.mxu0 %v428
    %786 = vmatprep.subr.mxu0 %v425
    %787 = vmatpush1.msra.mxu0 %v424
    %788 = vmatprep.subr.mxu0 %v421
    %789 = vmatpush1.msra.mxu0 %v420
    %790 = vmatprep.subr.mxu0 %v417
    %791 = vmatpush1.msra.mxu0 %v416
    %792 = vmatprep.subr.mxu0 %v413
    %793 = vmatpush1.msra.mxu0 %v412
    %794 = vmatprep.subr.mxu0 %v409
    %795 = vmatpush1.msra.mxu0 %v408
    %796 = vmatprep.subr.mxu0 %v405
    %797 = vmatpush1.msra.mxu0 %v404
    %798 = vmatprep.subr.mxu0 %v401
    %799 = vmatpush1.msra.mxu0 %v400
    %800 = vmatprep.subr.mxu0 %v397
    %801 = vmatpush1.msra.mxu0 %v396
    %802 = vmatprep.subr.mxu0 %v393
    %803 = vmatpush1.msra.mxu0 %v392
    %804 = vmatprep.subr.mxu0 %v389
    %805 = vmatpush1.msra.mxu0 %v388
    %806 = vmatprep.subr.mxu0 %v385
    %807 = vmatpush1.msra.mxu0 %v384
    %808 = vmatprep.subr.mxu0 0.0
    %809 = vmatpush2.msra.mxu0 0.0
    %810 = vmatprep.subr.mxu0 0.0
    %811 = vmatpush2.msra.mxu0 0.0
    %812 = vmatprep.subr.mxu0 0.0
    %813 = vmatpush2.msra.mxu0 0.0
    %814 = vmatprep.subr.mxu0 0.0
    %815 = vmatpush2.msra.mxu0 0.0
    %816 = vmatprep.subr.mxu0 0.0
    %817 = vmatpush2.msra.mxu0 0.0
    %818 = vmatprep.subr.mxu0 0.0
    %819 = vmatpush2.msra.mxu0 0.0
    %820 = vmatprep.subr.mxu0 0.0
    %821 = vmatpush2.msra.mxu0 0.0
    %822 = vmatprep.subr.mxu0 0.0
    %823 = vmatpush2.msra.mxu0 0.0
    %824 = vmatprep.subr.mxu0 0.0
    %825 = vmatpush2.msra.mxu0 0.0
    %826 = vmatprep.subr.mxu0 0.0
    %827 = vmatpush2.msra.mxu0 0.0
    %828 = vmatprep.subr.mxu0 0.0
    %829 = vmatpush2.msra.mxu0 0.0
    %830 = vmatprep.subr.mxu0 0.0
    %831 = vmatpush2.msra.mxu0 0.0
    %832 = vmatprep.subr.mxu0 0.0
    %833 = vmatpush2.msra.mxu0 0.0
    %834 = vmatprep.subr.mxu0 0.0
    %835 = vmatpush2.msra.mxu0 0.0
    %836 = vmatprep.subr.mxu0 0.0
    %837 = vmatpush2.msra.mxu0 0.0
    %838 = vmatprep.subr.mxu0 0.0
    %839 = vmatpush2.msra.mxu0 0.0
    %840 = vmatprep.mubr.f32.mxu0 0.0
    %841 = vmatmul.mubr.f32.gmra.mxu0 %v775
    %v842 = vpop.f32.mrf.mxu0
    %v843 = vadd.f32 0.0, %v842
    %v844 = vpop.f32.mrf.mxu0
    %v845 = vadd.f32 0.0, %v844
    %846 = vdwg.mxu0
    %847 = vmatprep.subr.mxu0 %v447
    %848 = vmatpush1.msra.mxu0 %v446
    %849 = vmatprep.subr.mxu0 %v443
    %850 = vmatpush1.msra.mxu0 %v442
    %851 = vmatprep.subr.mxu0 %v439
    %852 = vmatpush1.msra.mxu0 %v438
    %853 = vmatprep.subr.mxu0 %v435
    %854 = vmatpush1.msra.mxu0 %v434
    %855 = vmatprep.subr.mxu0 %v431
    %856 = vmatpush1.msra.mxu0 %v430
    %857 = vmatprep.subr.mxu0 %v427
    %858 = vmatpush1.msra.mxu0 %v426
    %859 = vmatprep.subr.mxu0 %v423
    %860 = vmatpush1.msra.mxu0 %v422
    %861 = vmatprep.subr.mxu0 %v419
    %862 = vmatpush1.msra.mxu0 %v418
    %863 = vmatprep.subr.mxu0 %v415
    %864 = vmatpush1.msra.mxu0 %v414
    %865 = vmatprep.subr.mxu0 %v411
    %866 = vmatpush1.msra.mxu0 %v410
    %867 = vmatprep.subr.mxu0 %v407
    %868 = vmatpush1.msra.mxu0 %v406
    %869 = vmatprep.subr.mxu0 %v403
    %870 = vmatpush1.msra.mxu0 %v402
    %871 = vmatprep.subr.mxu0 %v399
    %872 = vmatpush1.msra.mxu0 %v398
    %873 = vmatprep.subr.mxu0 %v395
    %874 = vmatpush1.msra.mxu0 %v394
    %875 = vmatprep.subr.mxu0 %v391
    %876 = vmatpush1.msra.mxu0 %v390
    %877 = vmatprep.subr.mxu0 %v387
    %878 = vmatpush1.msra.mxu0 %v386
    %879 = vmatprep.subr.mxu0 0.0
    %880 = vmatpush2.msra.mxu0 0.0
    %881 = vmatprep.subr.mxu0 0.0
    %882 = vmatpush2.msra.mxu0 0.0
    %883 = vmatprep.subr.mxu0 0.0
    %884 = vmatpush2.msra.mxu0 0.0
    %885 = vmatprep.subr.mxu0 0.0
    %886 = vmatpush2.msra.mxu0 0.0
    %887 = vmatprep.subr.mxu0 0.0
    %888 = vmatpush2.msra.mxu0 0.0
    %889 = vmatprep.subr.mxu0 0.0
    %890 = vmatpush2.msra.mxu0 0.0
    %891 = vmatprep.subr.mxu0 0.0
    %892 = vmatpush2.msra.mxu0 0.0
    %893 = vmatprep.subr.mxu0 0.0
    %894 = vmatpush2.msra.mxu0 0.0
    %895 = vmatprep.subr.mxu0 0.0
    %896 = vmatpush2.msra.mxu0 0.0
    %897 = vmatprep.subr.mxu0 0.0
    %898 = vmatpush2.msra.mxu0 0.0
    %899 = vmatprep.subr.mxu0 0.0
    %900 = vmatpush2.msra.mxu0 0.0
    %901 = vmatprep.subr.mxu0 0.0
    %902 = vmatpush2.msra.mxu0 0.0
    %903 = vmatprep.subr.mxu0 0.0
    %904 = vmatpush2.msra.mxu0 0.0
    %905 = vmatprep.subr.mxu0 0.0
    %906 = vmatpush2.msra.mxu0 0.0
    %907 = vmatprep.subr.mxu0 0.0
    %908 = vmatpush2.msra.mxu0 0.0
    %909 = vmatprep.subr.mxu0 0.0
    %910 = vmatpush2.msra.mxu0 0.0
    %911 = vmatprep.mubr.f32.mxu0 0.0
    %912 = vmatmul.mubr.f32.gmra.mxu0 %v775
    %v913 = vpop.f32.mrf.mxu0
    %v914 = vadd.f32 0.0, %v913
    %v915 = vpop.f32.mrf.mxu0
    %v916 = vadd.f32 0.0, %v915
    %917 = vdwg.mxu0
    %v918 = vadd.f32 %v237, %v843
    %v919 = vadd.f32 %v239, %v845
    %v920 = vadd.f32 %v350, %v914
    %v921 = vadd.f32 %v352, %v916
    %v922 = vmul.f32 %v918, 0.5
    %v923 = vmul.f32 %v919, 0.5
    %v924 = vmul.f32 %v920, 0.5
    %v925 = vtanh.pop %v922
    %v926 = vtanh.pop %v923
    %v927 = vtanh.pop %v924
    %v928 = vmul.f32 %v925, 0.5
    %v929 = vmul.f32 %v926, 0.5
    %v930 = vmul.f32 %v927, 0.5
    %v931 = vadd.f32 %v928, 0.5
    %v932 = vadd.f32 %v929, 0.5
    %v933 = vadd.f32 %v930, 0.5
    %v934 = vmul.f32 %v932, %v773
    %v935 = vtanh.pop %v921
    %v936 = vmul.f32 %v931, %v935
    %v937 = vadd.f32 %v934, %v936
    %v938 = vtanh.pop %v937
    %v939 = vmul.f32 %v933, %v938
    %940 = vmatprep.subr.mxu0 %v445
    %941 = vmatpush1.msra.mxu0 %v444
    %942 = vmatprep.subr.mxu0 %v441
    %943 = vmatpush1.msra.mxu0 %v440
    %944 = vmatprep.subr.mxu0 %v437
    %945 = vmatpush1.msra.mxu0 %v436
    %946 = vmatprep.subr.mxu0 %v433
    %947 = vmatpush1.msra.mxu0 %v432
    %948 = vmatprep.subr.mxu0 %v429
    %949 = vmatpush1.msra.mxu0 %v428
    %950 = vmatprep.subr.mxu0 %v425
    %951 = vmatpush1.msra.mxu0 %v424
    %952 = vmatprep.subr.mxu0 %v421
    %953 = vmatpush1.msra.mxu0 %v420
    %954 = vmatprep.subr.mxu0 %v417
    %955 = vmatpush1.msra.mxu0 %v416
    %956 = vmatprep.subr.mxu0 %v413
    %957 = vmatpush1.msra.mxu0 %v412
    %958 = vmatprep.subr.mxu0 %v409
    %959 = vmatpush1.msra.mxu0 %v408
    %960 = vmatprep.subr.mxu0 %v405
    %961 = vmatpush1.msra.mxu0 %v404
    %962 = vmatprep.subr.mxu0 %v401
    %963 = vmatpush1.msra.mxu0 %v400
    %964 = vmatprep.subr.mxu0 %v397
    %965 = vmatpush1.msra.mxu0 %v396
    %966 = vmatprep.subr.mxu0 %v393
    %967 = vmatpush1.msra.mxu0 %v392
    %968 = vmatprep.subr.mxu0 %v389
    %969 = vmatpush1.msra.mxu0 %v388
    %970 = vmatprep.subr.mxu0 %v385
    %971 = vmatpush1.msra.mxu0 %v384
    %972 = vmatprep.subr.mxu0 0.0
    %973 = vmatpush2.msra.mxu0 0.0
    %974 = vmatprep.subr.mxu0 0.0
    %975 = vmatpush2.msra.mxu0 0.0
    %976 = vmatprep.subr.mxu0 0.0
    %977 = vmatpush2.msra.mxu0 0.0
    %978 = vmatprep.subr.mxu0 0.0
    %979 = vmatpush2.msra.mxu0 0.0
    %980 = vmatprep.subr.mxu0 0.0
    %981 = vmatpush2.msra.mxu0 0.0
    %982 = vmatprep.subr.mxu0 0.0
    %983 = vmatpush2.msra.mxu0 0.0
    %984 = vmatprep.subr.mxu0 0.0
    %985 = vmatpush2.msra.mxu0 0.0
    %986 = vmatprep.subr.mxu0 0.0
    %987 = vmatpush2.msra.mxu0 0.0
    %988 = vmatprep.subr.mxu0 0.0
    %989 = vmatpush2.msra.mxu0 0.0
    %990 = vmatprep.subr.mxu0 0.0
    %991 = vmatpush2.msra.mxu0 0.0
    %992 = vmatprep.subr.mxu0 0.0
    %993 = vmatpush2.msra.mxu0 0.0
    %994 = vmatprep.subr.mxu0 0.0
    %995 = vmatpush2.msra.mxu0 0.0
    %996 = vmatprep.subr.mxu0 0.0
    %997 = vmatpush2.msra.mxu0 0.0
    %998 = vmatprep.subr.mxu0 0.0
    %999 = vmatpush2.msra.mxu0 0.0
    %1000 = vmatprep.subr.mxu0 0.0
    %1001 = vmatpush2.msra.mxu0 0.0
    %1002 = vmatprep.subr.mxu0 0.0
    %1003 = vmatpush2.msra.mxu0 0.0
    %1004 = vmatprep.mubr.f32.mxu0 0.0
    %1005 = vmatmul.mubr.f32.gmra.mxu0 %v939
    %v1006 = vpop.f32.mrf.mxu0
    %v1007 = vadd.f32 0.0, %v1006
    %v1008 = vpop.f32.mrf.mxu0
    %v1009 = vadd.f32 0.0, %v1008
    %1010 = vdwg.mxu0
    %1011 = vmatprep.subr.mxu0 %v447
    %1012 = vmatpush1.msra.mxu0 %v446
    %1013 = vmatprep.subr.mxu0 %v443
    %1014 = vmatpush1.msra.mxu0 %v442
    %1015 = vmatprep.subr.mxu0 %v439
    %1016 = vmatpush1.msra.mxu0 %v438
    %1017 = vmatprep.subr.mxu0 %v435
    %1018 = vmatpush1.msra.mxu0 %v434
    %1019 = vmatprep.subr.mxu0 %v431
    %1020 = vmatpush1.msra.mxu0 %v430
    %1021 = vmatprep.subr.mxu0 %v427
    %1022 = vmatpush1.msra.mxu0 %v426
    %1023 = vmatprep.subr.mxu0 %v423
    %1024 = vmatpush1.msra.mxu0 %v422
    %1025 = vmatprep.subr.mxu0 %v419
    %1026 = vmatpush1.msra.mxu0 %v418
    %1027 = vmatprep.subr.mxu0 %v415
    %1028 = vmatpush1.msra.mxu0 %v414
    %1029 = vmatprep.subr.mxu0 %v411
    %1030 = vmatpush1.msra.mxu0 %v410
    %1031 = vmatprep.subr.mxu0 %v407
    %1032 = vmatpush1.msra.mxu0 %v406
    %1033 = vmatprep.subr.mxu0 %v403
    %1034 = vmatpush1.msra.mxu0 %v402
    %1035 = vmatprep.subr.mxu0 %v399
    %1036 = vmatpush1.msra.mxu0 %v398
    %1037 = vmatprep.subr.mxu0 %v395
    %1038 = vmatpush1.msra.mxu0 %v394
    %1039 = vmatprep.subr.mxu0 %v391
    %1040 = vmatpush1.msra.mxu0 %v390
    %1041 = vmatprep.subr.mxu0 %v387
    %1042 = vmatpush1.msra.mxu0 %v386
    %1043 = vmatprep.subr.mxu0 0.0
    %1044 = vmatpush2.msra.mxu0 0.0
    %1045 = vmatprep.subr.mxu0 0.0
    %1046 = vmatpush2.msra.mxu0 0.0
    %1047 = vmatprep.subr.mxu0 0.0
    %1048 = vmatpush2.msra.mxu0 0.0
    %1049 = vmatprep.subr.mxu0 0.0
    %1050 = vmatpush2.msra.mxu0 0.0
    %1051 = vmatprep.subr.mxu0 0.0
    %1052 = vmatpush2.msra.mxu0 0.0
    %1053 = vmatprep.subr.mxu0 0.0
    %1054 = vmatpush2.msra.mxu0 0.0
    %1055 = vmatprep.subr.mxu0 0.0
    %1056 = vmatpush2.msra.mxu0 0.0
    %1057 = vmatprep.subr.mxu0 0.0
    %1058 = vmatpush2.msra.mxu0 0.0
    %1059 = vmatprep.subr.mxu0 0.0
    %1060 = vmatpush2.msra.mxu0 0.0
    %1061 = vmatprep.subr.mxu0 0.0
    %1062 = vmatpush2.msra.mxu0 0.0
    %1063 = vmatprep.subr.mxu0 0.0
    %1064 = vmatpush2.msra.mxu0 0.0
    %1065 = vmatprep.subr.mxu0 0.0
    %1066 = vmatpush2.msra.mxu0 0.0
    %1067 = vmatprep.subr.mxu0 0.0
    %1068 = vmatpush2.msra.mxu0 0.0
    %1069 = vmatprep.subr.mxu0 0.0
    %1070 = vmatpush2.msra.mxu0 0.0
    %1071 = vmatprep.subr.mxu0 0.0
    %1072 = vmatpush2.msra.mxu0 0.0
    %1073 = vmatprep.subr.mxu0 0.0
    %1074 = vmatpush2.msra.mxu0 0.0
    %1075 = vmatprep.mubr.f32.mxu0 0.0
    %1076 = vmatmul.mubr.f32.gmra.mxu0 %v939
    %v1077 = vpop.f32.mrf.mxu0
    %v1078 = vadd.f32 0.0, %v1077
    %v1079 = vpop.f32.mrf.mxu0
    %v1080 = vadd.f32 0.0, %v1079
    %1081 = vdwg.mxu0
    %v1082 = vadd.f32 %v243, %v1007
    %v1083 = vadd.f32 %v245, %v1009
    %v1084 = vadd.f32 %v356, %v1078
    %v1085 = vadd.f32 %v358, %v1080
    %v1086 = vmul.f32 %v1082, 0.5
    %v1087 = vmul.f32 %v1083, 0.5
    %v1088 = vmul.f32 %v1084, 0.5
    %v1089 = vtanh.pop %v1086
    %v1090 = vtanh.pop %v1087
    %v1091 = vtanh.pop %v1088
    %v1092 = vmul.f32 %v1089, 0.5
    %v1093 = vmul.f32 %v1090, 0.5
    %v1094 = vmul.f32 %v1091, 0.5
    %v1095 = vadd.f32 %v1092, 0.5
    %v1096 = vadd.f32 %v1093, 0.5
    %v1097 = vadd.f32 %v1094, 0.5
    %v1098 = vmul.f32 %v1096, %v937
    %v1099 = vtanh.pop %v1085
    %v1100 = vmul.f32 %v1095, %v1099
    %v1101 = vadd.f32 %v1098, %v1100
    %v1102 = vtanh.pop %v1101
    %v1103 = vmul.f32 %v1097, %v1102
    %1104 = vmatprep.subr.mxu0 %v445
    %1105 = vmatpush1.msra.mxu0 %v444
    %1106 = vmatprep.subr.mxu0 %v441
    %1107 = vmatpush1.msra.mxu0 %v440
    %1108 = vmatprep.subr.mxu0 %v437
    %1109 = vmatpush1.msra.mxu0 %v436
    %1110 = vmatprep.subr.mxu0 %v433
    %1111 = vmatpush1.msra.mxu0 %v432
    %1112 = vmatprep.subr.mxu0 %v429
    %1113 = vmatpush1.msra.mxu0 %v428
    %1114 = vmatprep.subr.mxu0 %v425
    %1115 = vmatpush1.msra.mxu0 %v424
    %1116 = vmatprep.subr.mxu0 %v421
    %1117 = vmatpush1.msra.mxu0 %v420
    %1118 = vmatprep.subr.mxu0 %v417
    %1119 = vmatpush1.msra.mxu0 %v416
    %1120 = vmatprep.subr.mxu0 %v413
    %1121 = vmatpush1.msra.mxu0 %v412
    %1122 = vmatprep.subr.mxu0 %v409
    %1123 = vmatpush1.msra.mxu0 %v408
    %1124 = vmatprep.subr.mxu0 %v405
    %1125 = vmatpush1.msra.mxu0 %v404
    %1126 = vmatprep.subr.mxu0 %v401
    %1127 = vmatpush1.msra.mxu0 %v400
    %1128 = vmatprep.subr.mxu0 %v397
    %1129 = vmatpush1.msra.mxu0 %v396
    %1130 = vmatprep.subr.mxu0 %v393
    %1131 = vmatpush1.msra.mxu0 %v392
    %1132 = vmatprep.subr.mxu0 %v389
    %1133 = vmatpush1.msra.mxu0 %v388
    %1134 = vmatprep.subr.mxu0 %v385
    %1135 = vmatpush1.msra.mxu0 %v384
    %1136 = vmatprep.subr.mxu0 0.0
    %1137 = vmatpush2.msra.mxu0 0.0
    %1138 = vmatprep.subr.mxu0 0.0
    %1139 = vmatpush2.msra.mxu0 0.0
    %1140 = vmatprep.subr.mxu0 0.0
    %1141 = vmatpush2.msra.mxu0 0.0
    %1142 = vmatprep.subr.mxu0 0.0
    %1143 = vmatpush2.msra.mxu0 0.0
    %1144 = vmatprep.subr.mxu0 0.0
    %1145 = vmatpush2.msra.mxu0 0.0
    %1146 = vmatprep.subr.mxu0 0.0
    %1147 = vmatpush2.msra.mxu0 0.0
    %1148 = vmatprep.subr.mxu0 0.0
    %1149 = vmatpush2.msra.mxu0 0.0
    %1150 = vmatprep.subr.mxu0 0.0
    %1151 = vmatpush2.msra.mxu0 0.0
    %1152 = vmatprep.subr.mxu0 0.0
    %1153 = vmatpush2.msra.mxu0 0.0
    %1154 = vmatprep.subr.mxu0 0.0
    %1155 = vmatpush2.msra.mxu0 0.0
    %1156 = vmatprep.subr.mxu0 0.0
    %1157 = vmatpush2.msra.mxu0 0.0
    %1158 = vmatprep.subr.mxu0 0.0
    %1159 = vmatpush2.msra.mxu0 0.0
    %1160 = vmatprep.subr.mxu0 0.0
    %1161 = vmatpush2.msra.mxu0 0.0
    %1162 = vmatprep.subr.mxu0 0.0
    %1163 = vmatpush2.msra.mxu0 0.0
    %1164 = vmatprep.subr.mxu0 0.0
    %1165 = vmatpush2.msra.mxu0 0.0
    %1166 = vmatprep.subr.mxu0 0.0
    %1167 = vmatpush2.msra.mxu0 0.0
    %1168 = vmatprep.mubr.f32.mxu0 0.0
    %1169 = vmatmul.mubr.f32.gmra.mxu0 %v1103
    %v1170 = vpop.f32.mrf.mxu0
    %v1171 = vadd.f32 0.0, %v1170
    %v1172 = vpop.f32.mrf.mxu0
    %v1173 = vadd.f32 0.0, %v1172
    %1174 = vdwg.mxu0
    %1175 = vmatprep.subr.mxu0 %v447
    %1176 = vmatpush1.msra.mxu0 %v446
    %1177 = vmatprep.subr.mxu0 %v443
    %1178 = vmatpush1.msra.mxu0 %v442
    %1179 = vmatprep.subr.mxu0 %v439
    %1180 = vmatpush1.msra.mxu0 %v438
    %1181 = vmatprep.subr.mxu0 %v435
    %1182 = vmatpush1.msra.mxu0 %v434
    %1183 = vmatprep.subr.mxu0 %v431
    %1184 = vmatpush1.msra.mxu0 %v430
    %1185 = vmatprep.subr.mxu0 %v427
    %1186 = vmatpush1.msra.mxu0 %v426
    %1187 = vmatprep.subr.mxu0 %v423
    %1188 = vmatpush1.msra.mxu0 %v422
    %1189 = vmatprep.subr.mxu0 %v419
    %1190 = vmatpush1.msra.mxu0 %v418
    %1191 = vmatprep.subr.mxu0 %v415
    %1192 = vmatpush1.msra.mxu0 %v414
    %1193 = vmatprep.subr.mxu0 %v411
    %1194 = vmatpush1.msra.mxu0 %v410
    %1195 = vmatprep.subr.mxu0 %v407
    %1196 = vmatpush1.msra.mxu0 %v406
    %1197 = vmatprep.subr.mxu0 %v403
    %1198 = vmatpush1.msra.mxu0 %v402
    %1199 = vmatprep.subr.mxu0 %v399
    %1200 = vmatpush1.msra.mxu0 %v398
    %1201 = vmatprep.subr.mxu0 %v395
    %1202 = vmatpush1.msra.mxu0 %v394
    %1203 = vmatprep.subr.mxu0 %v391
    %1204 = vmatpush1.msra.mxu0 %v390
    %1205 = vmatprep.subr.mxu0 %v387
    %1206 = vmatpush1.msra.mxu0 %v386
    %1207 = vmatprep.subr.mxu0 0.0
    %1208 = vmatpush2.msra.mxu0 0.0
    %1209 = vmatprep.subr.mxu0 0.0
    %1210 = vmatpush2.msra.mxu0 0.0
    %1211 = vmatprep.subr.mxu0 0.0
    %1212 = vmatpush2.msra.mxu0 0.0
    %1213 = vmatprep.subr.mxu0 0.0
    %1214 = vmatpush2.msra.mxu0 0.0
    %1215 = vmatprep.subr.mxu0 0.0
    %1216 = vmatpush2.msra.mxu0 0.0
    %1217 = vmatprep.subr.mxu0 0.0
    %1218 = vmatpush2.msra.mxu0 0.0
    %1219 = vmatprep.subr.mxu0 0.0
    %1220 = vmatpush2.msra.mxu0 0.0
    %1221 = vmatprep.subr.mxu0 0.0
    %1222 = vmatpush2.msra.mxu0 0.0
    %1223 = vmatprep.subr.mxu0 0.0
    %1224 = vmatpush2.msra.mxu0 0.0
    %1225 = vmatprep.subr.mxu0 0.0
    %1226 = vmatpush2.msra.mxu0 0.0
    %1227 = vmatprep.subr.mxu0 0.0
    %1228 = vmatpush2.msra.mxu0 0.0
    %1229 = vmatprep.subr.mxu0 0.0
    %1230 = vmatpush2.msra.mxu0 0.0
    %1231 = vmatprep.subr.mxu0 0.0
    %1232 = vmatpush2.msra.mxu0 0.0
    %1233 = vmatprep.subr.mxu0 0.0
    %1234 = vmatpush2.msra.mxu0 0.0
    %1235 = vmatprep.subr.mxu0 0.0
    %1236 = vmatpush2.msra.mxu0 0.0
    %1237 = vmatprep.subr.mxu0 0.0
    %1238 = vmatpush2.msra.mxu0 0.0
    %1239 = vmatprep.mubr.f32.mxu0 0.0
    %1240 = vmatmul.mubr.f32.gmra.mxu0 %v1103
    %v1241 = vpop.f32.mrf.mxu0
    %v1242 = vadd.f32 0.0, %v1241
    %v1243 = vpop.f32.mrf.mxu0
    %v1244 = vadd.f32 0.0, %v1243
    %1245 = vdwg.mxu0
    %v1246 = vadd.f32 %v249, %v1171
    %v1247 = vadd.f32 %v251, %v1173
    %v1248 = vadd.f32 %v362, %v1242
    %v1249 = vadd.f32 %v364, %v1244
    %v1250 = vmul.f32 %v1246, 0.5
    %v1251 = vmul.f32 %v1247, 0.5
    %v1252 = vmul.f32 %v1248, 0.5
    %v1253 = vtanh.pop %v1250
    %v1254 = vtanh.pop %v1251
    %v1255 = vtanh.pop %v1252
    %v1256 = vmul.f32 %v1253, 0.5
    %v1257 = vmul.f32 %v1254, 0.5
    %v1258 = vmul.f32 %v1255, 0.5
    %v1259 = vadd.f32 %v1256, 0.5
    %v1260 = vadd.f32 %v1257, 0.5
    %v1261 = vadd.f32 %v1258, 0.5
    %v1262 = vmul.f32 %v1260, %v1101
    %v1263 = vtanh.pop %v1249
    %v1264 = vmul.f32 %v1259, %v1263
    %v1265 = vadd.f32 %v1262, %v1264
    %v1266 = vtanh.pop %v1265
    %v1267 = vmul.f32 %v1261, %v1266
    %1268 = vmatprep.subr.mxu0 %v445
    %1269 = vmatpush1.msra.mxu0 %v444
    %1270 = vmatprep.subr.mxu0 %v441
    %1271 = vmatpush1.msra.mxu0 %v440
    %1272 = vmatprep.subr.mxu0 %v437
    %1273 = vmatpush1.msra.mxu0 %v436
    %1274 = vmatprep.subr.mxu0 %v433
    %1275 = vmatpush1.msra.mxu0 %v432
    %1276 = vmatprep.subr.mxu0 %v429
    %1277 = vmatpush1.msra.mxu0 %v428
    %1278 = vmatprep.subr.mxu0 %v425
    %1279 = vmatpush1.msra.mxu0 %v424
    %1280 = vmatprep.subr.mxu0 %v421
    %1281 = vmatpush1.msra.mxu0 %v420
    %1282 = vmatprep.subr.mxu0 %v417
    %1283 = vmatpush1.msra.mxu0 %v416
    %1284 = vmatprep.subr.mxu0 %v413
    %1285 = vmatpush1.msra.mxu0 %v412
    %1286 = vmatprep.subr.mxu0 %v409
    %1287 = vmatpush1.msra.mxu0 %v408
    %1288 = vmatprep.subr.mxu0 %v405
    %1289 = vmatpush1.msra.mxu0 %v404
    %1290 = vmatprep.subr.mxu0 %v401
    %1291 = vmatpush1.msra.mxu0 %v400
    %1292 = vmatprep.subr.mxu0 %v397
    %1293 = vmatpush1.msra.mxu0 %v396
    %1294 = vmatprep.subr.mxu0 %v393
    %1295 = vmatpush1.msra.mxu0 %v392
    %1296 = vmatprep.subr.mxu0 %v389
    %1297 = vmatpush1.msra.mxu0 %v388
    %1298 = vmatprep.subr.mxu0 %v385
    %1299 = vmatpush1.msra.mxu0 %v384
    %1300 = vmatprep.subr.mxu0 0.0
    %1301 = vmatpush2.msra.mxu0 0.0
    %1302 = vmatprep.subr.mxu0 0.0
    %1303 = vmatpush2.msra.mxu0 0.0
    %1304 = vmatprep.subr.mxu0 0.0
    %1305 = vmatpush2.msra.mxu0 0.0
    %1306 = vmatprep.subr.mxu0 0.0
    %1307 = vmatpush2.msra.mxu0 0.0
    %1308 = vmatprep.subr.mxu0 0.0
    %1309 = vmatpush2.msra.mxu0 0.0
    %1310 = vmatprep.subr.mxu0 0.0
    %1311 = vmatpush2.msra.mxu0 0.0
    %1312 = vmatprep.subr.mxu0 0.0
    %1313 = vmatpush2.msra.mxu0 0.0
    %1314 = vmatprep.subr.mxu0 0.0
    %1315 = vmatpush2.msra.mxu0 0.0
    %1316 = vmatprep.subr.mxu0 0.0
    %1317 = vmatpush2.msra.mxu0 0.0
    %1318 = vmatprep.subr.mxu0 0.0
    %1319 = vmatpush2.msra.mxu0 0.0
    %1320 = vmatprep.subr.mxu0 0.0
    %1321 = vmatpush2.msra.mxu0 0.0
    %1322 = vmatprep.subr.mxu0 0.0
    %1323 = vmatpush2.msra.mxu0 0.0
    %1324 = vmatprep.subr.mxu0 0.0
    %1325 = vmatpush2.msra.mxu0 0.0
    %1326 = vmatprep.subr.mxu0 0.0
    %1327 = vmatpush2.msra.mxu0 0.0
    %1328 = vmatprep.subr.mxu0 0.0
    %1329 = vmatpush2.msra.mxu0 0.0
    %1330 = vmatprep.subr.mxu0 0.0
    %1331 = vmatpush2.msra.mxu0 0.0
    %1332 = vmatprep.mubr.f32.mxu0 0.0
    %1333 = vmatmul.mubr.f32.gmra.mxu0 %v1267
    %v1334 = vpop.f32.mrf.mxu0
    %v1335 = vadd.f32 0.0, %v1334
    %v1336 = vpop.f32.mrf.mxu0
    %v1337 = vadd.f32 0.0, %v1336
    %1338 = vdwg.mxu0
    %1339 = vmatprep.subr.mxu0 %v447
    %1340 = vmatpush1.msra.mxu0 %v446
    %1341 = vmatprep.subr.mxu0 %v443
    %1342 = vmatpush1.msra.mxu0 %v442
    %1343 = vmatprep.subr.mxu0 %v439
    %1344 = vmatpush1.msra.mxu0 %v438
    %1345 = vmatprep.subr.mxu0 %v435
    %1346 = vmatpush1.msra.mxu0 %v434
    %1347 = vmatprep.subr.mxu0 %v431
    %1348 = vmatpush1.msra.mxu0 %v430
    %1349 = vmatprep.subr.mxu0 %v427
    %1350 = vmatpush1.msra.mxu0 %v426
    %1351 = vmatprep.subr.mxu0 %v423
    %1352 = vmatpush1.msra.mxu0 %v422
    %1353 = vmatprep.subr.mxu0 %v419
    %1354 = vmatpush1.msra.mxu0 %v418
    %1355 = vmatprep.subr.mxu0 %v415
    %1356 = vmatpush1.msra.mxu0 %v414
    %1357 = vmatprep.subr.mxu0 %v411
    %1358 = vmatpush1.msra.mxu0 %v410
    %1359 = vmatprep.subr.mxu0 %v407
    %1360 = vmatpush1.msra.mxu0 %v406
    %1361 = vmatprep.subr.mxu0 %v403
    %1362 = vmatpush1.msra.mxu0 %v402
    %1363 = vmatprep.subr.mxu0 %v399
    %1364 = vmatpush1.msra.mxu0 %v398
    %1365 = vmatprep.subr.mxu0 %v395
    %1366 = vmatpush1.msra.mxu0 %v394
    %1367 = vmatprep.subr.mxu0 %v391
    %1368 = vmatpush1.msra.mxu0 %v390
    %1369 = vmatprep.subr.mxu0 %v387
    %1370 = vmatpush1.msra.mxu0 %v386
    %1371 = vmatprep.subr.mxu0 0.0
    %1372 = vmatpush2.msra.mxu0 0.0
    %1373 = vmatprep.subr.mxu0 0.0
    %1374 = vmatpush2.msra.mxu0 0.0
    %1375 = vmatprep.subr.mxu0 0.0
    %1376 = vmatpush2.msra.mxu0 0.0
    %1377 = vmatprep.subr.mxu0 0.0
    %1378 = vmatpush2.msra.mxu0 0.0
    %1379 = vmatprep.subr.mxu0 0.0
    %1380 = vmatpush2.msra.mxu0 0.0
    %1381 = vmatprep.subr.mxu0 0.0
    %1382 = vmatpush2.msra.mxu0 0.0
    %1383 = vmatprep.subr.mxu0 0.0
    %1384 = vmatpush2.msra.mxu0 0.0
    %1385 = vmatprep.subr.mxu0 0.0
    %1386 = vmatpush2.msra.mxu0 0.0
    %1387 = vmatprep.subr.mxu0 0.0
    %1388 = vmatpush2.msra.mxu0 0.0
    %1389 = vmatprep.subr.mxu0 0.0
    %1390 = vmatpush2.msra.mxu0 0.0
    %1391 = vmatprep.subr.mxu0 0.0
    %1392 = vmatpush2.msra.mxu0 0.0
    %1393 = vmatprep.subr.mxu0 0.0
    %1394 = vmatpush2.msra.mxu0 0.0
    %1395 = vmatprep.subr.mxu0 0.0
    %1396 = vmatpush2.msra.mxu0 0.0
    %1397 = vmatprep.subr.mxu0 0.0
    %1398 = vmatpush2.msra.mxu0 0.0
    %1399 = vmatprep.subr.mxu0 0.0
    %1400 = vmatpush2.msra.mxu0 0.0
    %1401 = vmatprep.subr.mxu0 0.0
    %1402 = vmatpush2.msra.mxu0 0.0
    %1403 = vmatprep.mubr.f32.mxu0 0.0
    %1404 = vmatmul.mubr.f32.gmra.mxu0 %v1267
    %v1405 = vpop.f32.mrf.mxu0
    %v1406 = vadd.f32 0.0, %v1405
    %v1407 = vpop.f32.mrf.mxu0
    %v1408 = vadd.f32 0.0, %v1407
    %1409 = vdwg.mxu0
    %v1410 = vadd.f32 %v255, %v1335
    %v1411 = vadd.f32 %v257, %v1337
    %v1412 = vadd.f32 %v368, %v1406
    %v1413 = vadd.f32 %v370, %v1408
    %v1414 = vmul.f32 %v1410, 0.5
    %v1415 = vmul.f32 %v1411, 0.5
    %v1416 = vmul.f32 %v1412, 0.5
    %v1417 = vtanh.pop %v1414
    %v1418 = vtanh.pop %v1415
    %v1419 = vtanh.pop %v1416
    %v1420 = vmul.f32 %v1417, 0.5
    %v1421 = vmul.f32 %v1418, 0.5
    %v1422 = vmul.f32 %v1419, 0.5
    %v1423 = vadd.f32 %v1420, 0.5
    %v1424 = vadd.f32 %v1421, 0.5
    %v1425 = vadd.f32 %v1422, 0.5
    %v1426 = vmul.f32 %v1424, %v1265
    %v1427 = vtanh.pop %v1413
    %v1428 = vmul.f32 %v1423, %v1427
    %v1429 = vadd.f32 %v1426, %v1428
    %v1430 = vtanh.pop %v1429
    %v1431 = vmul.f32 %v1425, %v1430
    %1432 = vmatprep.subr.mxu0 %v445
    %1433 = vmatpush1.msra.mxu0 %v444
    %1434 = vmatprep.subr.mxu0 %v441
    %1435 = vmatpush1.msra.mxu0 %v440
    %1436 = vmatprep.subr.mxu0 %v437
    %1437 = vmatpush1.msra.mxu0 %v436
    %1438 = vmatprep.subr.mxu0 %v433
    %1439 = vmatpush1.msra.mxu0 %v432
    %1440 = vmatprep.subr.mxu0 %v429
    %1441 = vmatpush1.msra.mxu0 %v428
    %1442 = vmatprep.subr.mxu0 %v425
    %1443 = vmatpush1.msra.mxu0 %v424
    %1444 = vmatprep.subr.mxu0 %v421
    %1445 = vmatpush1.msra.mxu0 %v420
    %1446 = vmatprep.subr.mxu0 %v417
    %1447 = vmatpush1.msra.mxu0 %v416
    %1448 = vmatprep.subr.mxu0 %v413
    %1449 = vmatpush1.msra.mxu0 %v412
    %1450 = vmatprep.subr.mxu0 %v409
    %1451 = vmatpush1.msra.mxu0 %v408
    %1452 = vmatprep.subr.mxu0 %v405
    %1453 = vmatpush1.msra.mxu0 %v404
    %1454 = vmatprep.subr.mxu0 %v401
    %1455 = vmatpush1.msra.mxu0 %v400
    %1456 = vmatprep.subr.mxu0 %v397
    %1457 = vmatpush1.msra.mxu0 %v396
    %1458 = vmatprep.subr.mxu0 %v393
    %1459 = vmatpush1.msra.mxu0 %v392
    %1460 = vmatprep.subr.mxu0 %v389
    %1461 = vmatpush1.msra.mxu0 %v388
    %1462 = vmatprep.subr.mxu0 %v385
    %1463 = vmatpush1.msra.mxu0 %v384
    %1464 = vmatprep.subr.mxu0 0.0
    %1465 = vmatpush2.msra.mxu0 0.0
    %1466 = vmatprep.subr.mxu0 0.0
    %1467 = vmatpush2.msra.mxu0 0.0
    %1468 = vmatprep.subr.mxu0 0.0
    %1469 = vmatpush2.msra.mxu0 0.0
    %1470 = vmatprep.subr.mxu0 0.0
    %1471 = vmatpush2.msra.mxu0 0.0
    %1472 = vmatprep.subr.mxu0 0.0
    %1473 = vmatpush2.msra.mxu0 0.0
    %1474 = vmatprep.subr.mxu0 0.0
    %1475 = vmatpush2.msra.mxu0 0.0
    %1476 = vmatprep.subr.mxu0 0.0
    %1477 = vmatpush2.msra.mxu0 0.0
    %1478 = vmatprep.subr.mxu0 0.0
    %1479 = vmatpush2.msra.mxu0 0.0
    %1480 = vmatprep.subr.mxu0 0.0
    %1481 = vmatpush2.msra.mxu0 0.0
    %1482 = vmatprep.subr.mxu0 0.0
    %1483 = vmatpush2.msra.mxu0 0.0
    %1484 = vmatprep.subr.mxu0 0.0
    %1485 = vmatpush2.msra.mxu0 0.0
    %1486 = vmatprep.subr.mxu0 0.0
    %1487 = vmatpush2.msra.mxu0 0.0
    %1488 = vmatprep.subr.mxu0 0.0
    %1489 = vmatpush2.msra.mxu0 0.0
    %1490 = vmatprep.subr.mxu0 0.0
    %1491 = vmatpush2.msra.mxu0 0.0
    %1492 = vmatprep.subr.mxu0 0.0
    %1493 = vmatpush2.msra.mxu0 0.0
    %1494 = vmatprep.subr.mxu0 0.0
    %1495 = vmatpush2.msra.mxu0 0.0
    %1496 = vmatprep.mubr.f32.mxu0 0.0
    %1497 = vmatmul.mubr.f32.gmra.mxu0 %v1431
    %v1498 = vpop.f32.mrf.mxu0
    %v1499 = vadd.f32 0.0, %v1498
    %v1500 = vpop.f32.mrf.mxu0
    %v1501 = vadd.f32 0.0, %v1500
    %1502 = vdwg.mxu0
    %1503 = vmatprep.subr.mxu0 %v447
    %1504 = vmatpush1.msra.mxu0 %v446
    %1505 = vmatprep.subr.mxu0 %v443
    %1506 = vmatpush1.msra.mxu0 %v442
    %1507 = vmatprep.subr.mxu0 %v439
    %1508 = vmatpush1.msra.mxu0 %v438
    %1509 = vmatprep.subr.mxu0 %v435
    %1510 = vmatpush1.msra.mxu0 %v434
    %1511 = vmatprep.subr.mxu0 %v431
    %1512 = vmatpush1.msra.mxu0 %v430
    %1513 = vmatprep.subr.mxu0 %v427
    %1514 = vmatpush1.msra.mxu0 %v426
    %1515 = vmatprep.subr.mxu0 %v423
    %1516 = vmatpush1.msra.mxu0 %v422
    %1517 = vmatprep.subr.mxu0 %v419
    %1518 = vmatpush1.msra.mxu0 %v418
    %1519 = vmatprep.subr.mxu0 %v415
    %1520 = vmatpush1.msra.mxu0 %v414
    %1521 = vmatprep.subr.mxu0 %v411
    %1522 = vmatpush1.msra.mxu0 %v410
    %1523 = vmatprep.subr.mxu0 %v407
    %1524 = vmatpush1.msra.mxu0 %v406
    %1525 = vmatprep.subr.mxu0 %v403
    %1526 = vmatpush1.msra.mxu0 %v402
    %1527 = vmatprep.subr.mxu0 %v399
    %1528 = vmatpush1.msra.mxu0 %v398
    %1529 = vmatprep.subr.mxu0 %v395
    %1530 = vmatpush1.msra.mxu0 %v394
    %1531 = vmatprep.subr.mxu0 %v391
    %1532 = vmatpush1.msra.mxu0 %v390
    %1533 = vmatprep.subr.mxu0 %v387
    %1534 = vmatpush1.msra.mxu0 %v386
    %1535 = vmatprep.subr.mxu0 0.0
    %1536 = vmatpush2.msra.mxu0 0.0
    %1537 = vmatprep.subr.mxu0 0.0
    %1538 = vmatpush2.msra.mxu0 0.0
    %1539 = vmatprep.subr.mxu0 0.0
    %1540 = vmatpush2.msra.mxu0 0.0
    %1541 = vmatprep.subr.mxu0 0.0
    %1542 = vmatpush2.msra.mxu0 0.0
    %1543 = vmatprep.subr.mxu0 0.0
    %1544 = vmatpush2.msra.mxu0 0.0
    %1545 = vmatprep.subr.mxu0 0.0
    %1546 = vmatpush2.msra.mxu0 0.0
    %1547 = vmatprep.subr.mxu0 0.0
    %1548 = vmatpush2.msra.mxu0 0.0
    %1549 = vmatprep.subr.mxu0 0.0
    %1550 = vmatpush2.msra.mxu0 0.0
    %1551 = vmatprep.subr.mxu0 0.0
    %1552 = vmatpush2.msra.mxu0 0.0
    %1553 = vmatprep.subr.mxu0 0.0
    %1554 = vmatpush2.msra.mxu0 0.0
    %1555 = vmatprep.subr.mxu0 0.0
    %1556 = vmatpush2.msra.mxu0 0.0
    %1557 = vmatprep.subr.mxu0 0.0
    %1558 = vmatpush2.msra.mxu0 0.0
    %1559 = vmatprep.subr.mxu0 0.0
    %1560 = vmatpush2.msra.mxu0 0.0
    %1561 = vmatprep.subr.mxu0 0.0
    %1562 = vmatpush2.msra.mxu0 0.0
    %1563 = vmatprep.subr.mxu0 0.0
    %1564 = vmatpush2.msra.mxu0 0.0
    %1565 = vmatprep.subr.mxu0 0.0
    %1566 = vmatpush2.msra.mxu0 0.0
    %1567 = vmatprep.mubr.f32.mxu0 0.0
    %1568 = vmatmul.mubr.f32.gmra.mxu0 %v1431
    %v1569 = vpop.f32.mrf.mxu0
    %v1570 = vadd.f32 0.0, %v1569
    %v1571 = vpop.f32.mrf.mxu0
    %v1572 = vadd.f32 0.0, %v1571
    %1573 = vdwg.mxu0
    %v1574 = vadd.f32 %v261, %v1499
    %v1575 = vadd.f32 %v263, %v1501
    %v1576 = vadd.f32 %v374, %v1570
    %v1577 = vadd.f32 %v376, %v1572
    %v1578 = vmul.f32 %v1574, 0.5
    %v1579 = vmul.f32 %v1575, 0.5
    %v1580 = vmul.f32 %v1576, 0.5
    %v1581 = vtanh.pop %v1578
    %v1582 = vtanh.pop %v1579
    %v1583 = vtanh.pop %v1580
    %v1584 = vmul.f32 %v1581, 0.5
    %v1585 = vmul.f32 %v1582, 0.5
    %v1586 = vmul.f32 %v1583, 0.5
    %v1587 = vadd.f32 %v1584, 0.5
    %v1588 = vadd.f32 %v1585, 0.5
    %v1589 = vadd.f32 %v1586, 0.5
    %v1590 = vmul.f32 %v1588, %v1429
    %v1591 = vtanh.pop %v1577
    %v1592 = vmul.f32 %v1587, %v1591
    %v1593 = vadd.f32 %v1590, %v1592
    %v1594 = vtanh.pop %v1593
    %v1595 = vmul.f32 %v1589, %v1594
    %1596 = vmatprep.subr.mxu0 %v445
    %1597 = vmatpush1.msra.mxu0 %v444
    %1598 = vmatprep.subr.mxu0 %v441
    %1599 = vmatpush1.msra.mxu0 %v440
    %1600 = vmatprep.subr.mxu0 %v437
    %1601 = vmatpush1.msra.mxu0 %v436
    %1602 = vmatprep.subr.mxu0 %v433
    %1603 = vmatpush1.msra.mxu0 %v432
    %1604 = vmatprep.subr.mxu0 %v429
    %1605 = vmatpush1.msra.mxu0 %v428
    %1606 = vmatprep.subr.mxu0 %v425
    %1607 = vmatpush1.msra.mxu0 %v424
    %1608 = vmatprep.subr.mxu0 %v421
    %1609 = vmatpush1.msra.mxu0 %v420
    %1610 = vmatprep.subr.mxu0 %v417
    %1611 = vmatpush1.msra.mxu0 %v416
    %1612 = vmatprep.subr.mxu0 %v413
    %1613 = vmatpush1.msra.mxu0 %v412
    %1614 = vmatprep.subr.mxu0 %v409
    %1615 = vmatpush1.msra.mxu0 %v408
    %1616 = vmatprep.subr.mxu0 %v405
    %1617 = vmatpush1.msra.mxu0 %v404
    %1618 = vmatprep.subr.mxu0 %v401
    %1619 = vmatpush1.msra.mxu0 %v400
    %1620 = vmatprep.subr.mxu0 %v397
    %1621 = vmatpush1.msra.mxu0 %v396
    %1622 = vmatprep.subr.mxu0 %v393
    %1623 = vmatpush1.msra.mxu0 %v392
    %1624 = vmatprep.subr.mxu0 %v389
    %1625 = vmatpush1.msra.mxu0 %v388
    %1626 = vmatprep.subr.mxu0 %v385
    %1627 = vmatpush1.msra.mxu0 %v384
    %1628 = vmatprep.subr.mxu0 0.0
    %1629 = vmatpush2.msra.mxu0 0.0
    %1630 = vmatprep.subr.mxu0 0.0
    %1631 = vmatpush2.msra.mxu0 0.0
    %1632 = vmatprep.subr.mxu0 0.0
    %1633 = vmatpush2.msra.mxu0 0.0
    %1634 = vmatprep.subr.mxu0 0.0
    %1635 = vmatpush2.msra.mxu0 0.0
    %1636 = vmatprep.subr.mxu0 0.0
    %1637 = vmatpush2.msra.mxu0 0.0
    %1638 = vmatprep.subr.mxu0 0.0
    %1639 = vmatpush2.msra.mxu0 0.0
    %1640 = vmatprep.subr.mxu0 0.0
    %1641 = vmatpush2.msra.mxu0 0.0
    %1642 = vmatprep.subr.mxu0 0.0
    %1643 = vmatpush2.msra.mxu0 0.0
    %1644 = vmatprep.subr.mxu0 0.0
    %1645 = vmatpush2.msra.mxu0 0.0
    %1646 = vmatprep.subr.mxu0 0.0
    %1647 = vmatpush2.msra.mxu0 0.0
    %1648 = vmatprep.subr.mxu0 0.0
    %1649 = vmatpush2.msra.mxu0 0.0
    %1650 = vmatprep.subr.mxu0 0.0
    %1651 = vmatpush2.msra.mxu0 0.0
    %1652 = vmatprep.subr.mxu0 0.0
    %1653 = vmatpush2.msra.mxu0 0.0
    %1654 = vmatprep.subr.mxu0 0.0
    %1655 = vmatpush2.msra.mxu0 0.0
    %1656 = vmatprep.subr.mxu0 0.0
    %1657 = vmatpush2.msra.mxu0 0.0
    %1658 = vmatprep.subr.mxu0 0.0
    %1659 = vmatpush2.msra.mxu0 0.0
    %1660 = vmatprep.mubr.f32.mxu0 0.0
    %1661 = vmatmul.mubr.f32.gmra.mxu0 %v1595
    %v1662 = vpop.f32.mrf.mxu0
    %v1663 = vadd.f32 0.0, %v1662
    %v1664 = vpop.f32.mrf.mxu0
    %v1665 = vadd.f32 0.0, %v1664
    %1666 = vdwg.mxu0
    %1667 = vmatprep.subr.mxu0 %v447
    %1668 = vmatpush1.msra.mxu0 %v446
    %1669 = vmatprep.subr.mxu0 %v443
    %1670 = vmatpush1.msra.mxu0 %v442
    %1671 = vmatprep.subr.mxu0 %v439
    %1672 = vmatpush1.msra.mxu0 %v438
    %1673 = vmatprep.subr.mxu0 %v435
    %1674 = vmatpush1.msra.mxu0 %v434
    %1675 = vmatprep.subr.mxu0 %v431
    %1676 = vmatpush1.msra.mxu0 %v430
    %1677 = vmatprep.subr.mxu0 %v427
    %1678 = vmatpush1.msra.mxu0 %v426
    %1679 = vmatprep.subr.mxu0 %v423
    %1680 = vmatpush1.msra.mxu0 %v422
    %1681 = vmatprep.subr.mxu0 %v419
    %1682 = vmatpush1.msra.mxu0 %v418
    %1683 = vmatprep.subr.mxu0 %v415
    %1684 = vmatpush1.msra.mxu0 %v414
    %1685 = vmatprep.subr.mxu0 %v411
    %1686 = vmatpush1.msra.mxu0 %v410
    %1687 = vmatprep.subr.mxu0 %v407
    %1688 = vmatpush1.msra.mxu0 %v406
    %1689 = vmatprep.subr.mxu0 %v403
    %1690 = vmatpush1.msra.mxu0 %v402
    %1691 = vmatprep.subr.mxu0 %v399
    %1692 = vmatpush1.msra.mxu0 %v398
    %1693 = vmatprep.subr.mxu0 %v395
    %1694 = vmatpush1.msra.mxu0 %v394
    %1695 = vmatprep.subr.mxu0 %v391
    %1696 = vmatpush1.msra.mxu0 %v390
    %1697 = vmatprep.subr.mxu0 %v387
    %1698 = vmatpush1.msra.mxu0 %v386
    %1699 = vmatprep.subr.mxu0 0.0
    %1700 = vmatpush2.msra.mxu0 0.0
    %1701 = vmatprep.subr.mxu0 0.0
    %1702 = vmatpush2.msra.mxu0 0.0
    %1703 = vmatprep.subr.mxu0 0.0
    %1704 = vmatpush2.msra.mxu0 0.0
    %1705 = vmatprep.subr.mxu0 0.0
    %1706 = vmatpush2.msra.mxu0 0.0
    %1707 = vmatprep.subr.mxu0 0.0
    %1708 = vmatpush2.msra.mxu0 0.0
    %1709 = vmatprep.subr.mxu0 0.0
    %1710 = vmatpush2.msra.mxu0 0.0
    %1711 = vmatprep.subr.mxu0 0.0
    %1712 = vmatpush2.msra.mxu0 0.0
    %1713 = vmatprep.subr.mxu0 0.0
    %1714 = vmatpush2.msra.mxu0 0.0
    %1715 = vmatprep.subr.mxu0 0.0
    %1716 = vmatpush2.msra.mxu0 0.0
    %1717 = vmatprep.subr.mxu0 0.0
    %1718 = vmatpush2.msra.mxu0 0.0
    %1719 = vmatprep.subr.mxu0 0.0
    %1720 = vmatpush2.msra.mxu0 0.0
    %1721 = vmatprep.subr.mxu0 0.0
    %1722 = vmatpush2.msra.mxu0 0.0
    %1723 = vmatprep.subr.mxu0 0.0
    %1724 = vmatpush2.msra.mxu0 0.0
    %1725 = vmatprep.subr.mxu0 0.0
    %1726 = vmatpush2.msra.mxu0 0.0
    %1727 = vmatprep.subr.mxu0 0.0
    %1728 = vmatpush2.msra.mxu0 0.0
    %1729 = vmatprep.subr.mxu0 0.0
    %1730 = vmatpush2.msra.mxu0 0.0
    %1731 = vmatprep.mubr.f32.mxu0 0.0
    %1732 = vmatmul.mubr.f32.gmra.mxu0 %v1595
    %v1733 = vpop.f32.mrf.mxu0
    %v1734 = vadd.f32 0.0, %v1733
    %v1735 = vpop.f32.mrf.mxu0
    %v1736 = vadd.f32 0.0, %v1735
    %1737 = vdwg.mxu0
    %v1738 = vadd.f32 %v267, %v1663
    %v1739 = vadd.f32 %v269, %v1665
    %v1740 = vadd.f32 %v380, %v1734
    %v1741 = vadd.f32 %v382, %v1736
    %v1742 = vmul.f32 %v1738, 0.5
    %v1743 = vmul.f32 %v1739, 0.5
    %v1744 = vmul.f32 %v1740, 0.5
    %v1745 = vtanh.pop %v1742
    %v1746 = vtanh.pop %v1743
    %v1747 = vtanh.pop %v1744
    %v1748 = vmul.f32 %v1745, 0.5
    %v1749 = vmul.f32 %v1746, 0.5
    %v1750 = vmul.f32 %v1747, 0.5
    %v1751 = vadd.f32 %v1748, 0.5
    %v1752 = vadd.f32 %v1749, 0.5
    %v1753 = vadd.f32 %v1750, 0.5
    %v1754 = vmul.f32 %v1752, %v1593
    %v1755 = vtanh.pop %v1741
    %v1756 = vmul.f32 %v1751, %v1755
    %v1757 = vadd.f32 %v1754, %v1756
    %v1758 = vtanh.pop %v1757
    %v1759 = vmul.f32 %v1753, %v1758
    %v1760 = vld [vmem:[#allocation6] sm:$0xff]
    %v1761 = vld [vmem:[#allocation6 + $0x8] sm:$0xff]
    %v1762 = vld [vmem:[#allocation6 + $0x10] sm:$0xff]
    %v1763 = vld [vmem:[#allocation6 + $0x18] sm:$0xff]
    %v1764 = vld [vmem:[#allocation6 + $0x20] sm:$0xff]
    %v1765 = vld [vmem:[#allocation6 + $0x28] sm:$0xff]
    %v1766 = vld [vmem:[#allocation6 + $0x30] sm:$0xff]
    %v1767 = vld [vmem:[#allocation6 + $0x38] sm:$0xff]
    %v1768 = vld [vmem:[#allocation6 + $0x40] sm:$0xff]
    %v1769 = vld [vmem:[#allocation6 + $0x48] sm:$0xff]
    %v1770 = vld [vmem:[#allocation6 + $0x50] sm:$0xff]
    %v1771 = vld [vmem:[#allocation6 + $0x58] sm:$0xff]
    %v1772 = vld [vmem:[#allocation6 + $0x60] sm:$0xff]
    %v1773 = vld [vmem:[#allocation6 + $0x68] sm:$0xff]
    %v1774 = vld [vmem:[#allocation6 + $0x70] sm:$0xff]
    %v1775 = vld [vmem:[#allocation6 + $0x78] sm:$0xff]
    %v1776 = vld [vmem:[%s5] sm:$0x1]
    %v1778 = vlaneseq
    %v1779 = vshrl.u32 %v1778, 7
    %v1780 = vsub.s32 0, %v1779
    %v1781 = vrot.slane %v1776, %v1780
    %1783 = vmatprep.subr.mxu0 0.0
    %1784 = vmatpush1.msra.mxu0 %v1775
    %1785 = vmatprep.subr.mxu0 0.0
    %1786 = vmatpush1.msra.mxu0 %v1774
    %1787 = vmatprep.subr.mxu0 0.0
    %1788 = vmatpush1.msra.mxu0 %v1773
    %1789 = vmatprep.subr.mxu0 0.0
    %1790 = vmatpush1.msra.mxu0 %v1772
    %1791 = vmatprep.subr.mxu0 0.0
    %1792 = vmatpush1.msra.mxu0 %v1771
    %1793 = vmatprep.subr.mxu0 0.0
    %1794 = vmatpush1.msra.mxu0 %v1770
    %1795 = vmatprep.subr.mxu0 0.0
    %1796 = vmatpush1.msra.mxu0 %v1769
    %1797 = vmatprep.subr.mxu0 0.0
    %1798 = vmatpush1.msra.mxu0 %v1768
    %1799 = vmatprep.subr.mxu0 0.0
    %1800 = vmatpush1.msra.mxu0 %v1767
    %1801 = vmatprep.subr.mxu0 0.0
    %1802 = vmatpush1.msra.mxu0 %v1766
    %1803 = vmatprep.subr.mxu0 0.0
    %1804 = vmatpush1.msra.mxu0 %v1765
    %1805 = vmatprep.subr.mxu0 0.0
    %1806 = vmatpush1.msra.mxu0 %v1764
    %1807 = vmatprep.subr.mxu0 0.0
    %1808 = vmatpush1.msra.mxu0 %v1763
    %1809 = vmatprep.subr.mxu0 0.0
    %1810 = vmatpush1.msra.mxu0 %v1762
    %1811 = vmatprep.subr.mxu0 0.0
    %1812 = vmatpush1.msra.mxu0 %v1761
    %1813 = vmatprep.subr.mxu0 0.0
    %1814 = vmatpush1.msra.mxu0 %v1760
    %1815 = vmatprep.subr.mxu0 0.0
    %1816 = vmatpush2.msra.mxu0 0.0
    %1817 = vmatprep.subr.mxu0 0.0
    %1818 = vmatpush2.msra.mxu0 0.0
    %1819 = vmatprep.subr.mxu0 0.0
    %1820 = vmatpush2.msra.mxu0 0.0
    %1821 = vmatprep.subr.mxu0 0.0
    %1822 = vmatpush2.msra.mxu0 0.0
    %1823 = vmatprep.subr.mxu0 0.0
    %1824 = vmatpush2.msra.mxu0 0.0
    %1825 = vmatprep.subr.mxu0 0.0
    %1826 = vmatpush2.msra.mxu0 0.0
    %1827 = vmatprep.subr.mxu0 0.0
    %1828 = vmatpush2.msra.mxu0 0.0
    %1829 = vmatprep.subr.mxu0 0.0
    %1830 = vmatpush2.msra.mxu0 0.0
    %1831 = vmatprep.subr.mxu0 0.0
    %1832 = vmatpush2.msra.mxu0 0.0
    %1833 = vmatprep.subr.mxu0 0.0
    %1834 = vmatpush2.msra.mxu0 0.0
    %1835 = vmatprep.subr.mxu0 0.0
    %1836 = vmatpush2.msra.mxu0 0.0
    %1837 = vmatprep.subr.mxu0 0.0
    %1838 = vmatpush2.msra.mxu0 0.0
    %1839 = vmatprep.subr.mxu0 0.0
    %1840 = vmatpush2.msra.mxu0 0.0
    %1841 = vmatprep.subr.mxu0 0.0
    %1842 = vmatpush2.msra.mxu0 0.0
    %1843 = vmatprep.subr.mxu0 0.0
    %1844 = vmatpush2.msra.mxu0 0.0
    %1845 = vmatprep.subr.mxu0 0.0
    %1846 = vmatpush2.msra.mxu0 0.0
    %1847 = vmatprep.mubr.f32.mxu0 0.0
    %1848 = vmatmul.mubr.f32.gmra.mxu0 %v611
    %v1849 = vpop.f32.mrf.mxu0
    %v1850 = vadd.f32 %v1781, %v1849
    %v1851 = vpop.f32.mrf.mxu0
    %1852 = vmatprep.mubr.f32.mxu0 0.0
    %1853 = vmatmul.mubr.f32.gmra.mxu0 %v775
    %v1854 = vpop.f32.mrf.mxu0
    %v1855 = vadd.f32 %v1781, %v1854
    %v1856 = vpop.f32.mrf.mxu0
    %1857 = vmatprep.mubr.f32.mxu0 0.0
    %1858 = vmatmul.mubr.f32.gmra.mxu0 %v939
    %v1859 = vpop.f32.mrf.mxu0
    %v1860 = vadd.f32 %v1781, %v1859
    %v1861 = vpop.f32.mrf.mxu0
    %1862 = vmatprep.mubr.f32.mxu0 0.0
    %1863 = vmatmul.mubr.f32.gmra.mxu0 %v1103
    %v1864 = vpop.f32.mrf.mxu0
    %v1865 = vadd.f32 %v1781, %v1864
    %v1866 = vpop.f32.mrf.mxu0
    %1867 = vmatprep.mubr.f32.mxu0 0.0
    %1868 = vmatmul.mubr.f32.gmra.mxu0 %v1267
    %v1869 = vpop.f32.mrf.mxu0
    %v1870 = vadd.f32 %v1781, %v1869
    %v1871 = vpop.f32.mrf.mxu0
    %1872 = vmatprep.mubr.f32.mxu0 0.0
    %1873 = vmatmul.mubr.f32.gmra.mxu0 %v1431
    %v1874 = vpop.f32.mrf.mxu0
    %v1875 = vadd.f32 %v1781, %v1874
    %v1876 = vpop.f32.mrf.mxu0
    %1877 = vmatprep.mubr.f32.mxu0 0.0
    %1878 = vmatmul.mubr.f32.gmra.mxu0 %v1595
    %v1879 = vpop.f32.mrf.mxu0
    %v1880 = vadd.f32 %v1781, %v1879
    %v1881 = vpop.f32.mrf.mxu0
    %1882 = vmatprep.mubr.f32.mxu0 0.0
    %1883 = vmatmul.mubr.f32.gmra.mxu0 %v1759
    %v1884 = vpop.f32.mrf.mxu0
    %v1885 = vadd.f32 %v1781, %v1884
    %v1886 = vpop.f32.mrf.mxu0
    %1887 = vdwg.mxu0
    %v1888 = vmax.f32 %v1850, %v1855
    %v1889 = vmax.f32 %v1860, %v1865
    %v1890 = vmax.f32 %v1870, %v1875
    %v1891 = vmax.f32 %v1880, %v1885
    %v1892 = vmax.f32 %v1888, %v1889
    %v1893 = vmax.f32 %v1890, %v1891
    %v1894 = vmax.f32 %v1892, %v1893
    %v1895 = vsub.f32 %v1850, %v1894
    %v1896 = vmul.f32 %v1895, 1.442695
    %v1897 = vpow.pop %v1896
    %v1898 = vsub.f32 %v1855, %v1894
    %v1899 = vmul.f32 %v1898, 1.442695
    %v1900 = vpow.pop %v1899
    %v1901 = vsub.f32 %v1860, %v1894
    %v1902 = vmul.f32 %v1901, 1.442695
    %v1903 = vpow.pop %v1902
    %v1904 = vsub.f32 %v1865, %v1894
    %v1905 = vmul.f32 %v1904, 1.442695
    %v1906 = vpow.pop %v1905
    %v1907 = vsub.f32 %v1870, %v1894
    %v1908 = vmul.f32 %v1907, 1.442695
    %v1909 = vpow.pop %v1908
    %v1910 = vsub.f32 %v1875, %v1894
    %v1911 = vmul.f32 %v1910, 1.442695
    %v1912 = vpow.pop %v1911
    %v1913 = vsub.f32 %v1880, %v1894
    %v1914 = vmul.f32 %v1913, 1.442695
    %v1915 = vpow.pop %v1914
    %v1916 = vsub.f32 %v1885, %v1894
    %v1917 = vmul.f32 %v1916, 1.442695
    %v1918 = vpow.pop %v1917
    %v1919 = vadd.f32 %v1897, %v1900
    %v1920 = vadd.f32 %v1903, %v1906
    %v1921 = vadd.f32 %v1909, %v1912
    %v1922 = vadd.f32 %v1915, %v1918
    %v1923 = vadd.f32 %v1919, %v1920
    %v1924 = vadd.f32 %v1921, %v1922
    %v1925 = vadd.f32 %v1923, %v1924
    %v1926 = vlog2.pop %v1925
    %v1927 = vmul.f32 %v1926, 0.6931472
    %v1928 = vadd.f32 %v1894, %v1927
    %v1929 = vsub.f32 %v1850, %v1928
    %v1930 = vsub.f32 %v1855, %v1928
    %v1931 = vsub.f32 %v1860, %v1928
    %v1932 = vsub.f32 %v1865, %v1928
    %v1933 = vsub.f32 %v1870, %v1928
    %v1934 = vsub.f32 %v1875, %v1928
    %v1935 = vsub.f32 %v1880, %v1928
    %v1936 = vsub.f32 %v1885, %v1928
    %1937 = vmatprep.subr.mxu0 %v133
    %1938 = vmatpush1.msra.mxu0 %v132
    %1939 = vmatprep.subr.mxu0 %v129
    %1940 = vmatpush1.msra.mxu0 %v128
    %1941 = vmatprep.subr.mxu0 %v125
    %1942 = vmatpush1.msra.mxu0 %v124
    %1943 = vmatprep.subr.mxu0 %v121
    %1944 = vmatpush1.msra.mxu0 %v120
    %1945 = vmatprep.subr.mxu0 %v117
    %1946 = vmatpush1.msra.mxu0 %v116
    %1947 = vmatprep.subr.mxu0 %v113
    %1948 = vmatpush1.msra.mxu0 %v112
    %1949 = vmatprep.subr.mxu0 %v109
    %1950 = vmatpush1.msra.mxu0 %v108
    %1951 = vmatprep.subr.mxu0 %v105
    %1952 = vmatpush1.msra.mxu0 %v104
    %1953 = vmatprep.subr.mxu0 %v101
    %1954 = vmatpush1.msra.mxu0 %v100
    %1955 = vmatprep.subr.mxu0 %v97
    %1956 = vmatpush1.msra.mxu0 %v96
    %1957 = vmatprep.subr.mxu0 %v93
    %1958 = vmatpush1.msra.mxu0 %v92
    %1959 = vmatprep.subr.mxu0 %v89
    %1960 = vmatpush1.msra.mxu0 %v88
    %1961 = vmatprep.subr.mxu0 %v85
    %1962 = vmatpush1.msra.mxu0 %v84
    %1963 = vmatprep.subr.mxu0 %v81
    %1964 = vmatpush1.msra.mxu0 %v80
    %1965 = vmatprep.subr.mxu0 %v77
    %1966 = vmatpush1.msra.mxu0 %v76
    %1967 = vmatprep.subr.mxu0 %v73
    %1968 = vmatpush1.msra.mxu0 %v72
    %1969 = vmatprep.subr.mxu0 0.0
    %1970 = vmatpush2.msra.mxu0 0.0
    %1971 = vmatprep.subr.mxu0 0.0
    %1972 = vmatpush2.msra.mxu0 0.0
    %1973 = vmatprep.subr.mxu0 0.0
    %1974 = vmatpush2.msra.mxu0 0.0
    %1975 = vmatprep.subr.mxu0 0.0
    %1976 = vmatpush2.msra.mxu0 0.0
    %1977 = vmatprep.subr.mxu0 0.0
    %1978 = vmatpush2.msra.mxu0 0.0
    %1979 = vmatprep.subr.mxu0 0.0
    %1980 = vmatpush2.msra.mxu0 0.0
    %1981 = vmatprep.subr.mxu0 0.0
    %1982 = vmatpush2.msra.mxu0 0.0
    %1983 = vmatprep.subr.mxu0 0.0
    %1984 = vmatpush2.msra.mxu0 0.0
    %1985 = vmatprep.subr.mxu0 0.0
    %1986 = vmatpush2.msra.mxu0 0.0
    %1987 = vmatprep.subr.mxu0 0.0
    %1988 = vmatpush2.msra.mxu0 0.0
    %1989 = vmatprep.subr.mxu0 0.0
    %1990 = vmatpush2.msra.mxu0 0.0
    %1991 = vmatprep.subr.mxu0 0.0
    %1992 = vmatpush2.msra.mxu0 0.0
    %1993 = vmatprep.subr.mxu0 0.0
    %1994 = vmatpush2.msra.mxu0 0.0
    %1995 = vmatprep.subr.mxu0 0.0
    %1996 = vmatpush2.msra.mxu0 0.0
    %1997 = vmatprep.subr.mxu0 0.0
    %1998 = vmatpush2.msra.mxu0 0.0
    %1999 = vmatprep.subr.mxu0 0.0
    %2000 = vmatpush2.msra.mxu0 0.0
    %2001 = vmatprep.mubr.f32.mxu0 0.0
    %2002 = vmatmul.mubr.f32.gmra.mxu0 %v1929
    %v2003 = vpop.f32.mrf.mxu0
    %v2004 = vadd.f32 %v141, %v2003
    %v2005 = vpop.f32.mrf.mxu0
    %v2006 = vadd.f32 %v145, %v2005
    %2007 = vmatprep.mubr.f32.mxu0 0.0
    %2008 = vmatmul.mubr.f32.gmra.mxu0 %v1930
    %v2009 = vpop.f32.mrf.mxu0
    %v2010 = vadd.f32 %v141, %v2009
    %v2011 = vpop.f32.mrf.mxu0
    %v2012 = vadd.f32 %v145, %v2011
    %2013 = vmatprep.mubr.f32.mxu0 0.0
    %2014 = vmatmul.mubr.f32.gmra.mxu0 %v1931
    %v2015 = vpop.f32.mrf.mxu0
    %v2016 = vadd.f32 %v141, %v2015
    %v2017 = vpop.f32.mrf.mxu0
    %v2018 = vadd.f32 %v145, %v2017
    %2019 = vmatprep.mubr.f32.mxu0 0.0
    %2020 = vmatmul.mubr.f32.gmra.mxu0 %v1932
    %v2021 = vpop.f32.mrf.mxu0
    %v2022 = vadd.f32 %v141, %v2021
    %v2023 = vpop.f32.mrf.mxu0
    %v2024 = vadd.f32 %v145, %v2023
    %2025 = vmatprep.mubr.f32.mxu0 0.0
    %2026 = vmatmul.mubr.f32.gmra.mxu0 %v1933
    %v2027 = vpop.f32.mrf.mxu0
    %v2028 = vadd.f32 %v141, %v2027
    %v2029 = vpop.f32.mrf.mxu0
    %v2030 = vadd.f32 %v145, %v2029
    %2031 = vmatprep.mubr.f32.mxu0 0.0
    %2032 = vmatmul.mubr.f32.gmra.mxu0 %v1934
    %v2033 = vpop.f32.mrf.mxu0
    %v2034 = vadd.f32 %v141, %v2033
    %v2035 = vpop.f32.mrf.mxu0
    %v2036 = vadd.f32 %v145, %v2035
    %2037 = vmatprep.mubr.f32.mxu0 0.0
    %2038 = vmatmul.mubr.f32.gmra.mxu0 %v1935
    %v2039 = vpop.f32.mrf.mxu0
    %v2040 = vadd.f32 %v141, %v2039
    %v2041 = vpop.f32.mrf.mxu0
    %v2042 = vadd.f32 %v145, %v2041
    %2043 = vmatprep.mubr.f32.mxu0 0.0
    %2044 = vmatmul.mubr.f32.gmra.mxu0 %v1936
    %v2045 = vpop.f32.mrf.mxu0
    %v2046 = vadd.f32 %v141, %v2045
    %v2047 = vpop.f32.mrf.mxu0
    %v2048 = vadd.f32 %v145, %v2047
    %2049 = vdwg.mxu0
    %2050 = vmatprep.subr.mxu0 %v135
    %2051 = vmatpush1.msra.mxu0 %v134
    %2052 = vmatprep.subr.mxu0 %v131
    %2053 = vmatpush1.msra.mxu0 %v130
    %2054 = vmatprep.subr.mxu0 %v127
    %2055 = vmatpush1.msra.mxu0 %v126
    %2056 = vmatprep.subr.mxu0 %v123
    %2057 = vmatpush1.msra.mxu0 %v122
    %2058 = vmatprep.subr.mxu0 %v119
    %2059 = vmatpush1.msra.mxu0 %v118
    %2060 = vmatprep.subr.mxu0 %v115
    %2061 = vmatpush1.msra.mxu0 %v114
    %2062 = vmatprep.subr.mxu0 %v111
    %2063 = vmatpush1.msra.mxu0 %v110
    %2064 = vmatprep.subr.mxu0 %v107
    %2065 = vmatpush1.msra.mxu0 %v106
    %2066 = vmatprep.subr.mxu0 %v103
    %2067 = vmatpush1.msra.mxu0 %v102
    %2068 = vmatprep.subr.mxu0 %v99
    %2069 = vmatpush1.msra.mxu0 %v98
    %2070 = vmatprep.subr.mxu0 %v95
    %2071 = vmatpush1.msra.mxu0 %v94
    %2072 = vmatprep.subr.mxu0 %v91
    %2073 = vmatpush1.msra.mxu0 %v90
    %2074 = vmatprep.subr.mxu0 %v87
    %2075 = vmatpush1.msra.mxu0 %v86
    %2076 = vmatprep.subr.mxu0 %v83
    %2077 = vmatpush1.msra.mxu0 %v82
    %2078 = vmatprep.subr.mxu0 %v79
    %2079 = vmatpush1.msra.mxu0 %v78
    %2080 = vmatprep.subr.mxu0 %v75
    %2081 = vmatpush1.msra.mxu0 %v74
    %2082 = vmatprep.subr.mxu0 0.0
    %2083 = vmatpush2.msra.mxu0 0.0
    %2084 = vmatprep.subr.mxu0 0.0
    %2085 = vmatpush2.msra.mxu0 0.0
    %2086 = vmatprep.subr.mxu0 0.0
    %2087 = vmatpush2.msra.mxu0 0.0
    %2088 = vmatprep.subr.mxu0 0.0
    %2089 = vmatpush2.msra.mxu0 0.0
    %2090 = vmatprep.subr.mxu0 0.0
    %2091 = vmatpush2.msra.mxu0 0.0
    %2092 = vmatprep.subr.mxu0 0.0
    %2093 = vmatpush2.msra.mxu0 0.0
    %2094 = vmatprep.subr.mxu0 0.0
    %2095 = vmatpush2.msra.mxu0 0.0
    %2096 = vmatprep.subr.mxu0 0.0
    %2097 = vmatpush2.msra.mxu0 0.0
    %2098 = vmatprep.subr.mxu0 0.0
    %2099 = vmatpush2.msra.mxu0 0.0
    %2100 = vmatprep.subr.mxu0 0.0
    %2101 = vmatpush2.msra.mxu0 0.0
    %2102 = vmatprep.subr.mxu0 0.0
    %2103 = vmatpush2.msra.mxu0 0.0
    %2104 = vmatprep.subr.mxu0 0.0
    %2105 = vmatpush2.msra.mxu0 0.0
    %2106 = vmatprep.subr.mxu0 0.0
    %2107 = vmatpush2.msra.mxu0 0.0
    %2108 = vmatprep.subr.mxu0 0.0
    %2109 = vmatpush2.msra.mxu0 0.0
    %2110 = vmatprep.subr.mxu0 0.0
    %2111 = vmatpush2.msra.mxu0 0.0
    %2112 = vmatprep.subr.mxu0 0.0
    %2113 = vmatpush2.msra.mxu0 0.0
    %2114 = vmatprep.mubr.f32.mxu0 0.0
    %2115 = vmatmul.mubr.f32.gmra.mxu0 %v1929
    %v2116 = vpop.f32.mrf.mxu0
    %v2117 = vadd.f32 %v149, %v2116
    %v2118 = vpop.f32.mrf.mxu0
    %v2119 = vadd.f32 %v153, %v2118
    %2120 = vmatprep.mubr.f32.mxu0 0.0
    %2121 = vmatmul.mubr.f32.gmra.mxu0 %v1930
    %v2122 = vpop.f32.mrf.mxu0
    %v2123 = vadd.f32 %v149, %v2122
    %v2124 = vpop.f32.mrf.mxu0
    %v2125 = vadd.f32 %v153, %v2124
    %2126 = vmatprep.mubr.f32.mxu0 0.0
    %2127 = vmatmul.mubr.f32.gmra.mxu0 %v1931
    %v2128 = vpop.f32.mrf.mxu0
    %v2129 = vadd.f32 %v149, %v2128
    %v2130 = vpop.f32.mrf.mxu0
    %v2131 = vadd.f32 %v153, %v2130
    %2132 = vmatprep.mubr.f32.mxu0 0.0
    %2133 = vmatmul.mubr.f32.gmra.mxu0 %v1932
    %v2134 = vpop.f32.mrf.mxu0
    %v2135 = vadd.f32 %v149, %v2134
    %v2136 = vpop.f32.mrf.mxu0
    %v2137 = vadd.f32 %v153, %v2136
    %2138 = vmatprep.mubr.f32.mxu0 0.0
    %2139 = vmatmul.mubr.f32.gmra.mxu0 %v1933
    %v2140 = vpop.f32.mrf.mxu0
    %v2141 = vadd.f32 %v149, %v2140
    %v2142 = vpop.f32.mrf.mxu0
    %v2143 = vadd.f32 %v153, %v2142
    %2144 = vmatprep.mubr.f32.mxu0 0.0
    %2145 = vmatmul.mubr.f32.gmra.mxu0 %v1934
    %v2146 = vpop.f32.mrf.mxu0
    %v2147 = vadd.f32 %v149, %v2146
    %v2148 = vpop.f32.mrf.mxu0
    %v2149 = vadd.f32 %v153, %v2148
    %2150 = vmatprep.mubr.f32.mxu0 0.0
    %2151 = vmatmul.mubr.f32.gmra.mxu0 %v1935
    %v2152 = vpop.f32.mrf.mxu0
    %v2153 = vadd.f32 %v149, %v2152
    %v2154 = vpop.f32.mrf.mxu0
    %v2155 = vadd.f32 %v153, %v2154
    %2156 = vmatprep.mubr.f32.mxu0 0.0
    %2157 = vmatmul.mubr.f32.gmra.mxu0 %v1936
    %v2158 = vpop.f32.mrf.mxu0
    %v2159 = vadd.f32 %v149, %v2158
    %v2160 = vpop.f32.mrf.mxu0
    %v2161 = vadd.f32 %v153, %v2160
    %2162 = vdwg.mxu0
    %2163 = vmatprep.subr.mxu0 %v445
    %2164 = vmatpush1.msra.mxu0 %v444
    %2165 = vmatprep.subr.mxu0 %v441
    %2166 = vmatpush1.msra.mxu0 %v440
    %2167 = vmatprep.subr.mxu0 %v437
    %2168 = vmatpush1.msra.mxu0 %v436
    %2169 = vmatprep.subr.mxu0 %v433
    %2170 = vmatpush1.msra.mxu0 %v432
    %2171 = vmatprep.subr.mxu0 %v429
    %2172 = vmatpush1.msra.mxu0 %v428
    %2173 = vmatprep.subr.mxu0 %v425
    %2174 = vmatpush1.msra.mxu0 %v424
    %2175 = vmatprep.subr.mxu0 %v421
    %2176 = vmatpush1.msra.mxu0 %v420
    %2177 = vmatprep.subr.mxu0 %v417
    %2178 = vmatpush1.msra.mxu0 %v416
    %2179 = vmatprep.subr.mxu0 %v413
    %2180 = vmatpush1.msra.mxu0 %v412
    %2181 = vmatprep.subr.mxu0 %v409
    %2182 = vmatpush1.msra.mxu0 %v408
    %2183 = vmatprep.subr.mxu0 %v405
    %2184 = vmatpush1.msra.mxu0 %v404
    %2185 = vmatprep.subr.mxu0 %v401
    %2186 = vmatpush1.msra.mxu0 %v400
    %2187 = vmatprep.subr.mxu0 %v397
    %2188 = vmatpush1.msra.mxu0 %v396
    %2189 = vmatprep.subr.mxu0 %v393
    %2190 = vmatpush1.msra.mxu0 %v392
    %2191 = vmatprep.subr.mxu0 %v389
    %2192 = vmatpush1.msra.mxu0 %v388
    %2193 = vmatprep.subr.mxu0 %v385
    %2194 = vmatpush1.msra.mxu0 %v384
    %2195 = vmatprep.subr.mxu0 0.0
    %2196 = vmatpush2.msra.mxu0 0.0
    %2197 = vmatprep.subr.mxu0 0.0
    %2198 = vmatpush2.msra.mxu0 0.0
    %2199 = vmatprep.subr.mxu0 0.0
    %2200 = vmatpush2.msra.mxu0 0.0
    %2201 = vmatprep.subr.mxu0 0.0
    %2202 = vmatpush2.msra.mxu0 0.0
    %2203 = vmatprep.subr.mxu0 0.0
    %2204 = vmatpush2.msra.mxu0 0.0
    %2205 = vmatprep.subr.mxu0 0.0
    %2206 = vmatpush2.msra.mxu0 0.0
    %2207 = vmatprep.subr.mxu0 0.0
    %2208 = vmatpush2.msra.mxu0 0.0
    %2209 = vmatprep.subr.mxu0 0.0
    %2210 = vmatpush2.msra.mxu0 0.0
    %2211 = vmatprep.subr.mxu0 0.0
    %2212 = vmatpush2.msra.mxu0 0.0
    %2213 = vmatprep.subr.mxu0 0.0
    %2214 = vmatpush2.msra.mxu0 0.0
    %2215 = vmatprep.subr.mxu0 0.0
    %2216 = vmatpush2.msra.mxu0 0.0
    %2217 = vmatprep.subr.mxu0 0.0
    %2218 = vmatpush2.msra.mxu0 0.0
    %2219 = vmatprep.subr.mxu0 0.0
    %2220 = vmatpush2.msra.mxu0 0.0
    %2221 = vmatprep.subr.mxu0 0.0
    %2222 = vmatpush2.msra.mxu0 0.0
    %2223 = vmatprep.subr.mxu0 0.0
    %2224 = vmatpush2.msra.mxu0 0.0
    %2225 = vmatprep.subr.mxu0 0.0
    %2226 = vmatpush2.msra.mxu0 0.0
    %2227 = vmatprep.mubr.f32.mxu0 0.0
    %2228 = vmatmul.mubr.f32.gmra.mxu0 %v1759
    %v2229 = vpop.f32.mrf.mxu0
    %v2230 = vadd.f32 0.0, %v2229
    %v2231 = vpop.f32.mrf.mxu0
    %v2232 = vadd.f32 0.0, %v2231
    %2233 = vdwg.mxu0
    %2234 = vmatprep.subr.mxu0 %v447
    %2235 = vmatpush1.msra.mxu0 %v446
    %2236 = vmatprep.subr.mxu0 %v443
    %2237 = vmatpush1.msra.mxu0 %v442
    %2238 = vmatprep.subr.mxu0 %v439
    %2239 = vmatpush1.msra.mxu0 %v438
    %2240 = vmatprep.subr.mxu0 %v435
    %2241 = vmatpush1.msra.mxu0 %v434
    %2242 = vmatprep.subr.mxu0 %v431
    %2243 = vmatpush1.msra.mxu0 %v430
    %2244 = vmatprep.subr.mxu0 %v427
    %2245 = vmatpush1.msra.mxu0 %v426
    %2246 = vmatprep.subr.mxu0 %v423
    %2247 = vmatpush1.msra.mxu0 %v422
    %2248 = vmatprep.subr.mxu0 %v419
    %2249 = vmatpush1.msra.mxu0 %v418
    %2250 = vmatprep.subr.mxu0 %v415
    %2251 = vmatpush1.msra.mxu0 %v414
    %2252 = vmatprep.subr.mxu0 %v411
    %2253 = vmatpush1.msra.mxu0 %v410
    %2254 = vmatprep.subr.mxu0 %v407
    %2255 = vmatpush1.msra.mxu0 %v406
    %2256 = vmatprep.subr.mxu0 %v403
    %2257 = vmatpush1.msra.mxu0 %v402
    %2258 = vmatprep.subr.mxu0 %v399
    %2259 = vmatpush1.msra.mxu0 %v398
    %2260 = vmatprep.subr.mxu0 %v395
    %2261 = vmatpush1.msra.mxu0 %v394
    %2262 = vmatprep.subr.mxu0 %v391
    %2263 = vmatpush1.msra.mxu0 %v390
    %2264 = vmatprep.subr.mxu0 %v387
    %2265 = vmatpush1.msra.mxu0 %v386
    %2266 = vmatprep.subr.mxu0 0.0
    %2267 = vmatpush2.msra.mxu0 0.0
    %2268 = vmatprep.subr.mxu0 0.0
    %2269 = vmatpush2.msra.mxu0 0.0
    %2270 = vmatprep.subr.mxu0 0.0
    %2271 = vmatpush2.msra.mxu0 0.0
    %2272 = vmatprep.subr.mxu0 0.0
    %2273 = vmatpush2.msra.mxu0 0.0
    %2274 = vmatprep.subr.mxu0 0.0
    %2275 = vmatpush2.msra.mxu0 0.0
    %2276 = vmatprep.subr.mxu0 0.0
    %2277 = vmatpush2.msra.mxu0 0.0
    %2278 = vmatprep.subr.mxu0 0.0
    %2279 = vmatpush2.msra.mxu0 0.0
    %2280 = vmatprep.subr.mxu0 0.0
    %2281 = vmatpush2.msra.mxu0 0.0
    %2282 = vmatprep.subr.mxu0 0.0
    %2283 = vmatpush2.msra.mxu0 0.0
    %2284 = vmatprep.subr.mxu0 0.0
    %2285 = vmatpush2.msra.mxu0 0.0
    %2286 = vmatprep.subr.mxu0 0.0
    %2287 = vmatpush2.msra.mxu0 0.0
    %2288 = vmatprep.subr.mxu0 0.0
    %2289 = vmatpush2.msra.mxu0 0.0
    %2290 = vmatprep.subr.mxu0 0.0
    %2291 = vmatpush2.msra.mxu0 0.0
    %2292 = vmatprep.subr.mxu0 0.0
    %2293 = vmatpush2.msra.mxu0 0.0
    %2294 = vmatprep.subr.mxu0 0.0
    %2295 = vmatpush2.msra.mxu0 0.0
    %2296 = vmatprep.subr.mxu0 0.0
    %2297 = vmatpush2.msra.mxu0 0.0
    %2298 = vmatprep.mubr.f32.mxu0 0.0
    %2299 = vmatmul.mubr.f32.gmra.mxu0 %v1759
    %v2300 = vpop.f32.mrf.mxu0
    %v2301 = vadd.f32 0.0, %v2300
    %v2302 = vpop.f32.mrf.mxu0
    %v2303 = vadd.f32 0.0, %v2302
    %2304 = vdwg.mxu0
    %v2305 = vadd.f32 %v2004, %v2230
    %v2306 = vadd.f32 %v2006, %v2232
    %v2307 = vadd.f32 %v2117, %v2301
    %v2308 = vadd.f32 %v2119, %v2303
    %v2309 = vmul.f32 %v2305, 0.5
    %v2310 = vmul.f32 %v2306, 0.5
    %v2311 = vmul.f32 %v2307, 0.5
    %v2312 = vtanh.pop %v2309
    %v2313 = vtanh.pop %v2310
    %v2314 = vtanh.pop %v2311
    %v2315 = vmul.f32 %v2312, 0.5
    %v2316 = vmul.f32 %v2313, 0.5
    %v2317 = vmul.f32 %v2314, 0.5
    %v2318 = vadd.f32 %v2315, 0.5
    %v2319 = vadd.f32 %v2316, 0.5
    %v2320 = vadd.f32 %v2317, 0.5
    %v2321 = vmul.f32 %v2319, %v1757
    %v2322 = vtanh.pop %v2308
    %v2323 = vmul.f32 %v2318, %v2322
    %v2324 = vadd.f32 %v2321, %v2323
    %v2325 = vtanh.pop %v2324
    %v2326 = vmul.f32 %v2320, %v2325
    %2327 = vmatprep.subr.mxu0 %v445
    %2328 = vmatpush1.msra.mxu0 %v444
    %2329 = vmatprep.subr.mxu0 %v441
    %2330 = vmatpush1.msra.mxu0 %v440
    %2331 = vmatprep.subr.mxu0 %v437
    %2332 = vmatpush1.msra.mxu0 %v436
    %2333 = vmatprep.subr.mxu0 %v433
    %2334 = vmatpush1.msra.mxu0 %v432
    %2335 = vmatprep.subr.mxu0 %v429
    %2336 = vmatpush1.msra.mxu0 %v428
    %2337 = vmatprep.subr.mxu0 %v425
    %2338 = vmatpush1.msra.mxu0 %v424
    %2339 = vmatprep.subr.mxu0 %v421
    %2340 = vmatpush1.msra.mxu0 %v420
    %2341 = vmatprep.subr.mxu0 %v417
    %2342 = vmatpush1.msra.mxu0 %v416
    %2343 = vmatprep.subr.mxu0 %v413
    %2344 = vmatpush1.msra.mxu0 %v412
    %2345 = vmatprep.subr.mxu0 %v409
    %2346 = vmatpush1.msra.mxu0 %v408
    %2347 = vmatprep.subr.mxu0 %v405
    %2348 = vmatpush1.msra.mxu0 %v404
    %2349 = vmatprep.subr.mxu0 %v401
    %2350 = vmatpush1.msra.mxu0 %v400
    %2351 = vmatprep.subr.mxu0 %v397
    %2352 = vmatpush1.msra.mxu0 %v396
    %2353 = vmatprep.subr.mxu0 %v393
    %2354 = vmatpush1.msra.mxu0 %v392
    %2355 = vmatprep.subr.mxu0 %v389
    %2356 = vmatpush1.msra.mxu0 %v388
    %2357 = vmatprep.subr.mxu0 %v385
    %2358 = vmatpush1.msra.mxu0 %v384
    %2359 = vmatprep.subr.mxu0 0.0
    %2360 = vmatpush2.msra.mxu0 0.0
    %2361 = vmatprep.subr.mxu0 0.0
    %2362 = vmatpush2.msra.mxu0 0.0
    %2363 = vmatprep.subr.mxu0 0.0
    %2364 = vmatpush2.msra.mxu0 0.0
    %2365 = vmatprep.subr.mxu0 0.0
    %2366 = vmatpush2.msra.mxu0 0.0
    %2367 = vmatprep.subr.mxu0 0.0
    %2368 = vmatpush2.msra.mxu0 0.0
    %2369 = vmatprep.subr.mxu0 0.0
    %2370 = vmatpush2.msra.mxu0 0.0
    %2371 = vmatprep.subr.mxu0 0.0
    %2372 = vmatpush2.msra.mxu0 0.0
    %2373 = vmatprep.subr.mxu0 0.0
    %2374 = vmatpush2.msra.mxu0 0.0
    %2375 = vmatprep.subr.mxu0 0.0
    %2376 = vmatpush2.msra.mxu0 0.0
    %2377 = vmatprep.subr.mxu0 0.0
    %2378 = vmatpush2.msra.mxu0 0.0
    %2379 = vmatprep.subr.mxu0 0.0
    %2380 = vmatpush2.msra.mxu0 0.0
    %2381 = vmatprep.subr.mxu0 0.0
    %2382 = vmatpush2.msra.mxu0 0.0
    %2383 = vmatprep.subr.mxu0 0.0
    %2384 = vmatpush2.msra.mxu0 0.0
    %2385 = vmatprep.subr.mxu0 0.0
    %2386 = vmatpush2.msra.mxu0 0.0
    %2387 = vmatprep.subr.mxu0 0.0
    %2388 = vmatpush2.msra.mxu0 0.0
    %2389 = vmatprep.subr.mxu0 0.0
    %2390 = vmatpush2.msra.mxu0 0.0
    %2391 = vmatprep.mubr.f32.mxu0 0.0
    %2392 = vmatmul.mubr.f32.gmra.mxu0 %v2326
    %v2393 = vpop.f32.mrf.mxu0
    %v2394 = vadd.f32 0.0, %v2393
    %v2395 = vpop.f32.mrf.mxu0
    %v2396 = vadd.f32 0.0, %v2395
    %2397 = vdwg.mxu0
    %2398 = vmatprep.subr.mxu0 %v447
    %2399 = vmatpush1.msra.mxu0 %v446
    %2400 = vmatprep.subr.mxu0 %v443
    %2401 = vmatpush1.msra.mxu0 %v442
    %2402 = vmatprep.subr.mxu0 %v439
    %2403 = vmatpush1.msra.mxu0 %v438
    %2404 = vmatprep.subr.mxu0 %v435
    %2405 = vmatpush1.msra.mxu0 %v434
    %2406 = vmatprep.subr.mxu0 %v431
    %2407 = vmatpush1.msra.mxu0 %v430
    %2408 = vmatprep.subr.mxu0 %v427
    %2409 = vmatpush1.msra.mxu0 %v426
    %2410 = vmatprep.subr.mxu0 %v423
    %2411 = vmatpush1.msra.mxu0 %v422
    %2412 = vmatprep.subr.mxu0 %v419
    %2413 = vmatpush1.msra.mxu0 %v418
    %2414 = vmatprep.subr.mxu0 %v415
    %2415 = vmatpush1.msra.mxu0 %v414
    %2416 = vmatprep.subr.mxu0 %v411
    %2417 = vmatpush1.msra.mxu0 %v410
    %2418 = vmatprep.subr.mxu0 %v407
    %2419 = vmatpush1.msra.mxu0 %v406
    %2420 = vmatprep.subr.mxu0 %v403
    %2421 = vmatpush1.msra.mxu0 %v402
    %2422 = vmatprep.subr.mxu0 %v399
    %2423 = vmatpush1.msra.mxu0 %v398
    %2424 = vmatprep.subr.mxu0 %v395
    %2425 = vmatpush1.msra.mxu0 %v394
    %2426 = vmatprep.subr.mxu0 %v391
    %2427 = vmatpush1.msra.mxu0 %v390
    %2428 = vmatprep.subr.mxu0 %v387
    %2429 = vmatpush1.msra.mxu0 %v386
    %2430 = vmatprep.subr.mxu0 0.0
    %2431 = vmatpush2.msra.mxu0 0.0
    %2432 = vmatprep.subr.mxu0 0.0
    %2433 = vmatpush2.msra.mxu0 0.0
    %2434 = vmatprep.subr.mxu0 0.0
    %2435 = vmatpush2.msra.mxu0 0.0
    %2436 = vmatprep.subr.mxu0 0.0
    %2437 = vmatpush2.msra.mxu0 0.0
    %2438 = vmatprep.subr.mxu0 0.0
    %2439 = vmatpush2.msra.mxu0 0.0
    %2440 = vmatprep.subr.mxu0 0.0
    %2441 = vmatpush2.msra.mxu0 0.0
    %2442 = vmatprep.subr.mxu0 0.0
    %2443 = vmatpush2.msra.mxu0 0.0
    %2444 = vmatprep.subr.mxu0 0.0
    %2445 = vmatpush2.msra.mxu0 0.0
    %2446 = vmatprep.subr.mxu0 0.0
    %2447 = vmatpush2.msra.mxu0 0.0
    %2448 = vmatprep.subr.mxu0 0.0
    %2449 = vmatpush2.msra.mxu0 0.0
    %2450 = vmatprep.subr.mxu0 0.0
    %2451 = vmatpush2.msra.mxu0 0.0
    %2452 = vmatprep.subr.mxu0 0.0
    %2453 = vmatpush2.msra.mxu0 0.0
    %2454 = vmatprep.subr.mxu0 0.0
    %2455 = vmatpush2.msra.mxu0 0.0
    %2456 = vmatprep.subr.mxu0 0.0
    %2457 = vmatpush2.msra.mxu0 0.0
    %2458 = vmatprep.subr.mxu0 0.0
    %2459 = vmatpush2.msra.mxu0 0.0
    %2460 = vmatprep.subr.mxu0 0.0
    %2461 = vmatpush2.msra.mxu0 0.0
    %2462 = vmatprep.mubr.f32.mxu0 0.0
    %2463 = vmatmul.mubr.f32.gmra.mxu0 %v2326
    %v2464 = vpop.f32.mrf.mxu0
    %v2465 = vadd.f32 0.0, %v2464
    %v2466 = vpop.f32.mrf.mxu0
    %v2467 = vadd.f32 0.0, %v2466
    %2468 = vdwg.mxu0
    %v2469 = vadd.f32 %v2010, %v2394
    %v2470 = vadd.f32 %v2012, %v2396
    %v2471 = vadd.f32 %v2123, %v2465
    %v2472 = vadd.f32 %v2125, %v2467
    %v2473 = vmul.f32 %v2469, 0.5
    %v2474 = vmul.f32 %v2470, 0.5
    %v2475 = vmul.f32 %v2471, 0.5
    %v2476 = vtanh.pop %v2473
    %v2477 = vtanh.pop %v2474
    %v2478 = vtanh.pop %v2475
    %v2479 = vmul.f32 %v2476, 0.5
    %v2480 = vmul.f32 %v2477, 0.5
    %v2481 = vmul.f32 %v2478, 0.5
    %v2482 = vadd.f32 %v2479, 0.5
    %v2483 = vadd.f32 %v2480, 0.5
    %v2484 = vadd.f32 %v2481, 0.5
    %v2485 = vmul.f32 %v2483, %v2324
    %v2486 = vtanh.pop %v2472
    %v2487 = vmul.f32 %v2482, %v2486
    %v2488 = vadd.f32 %v2485, %v2487
    %v2489 = vtanh.pop %v2488
    %v2490 = vmul.f32 %v2484, %v2489
    %2491 = vmatprep.subr.mxu0 %v445
    %2492 = vmatpush1.msra.mxu0 %v444
    %2493 = vmatprep.subr.mxu0 %v441
    %2494 = vmatpush1.msra.mxu0 %v440
    %2495 = vmatprep.subr.mxu0 %v437
    %2496 = vmatpush1.msra.mxu0 %v436
    %2497 = vmatprep.subr.mxu0 %v433
    %2498 = vmatpush1.msra.mxu0 %v432
    %2499 = vmatprep.subr.mxu0 %v429
    %2500 = vmatpush1.msra.mxu0 %v428
    %2501 = vmatprep.subr.mxu0 %v425
    %2502 = vmatpush1.msra.mxu0 %v424
    %2503 = vmatprep.subr.mxu0 %v421
    %2504 = vmatpush1.msra.mxu0 %v420
    %2505 = vmatprep.subr.mxu0 %v417
    %2506 = vmatpush1.msra.mxu0 %v416
    %2507 = vmatprep.subr.mxu0 %v413
    %2508 = vmatpush1.msra.mxu0 %v412
    %2509 = vmatprep.subr.mxu0 %v409
    %2510 = vmatpush1.msra.mxu0 %v408
    %2511 = vmatprep.subr.mxu0 %v405
    %2512 = vmatpush1.msra.mxu0 %v404
    %2513 = vmatprep.subr.mxu0 %v401
    %2514 = vmatpush1.msra.mxu0 %v400
    %2515 = vmatprep.subr.mxu0 %v397
    %2516 = vmatpush1.msra.mxu0 %v396
    %2517 = vmatprep.subr.mxu0 %v393
    %2518 = vmatpush1.msra.mxu0 %v392
    %2519 = vmatprep.subr.mxu0 %v389
    %2520 = vmatpush1.msra.mxu0 %v388
    %2521 = vmatprep.subr.mxu0 %v385
    %2522 = vmatpush1.msra.mxu0 %v384
    %2523 = vmatprep.subr.mxu0 0.0
    %2524 = vmatpush2.msra.mxu0 0.0
    %2525 = vmatprep.subr.mxu0 0.0
    %2526 = vmatpush2.msra.mxu0 0.0
    %2527 = vmatprep.subr.mxu0 0.0
    %2528 = vmatpush2.msra.mxu0 0.0
    %2529 = vmatprep.subr.mxu0 0.0
    %2530 = vmatpush2.msra.mxu0 0.0
    %2531 = vmatprep.subr.mxu0 0.0
    %2532 = vmatpush2.msra.mxu0 0.0
    %2533 = vmatprep.subr.mxu0 0.0
    %2534 = vmatpush2.msra.mxu0 0.0
    %2535 = vmatprep.subr.mxu0 0.0
    %2536 = vmatpush2.msra.mxu0 0.0
    %2537 = vmatprep.subr.mxu0 0.0
    %2538 = vmatpush2.msra.mxu0 0.0
    %2539 = vmatprep.subr.mxu0 0.0
    %2540 = vmatpush2.msra.mxu0 0.0
    %2541 = vmatprep.subr.mxu0 0.0
    %2542 = vmatpush2.msra.mxu0 0.0
    %2543 = vmatprep.subr.mxu0 0.0
    %2544 = vmatpush2.msra.mxu0 0.0
    %2545 = vmatprep.subr.mxu0 0.0
    %2546 = vmatpush2.msra.mxu0 0.0
    %2547 = vmatprep.subr.mxu0 0.0
    %2548 = vmatpush2.msra.mxu0 0.0
    %2549 = vmatprep.subr.mxu0 0.0
    %2550 = vmatpush2.msra.mxu0 0.0
    %2551 = vmatprep.subr.mxu0 0.0
    %2552 = vmatpush2.msra.mxu0 0.0
    %2553 = vmatprep.subr.mxu0 0.0
    %2554 = vmatpush2.msra.mxu0 0.0
    %2555 = vmatprep.mubr.f32.mxu0 0.0
    %2556 = vmatmul.mubr.f32.gmra.mxu0 %v2490
    %v2557 = vpop.f32.mrf.mxu0
    %v2558 = vadd.f32 0.0, %v2557
    %v2559 = vpop.f32.mrf.mxu0
    %v2560 = vadd.f32 0.0, %v2559
    %2561 = vdwg.mxu0
    %2562 = vmatprep.subr.mxu0 %v447
    %2563 = vmatpush1.msra.mxu0 %v446
    %2564 = vmatprep.subr.mxu0 %v443
    %2565 = vmatpush1.msra.mxu0 %v442
    %2566 = vmatprep.subr.mxu0 %v439
    %2567 = vmatpush1.msra.mxu0 %v438
    %2568 = vmatprep.subr.mxu0 %v435
    %2569 = vmatpush1.msra.mxu0 %v434
    %2570 = vmatprep.subr.mxu0 %v431
    %2571 = vmatpush1.msra.mxu0 %v430
    %2572 = vmatprep.subr.mxu0 %v427
    %2573 = vmatpush1.msra.mxu0 %v426
    %2574 = vmatprep.subr.mxu0 %v423
    %2575 = vmatpush1.msra.mxu0 %v422
    %2576 = vmatprep.subr.mxu0 %v419
    %2577 = vmatpush1.msra.mxu0 %v418
    %2578 = vmatprep.subr.mxu0 %v415
    %2579 = vmatpush1.msra.mxu0 %v414
    %2580 = vmatprep.subr.mxu0 %v411
    %2581 = vmatpush1.msra.mxu0 %v410
    %2582 = vmatprep.subr.mxu0 %v407
    %2583 = vmatpush1.msra.mxu0 %v406
    %2584 = vmatprep.subr.mxu0 %v403
    %2585 = vmatpush1.msra.mxu0 %v402
    %2586 = vmatprep.subr.mxu0 %v399
    %2587 = vmatpush1.msra.mxu0 %v398
    %2588 = vmatprep.subr.mxu0 %v395
    %2589 = vmatpush1.msra.mxu0 %v394
    %2590 = vmatprep.subr.mxu0 %v391
    %2591 = vmatpush1.msra.mxu0 %v390
    %2592 = vmatprep.subr.mxu0 %v387
    %2593 = vmatpush1.msra.mxu0 %v386
    %2594 = vmatprep.subr.mxu0 0.0
    %2595 = vmatpush2.msra.mxu0 0.0
    %2596 = vmatprep.subr.mxu0 0.0
    %2597 = vmatpush2.msra.mxu0 0.0
    %2598 = vmatprep.subr.mxu0 0.0
    %2599 = vmatpush2.msra.mxu0 0.0
    %2600 = vmatprep.subr.mxu0 0.0
    %2601 = vmatpush2.msra.mxu0 0.0
    %2602 = vmatprep.subr.mxu0 0.0
    %2603 = vmatpush2.msra.mxu0 0.0
    %2604 = vmatprep.subr.mxu0 0.0
    %2605 = vmatpush2.msra.mxu0 0.0
    %2606 = vmatprep.subr.mxu0 0.0
    %2607 = vmatpush2.msra.mxu0 0.0
    %2608 = vmatprep.subr.mxu0 0.0
    %2609 = vmatpush2.msra.mxu0 0.0
    %2610 = vmatprep.subr.mxu0 0.0
    %2611 = vmatpush2.msra.mxu0 0.0
    %2612 = vmatprep.subr.mxu0 0.0
    %2613 = vmatpush2.msra.mxu0 0.0
    %2614 = vmatprep.subr.mxu0 0.0
    %2615 = vmatpush2.msra.mxu0 0.0
    %2616 = vmatprep.subr.mxu0 0.0
    %2617 = vmatpush2.msra.mxu0 0.0
    %2618 = vmatprep.subr.mxu0 0.0
    %2619 = vmatpush2.msra.mxu0 0.0
    %2620 = vmatprep.subr.mxu0 0.0
    %2621 = vmatpush2.msra.mxu0 0.0
    %2622 = vmatprep.subr.mxu0 0.0
    %2623 = vmatpush2.msra.mxu0 0.0
    %2624 = vmatprep.subr.mxu0 0.0
    %2625 = vmatpush2.msra.mxu0 0.0
    %2626 = vmatprep.mubr.f32.mxu0 0.0
    %2627 = vmatmul.mubr.f32.gmra.mxu0 %v2490
    %v2628 = vpop.f32.mrf.mxu0
    %v2629 = vadd.f32 0.0, %v2628
    %v2630 = vpop.f32.mrf.mxu0
    %v2631 = vadd.f32 0.0, %v2630
    %2632 = vdwg.mxu0
    %v2633 = vadd.f32 %v2016, %v2558
    %v2634 = vadd.f32 %v2018, %v2560
    %v2635 = vadd.f32 %v2129, %v2629
    %v2636 = vadd.f32 %v2131, %v2631
    %v2637 = vmul.f32 %v2633, 0.5
    %v2638 = vmul.f32 %v2634, 0.5
    %v2639 = vmul.f32 %v2635, 0.5
    %v2640 = vtanh.pop %v2637
    %v2641 = vtanh.pop %v2638
    %v2642 = vtanh.pop %v2639
    %v2643 = vmul.f32 %v2640, 0.5
    %v2644 = vmul.f32 %v2641, 0.5
    %v2645 = vmul.f32 %v2642, 0.5
    %v2646 = vadd.f32 %v2643, 0.5
    %v2647 = vadd.f32 %v2644, 0.5
    %v2648 = vadd.f32 %v2645, 0.5
    %v2649 = vmul.f32 %v2647, %v2488
    %v2650 = vtanh.pop %v2636
    %v2651 = vmul.f32 %v2646, %v2650
    %v2652 = vadd.f32 %v2649, %v2651
    %v2653 = vtanh.pop %v2652
    %v2654 = vmul.f32 %v2648, %v2653
    %2655 = vmatprep.subr.mxu0 %v445
    %2656 = vmatpush1.msra.mxu0 %v444
    %2657 = vmatprep.subr.mxu0 %v441
    %2658 = vmatpush1.msra.mxu0 %v440
    %2659 = vmatprep.subr.mxu0 %v437
    %2660 = vmatpush1.msra.mxu0 %v436
    %2661 = vmatprep.subr.mxu0 %v433
    %2662 = vmatpush1.msra.mxu0 %v432
    %2663 = vmatprep.subr.mxu0 %v429
    %2664 = vmatpush1.msra.mxu0 %v428
    %2665 = vmatprep.subr.mxu0 %v425
    %2666 = vmatpush1.msra.mxu0 %v424
    %2667 = vmatprep.subr.mxu0 %v421
    %2668 = vmatpush1.msra.mxu0 %v420
    %2669 = vmatprep.subr.mxu0 %v417
    %2670 = vmatpush1.msra.mxu0 %v416
    %2671 = vmatprep.subr.mxu0 %v413
    %2672 = vmatpush1.msra.mxu0 %v412
    %2673 = vmatprep.subr.mxu0 %v409
    %2674 = vmatpush1.msra.mxu0 %v408
    %2675 = vmatprep.subr.mxu0 %v405
    %2676 = vmatpush1.msra.mxu0 %v404
    %2677 = vmatprep.subr.mxu0 %v401
    %2678 = vmatpush1.msra.mxu0 %v400
    %2679 = vmatprep.subr.mxu0 %v397
    %2680 = vmatpush1.msra.mxu0 %v396
    %2681 = vmatprep.subr.mxu0 %v393
    %2682 = vmatpush1.msra.mxu0 %v392
    %2683 = vmatprep.subr.mxu0 %v389
    %2684 = vmatpush1.msra.mxu0 %v388
    %2685 = vmatprep.subr.mxu0 %v385
    %2686 = vmatpush1.msra.mxu0 %v384
    %2687 = vmatprep.subr.mxu0 0.0
    %2688 = vmatpush2.msra.mxu0 0.0
    %2689 = vmatprep.subr.mxu0 0.0
    %2690 = vmatpush2.msra.mxu0 0.0
    %2691 = vmatprep.subr.mxu0 0.0
    %2692 = vmatpush2.msra.mxu0 0.0
    %2693 = vmatprep.subr.mxu0 0.0
    %2694 = vmatpush2.msra.mxu0 0.0
    %2695 = vmatprep.subr.mxu0 0.0
    %2696 = vmatpush2.msra.mxu0 0.0
    %2697 = vmatprep.subr.mxu0 0.0
    %2698 = vmatpush2.msra.mxu0 0.0
    %2699 = vmatprep.subr.mxu0 0.0
    %2700 = vmatpush2.msra.mxu0 0.0
    %2701 = vmatprep.subr.mxu0 0.0
    %2702 = vmatpush2.msra.mxu0 0.0
    %2703 = vmatprep.subr.mxu0 0.0
    %2704 = vmatpush2.msra.mxu0 0.0
    %2705 = vmatprep.subr.mxu0 0.0
    %2706 = vmatpush2.msra.mxu0 0.0
    %2707 = vmatprep.subr.mxu0 0.0
    %2708 = vmatpush2.msra.mxu0 0.0
    %2709 = vmatprep.subr.mxu0 0.0
    %2710 = vmatpush2.msra.mxu0 0.0
    %2711 = vmatprep.subr.mxu0 0.0
    %2712 = vmatpush2.msra.mxu0 0.0
    %2713 = vmatprep.subr.mxu0 0.0
    %2714 = vmatpush2.msra.mxu0 0.0
    %2715 = vmatprep.subr.mxu0 0.0
    %2716 = vmatpush2.msra.mxu0 0.0
    %2717 = vmatprep.subr.mxu0 0.0
    %2718 = vmatpush2.msra.mxu0 0.0
    %2719 = vmatprep.mubr.f32.mxu0 0.0
    %2720 = vmatmul.mubr.f32.gmra.mxu0 %v2654
    %v2721 = vpop.f32.mrf.mxu0
    %v2722 = vadd.f32 0.0, %v2721
    %v2723 = vpop.f32.mrf.mxu0
    %v2724 = vadd.f32 0.0, %v2723
    %2725 = vdwg.mxu0
    %2726 = vmatprep.subr.mxu0 %v447
    %2727 = vmatpush1.msra.mxu0 %v446
    %2728 = vmatprep.subr.mxu0 %v443
    %2729 = vmatpush1.msra.mxu0 %v442
    %2730 = vmatprep.subr.mxu0 %v439
    %2731 = vmatpush1.msra.mxu0 %v438
    %2732 = vmatprep.subr.mxu0 %v435
    %2733 = vmatpush1.msra.mxu0 %v434
    %2734 = vmatprep.subr.mxu0 %v431
    %2735 = vmatpush1.msra.mxu0 %v430
    %2736 = vmatprep.subr.mxu0 %v427
    %2737 = vmatpush1.msra.mxu0 %v426
    %2738 = vmatprep.subr.mxu0 %v423
    %2739 = vmatpush1.msra.mxu0 %v422
    %2740 = vmatprep.subr.mxu0 %v419
    %2741 = vmatpush1.msra.mxu0 %v418
    %2742 = vmatprep.subr.mxu0 %v415
    %2743 = vmatpush1.msra.mxu0 %v414
    %2744 = vmatprep.subr.mxu0 %v411
    %2745 = vmatpush1.msra.mxu0 %v410
    %2746 = vmatprep.subr.mxu0 %v407
    %2747 = vmatpush1.msra.mxu0 %v406
    %2748 = vmatprep.subr.mxu0 %v403
    %2749 = vmatpush1.msra.mxu0 %v402
    %2750 = vmatprep.subr.mxu0 %v399
    %2751 = vmatpush1.msra.mxu0 %v398
    %2752 = vmatprep.subr.mxu0 %v395
    %2753 = vmatpush1.msra.mxu0 %v394
    %2754 = vmatprep.subr.mxu0 %v391
    %2755 = vmatpush1.msra.mxu0 %v390
    %2756 = vmatprep.subr.mxu0 %v387
    %2757 = vmatpush1.msra.mxu0 %v386
    %2758 = vmatprep.subr.mxu0 0.0
    %2759 = vmatpush2.msra.mxu0 0.0
    %2760 = vmatprep.subr.mxu0 0.0
    %2761 = vmatpush2.msra.mxu0 0.0
    %2762 = vmatprep.subr.mxu0 0.0
    %2763 = vmatpush2.msra.mxu0 0.0
    %2764 = vmatprep.subr.mxu0 0.0
    %2765 = vmatpush2.msra.mxu0 0.0
    %2766 = vmatprep.subr.mxu0 0.0
    %2767 = vmatpush2.msra.mxu0 0.0
    %2768 = vmatprep.subr.mxu0 0.0
    %2769 = vmatpush2.msra.mxu0 0.0
    %2770 = vmatprep.subr.mxu0 0.0
    %2771 = vmatpush2.msra.mxu0 0.0
    %2772 = vmatprep.subr.mxu0 0.0
    %2773 = vmatpush2.msra.mxu0 0.0
    %2774 = vmatprep.subr.mxu0 0.0
    %2775 = vmatpush2.msra.mxu0 0.0
    %2776 = vmatprep.subr.mxu0 0.0
    %2777 = vmatpush2.msra.mxu0 0.0
    %2778 = vmatprep.subr.mxu0 0.0
    %2779 = vmatpush2.msra.mxu0 0.0
    %2780 = vmatprep.subr.mxu0 0.0
    %2781 = vmatpush2.msra.mxu0 0.0
    %2782 = vmatprep.subr.mxu0 0.0
    %2783 = vmatpush2.msra.mxu0 0.0
    %2784 = vmatprep.subr.mxu0 0.0
    %2785 = vmatpush2.msra.mxu0 0.0
    %2786 = vmatprep.subr.mxu0 0.0
    %2787 = vmatpush2.msra.mxu0 0.0
    %2788 = vmatprep.subr.mxu0 0.0
    %2789 = vmatpush2.msra.mxu0 0.0
    %2790 = vmatprep.mubr.f32.mxu0 0.0
    %2791 = vmatmul.mubr.f32.gmra.mxu0 %v2654
    %v2792 = vpop.f32.mrf.mxu0
    %v2793 = vadd.f32 0.0, %v2792
    %v2794 = vpop.f32.mrf.mxu0
    %v2795 = vadd.f32 0.0, %v2794
    %2796 = vdwg.mxu0
    %v2797 = vadd.f32 %v2022, %v2722
    %v2798 = vadd.f32 %v2024, %v2724
    %v2799 = vadd.f32 %v2135, %v2793
    %v2800 = vadd.f32 %v2137, %v2795
    %v2801 = vmul.f32 %v2797, 0.5
    %v2802 = vmul.f32 %v2798, 0.5
    %v2803 = vmul.f32 %v2799, 0.5
    %v2804 = vtanh.pop %v2801
    %v2805 = vtanh.pop %v2802
    %v2806 = vtanh.pop %v2803
    %v2807 = vmul.f32 %v2804, 0.5
    %v2808 = vmul.f32 %v2805, 0.5
    %v2809 = vmul.f32 %v2806, 0.5
    %v2810 = vadd.f32 %v2807, 0.5
    %v2811 = vadd.f32 %v2808, 0.5
    %v2812 = vadd.f32 %v2809, 0.5
    %v2813 = vmul.f32 %v2811, %v2652
    %v2814 = vtanh.pop %v2800
    %v2815 = vmul.f32 %v2810, %v2814
    %v2816 = vadd.f32 %v2813, %v2815
    %v2817 = vtanh.pop %v2816
    %v2818 = vmul.f32 %v2812, %v2817
    %2819 = vmatprep.subr.mxu0 %v445
    %2820 = vmatpush1.msra.mxu0 %v444
    %2821 = vmatprep.subr.mxu0 %v441
    %2822 = vmatpush1.msra.mxu0 %v440
    %2823 = vmatprep.subr.mxu0 %v437
    %2824 = vmatpush1.msra.mxu0 %v436
    %2825 = vmatprep.subr.mxu0 %v433
    %2826 = vmatpush1.msra.mxu0 %v432
    %2827 = vmatprep.subr.mxu0 %v429
    %2828 = vmatpush1.msra.mxu0 %v428
    %2829 = vmatprep.subr.mxu0 %v425
    %2830 = vmatpush1.msra.mxu0 %v424
    %2831 = vmatprep.subr.mxu0 %v421
    %2832 = vmatpush1.msra.mxu0 %v420
    %2833 = vmatprep.subr.mxu0 %v417
    %2834 = vmatpush1.msra.mxu0 %v416
    %2835 = vmatprep.subr.mxu0 %v413
    %2836 = vmatpush1.msra.mxu0 %v412
    %2837 = vmatprep.subr.mxu0 %v409
    %2838 = vmatpush1.msra.mxu0 %v408
    %2839 = vmatprep.subr.mxu0 %v405
    %2840 = vmatpush1.msra.mxu0 %v404
    %2841 = vmatprep.subr.mxu0 %v401
    %2842 = vmatpush1.msra.mxu0 %v400
    %2843 = vmatprep.subr.mxu0 %v397
    %2844 = vmatpush1.msra.mxu0 %v396
    %2845 = vmatprep.subr.mxu0 %v393
    %2846 = vmatpush1.msra.mxu0 %v392
    %2847 = vmatprep.subr.mxu0 %v389
    %2848 = vmatpush1.msra.mxu0 %v388
    %2849 = vmatprep.subr.mxu0 %v385
    %2850 = vmatpush1.msra.mxu0 %v384
    %2851 = vmatprep.subr.mxu0 0.0
    %2852 = vmatpush2.msra.mxu0 0.0
    %2853 = vmatprep.subr.mxu0 0.0
    %2854 = vmatpush2.msra.mxu0 0.0
    %2855 = vmatprep.subr.mxu0 0.0
    %2856 = vmatpush2.msra.mxu0 0.0
    %2857 = vmatprep.subr.mxu0 0.0
    %2858 = vmatpush2.msra.mxu0 0.0
    %2859 = vmatprep.subr.mxu0 0.0
    %2860 = vmatpush2.msra.mxu0 0.0
    %2861 = vmatprep.subr.mxu0 0.0
    %2862 = vmatpush2.msra.mxu0 0.0
    %2863 = vmatprep.subr.mxu0 0.0
    %2864 = vmatpush2.msra.mxu0 0.0
    %2865 = vmatprep.subr.mxu0 0.0
    %2866 = vmatpush2.msra.mxu0 0.0
    %2867 = vmatprep.subr.mxu0 0.0
    %2868 = vmatpush2.msra.mxu0 0.0
    %2869 = vmatprep.subr.mxu0 0.0
    %2870 = vmatpush2.msra.mxu0 0.0
    %2871 = vmatprep.subr.mxu0 0.0
    %2872 = vmatpush2.msra.mxu0 0.0
    %2873 = vmatprep.subr.mxu0 0.0
    %2874 = vmatpush2.msra.mxu0 0.0
    %2875 = vmatprep.subr.mxu0 0.0
    %2876 = vmatpush2.msra.mxu0 0.0
    %2877 = vmatprep.subr.mxu0 0.0
    %2878 = vmatpush2.msra.mxu0 0.0
    %2879 = vmatprep.subr.mxu0 0.0
    %2880 = vmatpush2.msra.mxu0 0.0
    %2881 = vmatprep.subr.mxu0 0.0
    %2882 = vmatpush2.msra.mxu0 0.0
    %2883 = vmatprep.mubr.f32.mxu0 0.0
    %2884 = vmatmul.mubr.f32.gmra.mxu0 %v2818
    %v2885 = vpop.f32.mrf.mxu0
    %v2886 = vadd.f32 0.0, %v2885
    %v2887 = vpop.f32.mrf.mxu0
    %v2888 = vadd.f32 0.0, %v2887
    %2889 = vdwg.mxu0
    %2890 = vmatprep.subr.mxu0 %v447
    %2891 = vmatpush1.msra.mxu0 %v446
    %2892 = vmatprep.subr.mxu0 %v443
    %2893 = vmatpush1.msra.mxu0 %v442
    %2894 = vmatprep.subr.mxu0 %v439
    %2895 = vmatpush1.msra.mxu0 %v438
    %2896 = vmatprep.subr.mxu0 %v435
    %2897 = vmatpush1.msra.mxu0 %v434
    %2898 = vmatprep.subr.mxu0 %v431
    %2899 = vmatpush1.msra.mxu0 %v430
    %2900 = vmatprep.subr.mxu0 %v427
    %2901 = vmatpush1.msra.mxu0 %v426
    %2902 = vmatprep.subr.mxu0 %v423
    %2903 = vmatpush1.msra.mxu0 %v422
    %2904 = vmatprep.subr.mxu0 %v419
    %2905 = vmatpush1.msra.mxu0 %v418
    %2906 = vmatprep.subr.mxu0 %v415
    %2907 = vmatpush1.msra.mxu0 %v414
    %2908 = vmatprep.subr.mxu0 %v411
    %2909 = vmatpush1.msra.mxu0 %v410
    %2910 = vmatprep.subr.mxu0 %v407
    %2911 = vmatpush1.msra.mxu0 %v406
    %2912 = vmatprep.subr.mxu0 %v403
    %2913 = vmatpush1.msra.mxu0 %v402
    %2914 = vmatprep.subr.mxu0 %v399
    %2915 = vmatpush1.msra.mxu0 %v398
    %2916 = vmatprep.subr.mxu0 %v395
    %2917 = vmatpush1.msra.mxu0 %v394
    %2918 = vmatprep.subr.mxu0 %v391
    %2919 = vmatpush1.msra.mxu0 %v390
    %2920 = vmatprep.subr.mxu0 %v387
    %2921 = vmatpush1.msra.mxu0 %v386
    %2922 = vmatprep.subr.mxu0 0.0
    %2923 = vmatpush2.msra.mxu0 0.0
    %2924 = vmatprep.subr.mxu0 0.0
    %2925 = vmatpush2.msra.mxu0 0.0
    %2926 = vmatprep.subr.mxu0 0.0
    %2927 = vmatpush2.msra.mxu0 0.0
    %2928 = vmatprep.subr.mxu0 0.0
    %2929 = vmatpush2.msra.mxu0 0.0
    %2930 = vmatprep.subr.mxu0 0.0
    %2931 = vmatpush2.msra.mxu0 0.0
    %2932 = vmatprep.subr.mxu0 0.0
    %2933 = vmatpush2.msra.mxu0 0.0
    %2934 = vmatprep.subr.mxu0 0.0
    %2935 = vmatpush2.msra.mxu0 0.0
    %2936 = vmatprep.subr.mxu0 0.0
    %2937 = vmatpush2.msra.mxu0 0.0
    %2938 = vmatprep.subr.mxu0 0.0
    %2939 = vmatpush2.msra.mxu0 0.0
    %2940 = vmatprep.subr.mxu0 0.0
    %2941 = vmatpush2.msra.mxu0 0.0
    %2942 = vmatprep.subr.mxu0 0.0
    %2943 = vmatpush2.msra.mxu0 0.0
    %2944 = vmatprep.subr.mxu0 0.0
    %2945 = vmatpush2.msra.mxu0 0.0
    %2946 = vmatprep.subr.mxu0 0.0
    %2947 = vmatpush2.msra.mxu0 0.0
    %2948 = vmatprep.subr.mxu0 0.0
    %2949 = vmatpush2.msra.mxu0 0.0
    %2950 = vmatprep.subr.mxu0 0.0
    %2951 = vmatpush2.msra.mxu0 0.0
    %2952 = vmatprep.subr.mxu0 0.0
    %2953 = vmatpush2.msra.mxu0 0.0
    %2954 = vmatprep.mubr.f32.mxu0 0.0
    %2955 = vmatmul.mubr.f32.gmra.mxu0 %v2818
    %v2956 = vpop.f32.mrf.mxu0
    %v2957 = vadd.f32 0.0, %v2956
    %v2958 = vpop.f32.mrf.mxu0
    %v2959 = vadd.f32 0.0, %v2958
    %2960 = vdwg.mxu0
    %v2961 = vadd.f32 %v2028, %v2886
    %v2962 = vadd.f32 %v2030, %v2888
    %v2963 = vadd.f32 %v2141, %v2957
    %v2964 = vadd.f32 %v2143, %v2959
    %v2965 = vmul.f32 %v2961, 0.5
    %v2966 = vmul.f32 %v2962, 0.5
    %v2967 = vmul.f32 %v2963, 0.5
    %v2968 = vtanh.pop %v2965
    %v2969 = vtanh.pop %v2966
    %v2970 = vtanh.pop %v2967
    %v2971 = vmul.f32 %v2968, 0.5
    %v2972 = vmul.f32 %v2969, 0.5
    %v2973 = vmul.f32 %v2970, 0.5
    %v2974 = vadd.f32 %v2971, 0.5
    %v2975 = vadd.f32 %v2972, 0.5
    %v2976 = vadd.f32 %v2973, 0.5
    %v2977 = vmul.f32 %v2975, %v2816
    %v2978 = vtanh.pop %v2964
    %v2979 = vmul.f32 %v2974, %v2978
    %v2980 = vadd.f32 %v2977, %v2979
    %v2981 = vtanh.pop %v2980
    %v2982 = vmul.f32 %v2976, %v2981
    %2983 = vmatprep.subr.mxu0 %v445
    %2984 = vmatpush1.msra.mxu0 %v444
    %2985 = vmatprep.subr.mxu0 %v441
    %2986 = vmatpush1.msra.mxu0 %v440
    %2987 = vmatprep.subr.mxu0 %v437
    %2988 = vmatpush1.msra.mxu0 %v436
    %2989 = vmatprep.subr.mxu0 %v433
    %2990 = vmatpush1.msra.mxu0 %v432
    %2991 = vmatprep.subr.mxu0 %v429
    %2992 = vmatpush1.msra.mxu0 %v428
    %2993 = vmatprep.subr.mxu0 %v425
    %2994 = vmatpush1.msra.mxu0 %v424
    %2995 = vmatprep.subr.mxu0 %v421
    %2996 = vmatpush1.msra.mxu0 %v420
    %2997 = vmatprep.subr.mxu0 %v417
    %2998 = vmatpush1.msra.mxu0 %v416
    %2999 = vmatprep.subr.mxu0 %v413
    %3000 = vmatpush1.msra.mxu0 %v412
    %3001 = vmatprep.subr.mxu0 %v409
    %3002 = vmatpush1.msra.mxu0 %v408
    %3003 = vmatprep.subr.mxu0 %v405
    %3004 = vmatpush1.msra.mxu0 %v404
    %3005 = vmatprep.subr.mxu0 %v401
    %3006 = vmatpush1.msra.mxu0 %v400
    %3007 = vmatprep.subr.mxu0 %v397
    %3008 = vmatpush1.msra.mxu0 %v396
    %3009 = vmatprep.subr.mxu0 %v393
    %3010 = vmatpush1.msra.mxu0 %v392
    %3011 = vmatprep.subr.mxu0 %v389
    %3012 = vmatpush1.msra.mxu0 %v388
    %3013 = vmatprep.subr.mxu0 %v385
    %3014 = vmatpush1.msra.mxu0 %v384
    %3015 = vmatprep.subr.mxu0 0.0
    %3016 = vmatpush2.msra.mxu0 0.0
    %3017 = vmatprep.subr.mxu0 0.0
    %3018 = vmatpush2.msra.mxu0 0.0
    %3019 = vmatprep.subr.mxu0 0.0
    %3020 = vmatpush2.msra.mxu0 0.0
    %3021 = vmatprep.subr.mxu0 0.0
    %3022 = vmatpush2.msra.mxu0 0.0
    %3023 = vmatprep.subr.mxu0 0.0
    %3024 = vmatpush2.msra.mxu0 0.0
    %3025 = vmatprep.subr.mxu0 0.0
    %3026 = vmatpush2.msra.mxu0 0.0
    %3027 = vmatprep.subr.mxu0 0.0
    %3028 = vmatpush2.msra.mxu0 0.0
    %3029 = vmatprep.subr.mxu0 0.0
    %3030 = vmatpush2.msra.mxu0 0.0
    %3031 = vmatprep.subr.mxu0 0.0
    %3032 = vmatpush2.msra.mxu0 0.0
    %3033 = vmatprep.subr.mxu0 0.0
    %3034 = vmatpush2.msra.mxu0 0.0
    %3035 = vmatprep.subr.mxu0 0.0
    %3036 = vmatpush2.msra.mxu0 0.0
    %3037 = vmatprep.subr.mxu0 0.0
    %3038 = vmatpush2.msra.mxu0 0.0
    %3039 = vmatprep.subr.mxu0 0.0
    %3040 = vmatpush2.msra.mxu0 0.0
    %3041 = vmatprep.subr.mxu0 0.0
    %3042 = vmatpush2.msra.mxu0 0.0
    %3043 = vmatprep.subr.mxu0 0.0
    %3044 = vmatpush2.msra.mxu0 0.0
    %3045 = vmatprep.subr.mxu0 0.0
    %3046 = vmatpush2.msra.mxu0 0.0
    %3047 = vmatprep.mubr.f32.mxu0 0.0
    %3048 = vmatmul.mubr.f32.gmra.mxu0 %v2982
    %v3049 = vpop.f32.mrf.mxu0
    %v3050 = vadd.f32 0.0, %v3049
    %v3051 = vpop.f32.mrf.mxu0
    %v3052 = vadd.f32 0.0, %v3051
    %3053 = vdwg.mxu0
    %3054 = vmatprep.subr.mxu0 %v447
    %3055 = vmatpush1.msra.mxu0 %v446
    %3056 = vmatprep.subr.mxu0 %v443
    %3057 = vmatpush1.msra.mxu0 %v442
    %3058 = vmatprep.subr.mxu0 %v439
    %3059 = vmatpush1.msra.mxu0 %v438
    %3060 = vmatprep.subr.mxu0 %v435
    %3061 = vmatpush1.msra.mxu0 %v434
    %3062 = vmatprep.subr.mxu0 %v431
    %3063 = vmatpush1.msra.mxu0 %v430
    %3064 = vmatprep.subr.mxu0 %v427
    %3065 = vmatpush1.msra.mxu0 %v426
    %3066 = vmatprep.subr.mxu0 %v423
    %3067 = vmatpush1.msra.mxu0 %v422
    %3068 = vmatprep.subr.mxu0 %v419
    %3069 = vmatpush1.msra.mxu0 %v418
    %3070 = vmatprep.subr.mxu0 %v415
    %3071 = vmatpush1.msra.mxu0 %v414
    %3072 = vmatprep.subr.mxu0 %v411
    %3073 = vmatpush1.msra.mxu0 %v410
    %3074 = vmatprep.subr.mxu0 %v407
    %3075 = vmatpush1.msra.mxu0 %v406
    %3076 = vmatprep.subr.mxu0 %v403
    %3077 = vmatpush1.msra.mxu0 %v402
    %3078 = vmatprep.subr.mxu0 %v399
    %3079 = vmatpush1.msra.mxu0 %v398
    %3080 = vmatprep.subr.mxu0 %v395
    %3081 = vmatpush1.msra.mxu0 %v394
    %3082 = vmatprep.subr.mxu0 %v391
    %3083 = vmatpush1.msra.mxu0 %v390
    %3084 = vmatprep.subr.mxu0 %v387
    %3085 = vmatpush1.msra.mxu0 %v386
    %3086 = vmatprep.subr.mxu0 0.0
    %3087 = vmatpush2.msra.mxu0 0.0
    %3088 = vmatprep.subr.mxu0 0.0
    %3089 = vmatpush2.msra.mxu0 0.0
    %3090 = vmatprep.subr.mxu0 0.0
    %3091 = vmatpush2.msra.mxu0 0.0
    %3092 = vmatprep.subr.mxu0 0.0
    %3093 = vmatpush2.msra.mxu0 0.0
    %3094 = vmatprep.subr.mxu0 0.0
    %3095 = vmatpush2.msra.mxu0 0.0
    %3096 = vmatprep.subr.mxu0 0.0
    %3097 = vmatpush2.msra.mxu0 0.0
    %3098 = vmatprep.subr.mxu0 0.0
    %3099 = vmatpush2.msra.mxu0 0.0
    %3100 = vmatprep.subr.mxu0 0.0
    %3101 = vmatpush2.msra.mxu0 0.0
    %3102 = vmatprep.subr.mxu0 0.0
    %3103 = vmatpush2.msra.mxu0 0.0
    %3104 = vmatprep.subr.mxu0 0.0
    %3105 = vmatpush2.msra.mxu0 0.0
    %3106 = vmatprep.subr.mxu0 0.0
    %3107 = vmatpush2.msra.mxu0 0.0
    %3108 = vmatprep.subr.mxu0 0.0
    %3109 = vmatpush2.msra.mxu0 0.0
    %3110 = vmatprep.subr.mxu0 0.0
    %3111 = vmatpush2.msra.mxu0 0.0
    %3112 = vmatprep.subr.mxu0 0.0
    %3113 = vmatpush2.msra.mxu0 0.0
    %3114 = vmatprep.subr.mxu0 0.0
    %3115 = vmatpush2.msra.mxu0 0.0
    %3116 = vmatprep.subr.mxu0 0.0
    %3117 = vmatpush2.msra.mxu0 0.0
    %3118 = vmatprep.mubr.f32.mxu0 0.0
    %3119 = vmatmul.mubr.f32.gmra.mxu0 %v2982
    %v3120 = vpop.f32.mrf.mxu0
    %v3121 = vadd.f32 0.0, %v3120
    %v3122 = vpop.f32.mrf.mxu0
    %v3123 = vadd.f32 0.0, %v3122
    %3124 = vdwg.mxu0
    %v3125 = vadd.f32 %v2034, %v3050
    %v3126 = vadd.f32 %v2036, %v3052
    %v3127 = vadd.f32 %v2147, %v3121
    %v3128 = vadd.f32 %v2149, %v3123
    %v3129 = vmul.f32 %v3125, 0.5
    %v3130 = vmul.f32 %v3126, 0.5
    %v3131 = vmul.f32 %v3127, 0.5
    %v3132 = vtanh.pop %v3129
    %v3133 = vtanh.pop %v3130
    %v3134 = vtanh.pop %v3131
    %v3135 = vmul.f32 %v3132, 0.5
    %v3136 = vmul.f32 %v3133, 0.5
    %v3137 = vmul.f32 %v3134, 0.5
    %v3138 = vadd.f32 %v3135, 0.5
    %v3139 = vadd.f32 %v3136, 0.5
    %v3140 = vadd.f32 %v3137, 0.5
    %v3141 = vmul.f32 %v3139, %v2980
    %v3142 = vtanh.pop %v3128
    %v3143 = vmul.f32 %v3138, %v3142
    %v3144 = vadd.f32 %v3141, %v3143
    %v3145 = vtanh.pop %v3144
    %v3146 = vmul.f32 %v3140, %v3145
    %3147 = vmatprep.subr.mxu0 %v445
    %3148 = vmatpush1.msra.mxu0 %v444
    %3149 = vmatprep.subr.mxu0 %v441
    %3150 = vmatpush1.msra.mxu0 %v440
    %3151 = vmatprep.subr.mxu0 %v437
    %3152 = vmatpush1.msra.mxu0 %v436
    %3153 = vmatprep.subr.mxu0 %v433
    %3154 = vmatpush1.msra.mxu0 %v432
    %3155 = vmatprep.subr.mxu0 %v429
    %3156 = vmatpush1.msra.mxu0 %v428
    %3157 = vmatprep.subr.mxu0 %v425
    %3158 = vmatpush1.msra.mxu0 %v424
    %3159 = vmatprep.subr.mxu0 %v421
    %3160 = vmatpush1.msra.mxu0 %v420
    %3161 = vmatprep.subr.mxu0 %v417
    %3162 = vmatpush1.msra.mxu0 %v416
    %3163 = vmatprep.subr.mxu0 %v413
    %3164 = vmatpush1.msra.mxu0 %v412
    %3165 = vmatprep.subr.mxu0 %v409
    %3166 = vmatpush1.msra.mxu0 %v408
    %3167 = vmatprep.subr.mxu0 %v405
    %3168 = vmatpush1.msra.mxu0 %v404
    %3169 = vmatprep.subr.mxu0 %v401
    %3170 = vmatpush1.msra.mxu0 %v400
    %3171 = vmatprep.subr.mxu0 %v397
    %3172 = vmatpush1.msra.mxu0 %v396
    %3173 = vmatprep.subr.mxu0 %v393
    %3174 = vmatpush1.msra.mxu0 %v392
    %3175 = vmatprep.subr.mxu0 %v389
    %3176 = vmatpush1.msra.mxu0 %v388
    %3177 = vmatprep.subr.mxu0 %v385
    %3178 = vmatpush1.msra.mxu0 %v384
    %3179 = vmatprep.subr.mxu0 0.0
    %3180 = vmatpush2.msra.mxu0 0.0
    %3181 = vmatprep.subr.mxu0 0.0
    %3182 = vmatpush2.msra.mxu0 0.0
    %3183 = vmatprep.subr.mxu0 0.0
    %3184 = vmatpush2.msra.mxu0 0.0
    %3185 = vmatprep.subr.mxu0 0.0
    %3186 = vmatpush2.msra.mxu0 0.0
    %3187 = vmatprep.subr.mxu0 0.0
    %3188 = vmatpush2.msra.mxu0 0.0
    %3189 = vmatprep.subr.mxu0 0.0
    %3190 = vmatpush2.msra.mxu0 0.0
    %3191 = vmatprep.subr.mxu0 0.0
    %3192 = vmatpush2.msra.mxu0 0.0
    %3193 = vmatprep.subr.mxu0 0.0
    %3194 = vmatpush2.msra.mxu0 0.0
    %3195 = vmatprep.subr.mxu0 0.0
    %3196 = vmatpush2.msra.mxu0 0.0
    %3197 = vmatprep.subr.mxu0 0.0
    %3198 = vmatpush2.msra.mxu0 0.0
    %3199 = vmatprep.subr.mxu0 0.0
    %3200 = vmatpush2.msra.mxu0 0.0
    %3201 = vmatprep.subr.mxu0 0.0
    %3202 = vmatpush2.msra.mxu0 0.0
    %3203 = vmatprep.subr.mxu0 0.0
    %3204 = vmatpush2.msra.mxu0 0.0
    %3205 = vmatprep.subr.mxu0 0.0
    %3206 = vmatpush2.msra.mxu0 0.0
    %3207 = vmatprep.subr.mxu0 0.0
    %3208 = vmatpush2.msra.mxu0 0.0
    %3209 = vmatprep.subr.mxu0 0.0
    %3210 = vmatpush2.msra.mxu0 0.0
    %3211 = vmatprep.mubr.f32.mxu0 0.0
    %3212 = vmatmul.mubr.f32.gmra.mxu0 %v3146
    %v3213 = vpop.f32.mrf.mxu0
    %v3214 = vadd.f32 0.0, %v3213
    %v3215 = vpop.f32.mrf.mxu0
    %v3216 = vadd.f32 0.0, %v3215
    %3217 = vdwg.mxu0
    %3218 = vmatprep.subr.mxu0 %v447
    %3219 = vmatpush1.msra.mxu0 %v446
    %3220 = vmatprep.subr.mxu0 %v443
    %3221 = vmatpush1.msra.mxu0 %v442
    %3222 = vmatprep.subr.mxu0 %v439
    %3223 = vmatpush1.msra.mxu0 %v438
    %3224 = vmatprep.subr.mxu0 %v435
    %3225 = vmatpush1.msra.mxu0 %v434
    %3226 = vmatprep.subr.mxu0 %v431
    %3227 = vmatpush1.msra.mxu0 %v430
    %3228 = vmatprep.subr.mxu0 %v427
    %3229 = vmatpush1.msra.mxu0 %v426
    %3230 = vmatprep.subr.mxu0 %v423
    %3231 = vmatpush1.msra.mxu0 %v422
    %3232 = vmatprep.subr.mxu0 %v419
    %3233 = vmatpush1.msra.mxu0 %v418
    %3234 = vmatprep.subr.mxu0 %v415
    %3235 = vmatpush1.msra.mxu0 %v414
    %3236 = vmatprep.subr.mxu0 %v411
    %3237 = vmatpush1.msra.mxu0 %v410
    %3238 = vmatprep.subr.mxu0 %v407
    %3239 = vmatpush1.msra.mxu0 %v406
    %3240 = vmatprep.subr.mxu0 %v403
    %3241 = vmatpush1.msra.mxu0 %v402
    %3242 = vmatprep.subr.mxu0 %v399
    %3243 = vmatpush1.msra.mxu0 %v398
    %3244 = vmatprep.subr.mxu0 %v395
    %3245 = vmatpush1.msra.mxu0 %v394
    %3246 = vmatprep.subr.mxu0 %v391
    %3247 = vmatpush1.msra.mxu0 %v390
    %3248 = vmatprep.subr.mxu0 %v387
    %3249 = vmatpush1.msra.mxu0 %v386
    %3250 = vmatprep.subr.mxu0 0.0
    %3251 = vmatpush2.msra.mxu0 0.0
    %3252 = vmatprep.subr.mxu0 0.0
    %3253 = vmatpush2.msra.mxu0 0.0
    %3254 = vmatprep.subr.mxu0 0.0
    %3255 = vmatpush2.msra.mxu0 0.0
    %3256 = vmatprep.subr.mxu0 0.0
    %3257 = vmatpush2.msra.mxu0 0.0
    %3258 = vmatprep.subr.mxu0 0.0
    %3259 = vmatpush2.msra.mxu0 0.0
    %3260 = vmatprep.subr.mxu0 0.0
    %3261 = vmatpush2.msra.mxu0 0.0
    %3262 = vmatprep.subr.mxu0 0.0
    %3263 = vmatpush2.msra.mxu0 0.0
    %3264 = vmatprep.subr.mxu0 0.0
    %3265 = vmatpush2.msra.mxu0 0.0
    %3266 = vmatprep.subr.mxu0 0.0
    %3267 = vmatpush2.msra.mxu0 0.0
    %3268 = vmatprep.subr.mxu0 0.0
    %3269 = vmatpush2.msra.mxu0 0.0
    %3270 = vmatprep.subr.mxu0 0.0
    %3271 = vmatpush2.msra.mxu0 0.0
    %3272 = vmatprep.subr.mxu0 0.0
    %3273 = vmatpush2.msra.mxu0 0.0
    %3274 = vmatprep.subr.mxu0 0.0
    %3275 = vmatpush2.msra.mxu0 0.0
    %3276 = vmatprep.subr.mxu0 0.0
    %3277 = vmatpush2.msra.mxu0 0.0
    %3278 = vmatprep.subr.mxu0 0.0
    %3279 = vmatpush2.msra.mxu0 0.0
    %3280 = vmatprep.subr.mxu0 0.0
    %3281 = vmatpush2.msra.mxu0 0.0
    %3282 = vmatprep.mubr.f32.mxu0 0.0
    %3283 = vmatmul.mubr.f32.gmra.mxu0 %v3146
    %v3284 = vpop.f32.mrf.mxu0
    %v3285 = vadd.f32 0.0, %v3284
    %v3286 = vpop.f32.mrf.mxu0
    %v3287 = vadd.f32 0.0, %v3286
    %3288 = vdwg.mxu0
    %v3289 = vadd.f32 %v2040, %v3214
    %v3290 = vadd.f32 %v2042, %v3216
    %v3291 = vadd.f32 %v2153, %v3285
    %v3292 = vadd.f32 %v2155, %v3287
    %v3293 = vmul.f32 %v3289, 0.5
    %v3294 = vmul.f32 %v3290, 0.5
    %v3295 = vmul.f32 %v3291, 0.5
    %v3296 = vtanh.pop %v3293
    %v3297 = vtanh.pop %v3294
    %v3298 = vtanh.pop %v3295
    %v3299 = vmul.f32 %v3296, 0.5
    %v3300 = vmul.f32 %v3297, 0.5
    %v3301 = vmul.f32 %v3298, 0.5
    %v3302 = vadd.f32 %v3299, 0.5
    %v3303 = vadd.f32 %v3300, 0.5
    %v3304 = vadd.f32 %v3301, 0.5
    %v3305 = vmul.f32 %v3303, %v3144
    %v3306 = vtanh.pop %v3292
    %v3307 = vmul.f32 %v3302, %v3306
    %v3308 = vadd.f32 %v3305, %v3307
    %v3309 = vtanh.pop %v3308
    %v3310 = vmul.f32 %v3304, %v3309
    %3311 = vmatprep.subr.mxu0 %v445
    %3312 = vmatpush1.msra.mxu0 %v444
    %3313 = vmatprep.subr.mxu0 %v441
    %3314 = vmatpush1.msra.mxu0 %v440
    %3315 = vmatprep.subr.mxu0 %v437
    %3316 = vmatpush1.msra.mxu0 %v436
    %3317 = vmatprep.subr.mxu0 %v433
    %3318 = vmatpush1.msra.mxu0 %v432
    %3319 = vmatprep.subr.mxu0 %v429
    %3320 = vmatpush1.msra.mxu0 %v428
    %3321 = vmatprep.subr.mxu0 %v425
    %3322 = vmatpush1.msra.mxu0 %v424
    %3323 = vmatprep.subr.mxu0 %v421
    %3324 = vmatpush1.msra.mxu0 %v420
    %3325 = vmatprep.subr.mxu0 %v417
    %3326 = vmatpush1.msra.mxu0 %v416
    %3327 = vmatprep.subr.mxu0 %v413
    %3328 = vmatpush1.msra.mxu0 %v412
    %3329 = vmatprep.subr.mxu0 %v409
    %3330 = vmatpush1.msra.mxu0 %v408
    %3331 = vmatprep.subr.mxu0 %v405
    %3332 = vmatpush1.msra.mxu0 %v404
    %3333 = vmatprep.subr.mxu0 %v401
    %3334 = vmatpush1.msra.mxu0 %v400
    %3335 = vmatprep.subr.mxu0 %v397
    %3336 = vmatpush1.msra.mxu0 %v396
    %3337 = vmatprep.subr.mxu0 %v393
    %3338 = vmatpush1.msra.mxu0 %v392
    %3339 = vmatprep.subr.mxu0 %v389
    %3340 = vmatpush1.msra.mxu0 %v388
    %3341 = vmatprep.subr.mxu0 %v385
    %3342 = vmatpush1.msra.mxu0 %v384
    %3343 = vmatprep.subr.mxu0 0.0
    %3344 = vmatpush2.msra.mxu0 0.0
    %3345 = vmatprep.subr.mxu0 0.0
    %3346 = vmatpush2.msra.mxu0 0.0
    %3347 = vmatprep.subr.mxu0 0.0
    %3348 = vmatpush2.msra.mxu0 0.0
    %3349 = vmatprep.subr.mxu0 0.0
    %3350 = vmatpush2.msra.mxu0 0.0
    %3351 = vmatprep.subr.mxu0 0.0
    %3352 = vmatpush2.msra.mxu0 0.0
    %3353 = vmatprep.subr.mxu0 0.0
    %3354 = vmatpush2.msra.mxu0 0.0
    %3355 = vmatprep.subr.mxu0 0.0
    %3356 = vmatpush2.msra.mxu0 0.0
    %3357 = vmatprep.subr.mxu0 0.0
    %3358 = vmatpush2.msra.mxu0 0.0
    %3359 = vmatprep.subr.mxu0 0.0
    %3360 = vmatpush2.msra.mxu0 0.0
    %3361 = vmatprep.subr.mxu0 0.0
    %3362 = vmatpush2.msra.mxu0 0.0
    %3363 = vmatprep.subr.mxu0 0.0
    %3364 = vmatpush2.msra.mxu0 0.0
    %3365 = vmatprep.subr.mxu0 0.0
    %3366 = vmatpush2.msra.mxu0 0.0
    %3367 = vmatprep.subr.mxu0 0.0
    %3368 = vmatpush2.msra.mxu0 0.0
    %3369 = vmatprep.subr.mxu0 0.0
    %3370 = vmatpush2.msra.mxu0 0.0
    %3371 = vmatprep.subr.mxu0 0.0
    %3372 = vmatpush2.msra.mxu0 0.0
    %3373 = vmatprep.subr.mxu0 0.0
    %3374 = vmatpush2.msra.mxu0 0.0
    %3375 = vmatprep.mubr.f32.mxu0 0.0
    %3376 = vmatmul.mubr.f32.gmra.mxu0 %v3310
    %v3377 = vpop.f32.mrf.mxu0
    %v3378 = vadd.f32 0.0, %v3377
    %v3379 = vpop.f32.mrf.mxu0
    %v3380 = vadd.f32 0.0, %v3379
    %3381 = vdwg.mxu0
    %3382 = vmatprep.subr.mxu0 %v447
    %3383 = vmatpush1.msra.mxu0 %v446
    %3384 = vmatprep.subr.mxu0 %v443
    %3385 = vmatpush1.msra.mxu0 %v442
    %3386 = vmatprep.subr.mxu0 %v439
    %3387 = vmatpush1.msra.mxu0 %v438
    %3388 = vmatprep.subr.mxu0 %v435
    %3389 = vmatpush1.msra.mxu0 %v434
    %3390 = vmatprep.subr.mxu0 %v431
    %3391 = vmatpush1.msra.mxu0 %v430
    %3392 = vmatprep.subr.mxu0 %v427
    %3393 = vmatpush1.msra.mxu0 %v426
    %3394 = vmatprep.subr.mxu0 %v423
    %3395 = vmatpush1.msra.mxu0 %v422
    %3396 = vmatprep.subr.mxu0 %v419
    %3397 = vmatpush1.msra.mxu0 %v418
    %3398 = vmatprep.subr.mxu0 %v415
    %3399 = vmatpush1.msra.mxu0 %v414
    %3400 = vmatprep.subr.mxu0 %v411
    %3401 = vmatpush1.msra.mxu0 %v410
    %3402 = vmatprep.subr.mxu0 %v407
    %3403 = vmatpush1.msra.mxu0 %v406
    %3404 = vmatprep.subr.mxu0 %v403
    %3405 = vmatpush1.msra.mxu0 %v402
    %3406 = vmatprep.subr.mxu0 %v399
    %3407 = vmatpush1.msra.mxu0 %v398
    %3408 = vmatprep.subr.mxu0 %v395
    %3409 = vmatpush1.msra.mxu0 %v394
    %3410 = vmatprep.subr.mxu0 %v391
    %3411 = vmatpush1.msra.mxu0 %v390
    %3412 = vmatprep.subr.mxu0 %v387
    %3413 = vmatpush1.msra.mxu0 %v386
    %3414 = vmatprep.subr.mxu0 0.0
    %3415 = vmatpush2.msra.mxu0 0.0
    %3416 = vmatprep.subr.mxu0 0.0
    %3417 = vmatpush2.msra.mxu0 0.0
    %3418 = vmatprep.subr.mxu0 0.0
    %3419 = vmatpush2.msra.mxu0 0.0
    %3420 = vmatprep.subr.mxu0 0.0
    %3421 = vmatpush2.msra.mxu0 0.0
    %3422 = vmatprep.subr.mxu0 0.0
    %3423 = vmatpush2.msra.mxu0 0.0
    %3424 = vmatprep.subr.mxu0 0.0
    %3425 = vmatpush2.msra.mxu0 0.0
    %3426 = vmatprep.subr.mxu0 0.0
    %3427 = vmatpush2.msra.mxu0 0.0
    %3428 = vmatprep.subr.mxu0 0.0
    %3429 = vmatpush2.msra.mxu0 0.0
    %3430 = vmatprep.subr.mxu0 0.0
    %3431 = vmatpush2.msra.mxu0 0.0
    %3432 = vmatprep.subr.mxu0 0.0
    %3433 = vmatpush2.msra.mxu0 0.0
    %3434 = vmatprep.subr.mxu0 0.0
    %3435 = vmatpush2.msra.mxu0 0.0
    %3436 = vmatprep.subr.mxu0 0.0
    %3437 = vmatpush2.msra.mxu0 0.0
    %3438 = vmatprep.subr.mxu0 0.0
    %3439 = vmatpush2.msra.mxu0 0.0
    %3440 = vmatprep.subr.mxu0 0.0
    %3441 = vmatpush2.msra.mxu0 0.0
    %3442 = vmatprep.subr.mxu0 0.0
    %3443 = vmatpush2.msra.mxu0 0.0
    %3444 = vmatprep.subr.mxu0 0.0
    %3445 = vmatpush2.msra.mxu0 0.0
    %3446 = vmatprep.mubr.f32.mxu0 0.0
    %3447 = vmatmul.mubr.f32.gmra.mxu0 %v3310
    %v3448 = vpop.f32.mrf.mxu0
    %v3449 = vadd.f32 0.0, %v3448
    %v3450 = vpop.f32.mrf.mxu0
    %v3451 = vadd.f32 0.0, %v3450
    %3452 = vdwg.mxu0
    %v3453 = vadd.f32 %v2046, %v3378
    %v3454 = vadd.f32 %v2048, %v3380
    %v3455 = vadd.f32 %v2159, %v3449
    %v3456 = vadd.f32 %v2161, %v3451
    %v3457 = vmul.f32 %v3453, 0.5
    %v3458 = vmul.f32 %v3454, 0.5
    %v3459 = vmul.f32 %v3455, 0.5
    %v3460 = vtanh.pop %v3457
    %v3461 = vtanh.pop %v3458
    %v3462 = vtanh.pop %v3459
    %v3463 = vmul.f32 %v3460, 0.5
    %v3464 = vmul.f32 %v3461, 0.5
    %v3465 = vmul.f32 %v3462, 0.5
    %v3466 = vadd.f32 %v3463, 0.5
    %v3467 = vadd.f32 %v3464, 0.5
    %v3468 = vadd.f32 %v3465, 0.5
    %v3469 = vmul.f32 %v3467, %v3308
    %v3470 = vtanh.pop %v3456
    %v3471 = vmul.f32 %v3466, %v3470
    %v3472 = vadd.f32 %v3469, %v3471
    %v3473 = vtanh.pop %v3472
    %v3474 = vmul.f32 %v3468, %v3473
    %s3475 = scalar_lea.vmem [#allocation6], 128
    %v3476 = vld [vmem:[%s3475] sm:$0xff]
    %v3477 = vld [vmem:[%s3475 + $0x8] sm:$0xff]
    %v3478 = vld [vmem:[%s3475 + $0x10] sm:$0xff]
    %v3479 = vld [vmem:[%s3475 + $0x18] sm:$0xff]
    %v3480 = vld [vmem:[%s3475 + $0x20] sm:$0xff]
    %v3481 = vld [vmem:[%s3475 + $0x28] sm:$0xff]
    %v3482 = vld [vmem:[%s3475 + $0x30] sm:$0xff]
    %v3483 = vld [vmem:[%s3475 + $0x38] sm:$0xff]
    %v3484 = vld [vmem:[%s3475 + $0x40] sm:$0xff]
    %v3485 = vld [vmem:[%s3475 + $0x48] sm:$0xff]
    %v3486 = vld [vmem:[%s3475 + $0x50] sm:$0xff]
    %v3487 = vld [vmem:[%s3475 + $0x58] sm:$0xff]
    %v3488 = vld [vmem:[%s3475 + $0x60] sm:$0xff]
    %v3489 = vld [vmem:[%s3475 + $0x68] sm:$0xff]
    %v3490 = vld [vmem:[%s3475 + $0x70] sm:$0xff]
    %v3491 = vld [vmem:[%s3475 + $0x78] sm:$0xff]
    %s3492 = scalar_lea.vmem %s5, 1
    %v3493 = vld [vmem:[%s3492] sm:$0x1]
    %v3495 = vlaneseq
    %v3496 = vshrl.u32 %v3495, 7
    %v3497 = vsub.s32 0, %v3496
    %v3498 = vrot.slane %v3493, %v3497
    %3500 = vmatprep.subr.mxu0 0.0
    %3501 = vmatpush1.msra.mxu0 %v3491
    %3502 = vmatprep.subr.mxu0 0.0
    %3503 = vmatpush1.msra.mxu0 %v3490
    %3504 = vmatprep.subr.mxu0 0.0
    %3505 = vmatpush1.msra.mxu0 %v3489
    %3506 = vmatprep.subr.mxu0 0.0
    %3507 = vmatpush1.msra.mxu0 %v3488
    %3508 = vmatprep.subr.mxu0 0.0
    %3509 = vmatpush1.msra.mxu0 %v3487
    %3510 = vmatprep.subr.mxu0 0.0
    %3511 = vmatpush1.msra.mxu0 %v3486
    %3512 = vmatprep.subr.mxu0 0.0
    %3513 = vmatpush1.msra.mxu0 %v3485
    %3514 = vmatprep.subr.mxu0 0.0
    %3515 = vmatpush1.msra.mxu0 %v3484
    %3516 = vmatprep.subr.mxu0 0.0
    %3517 = vmatpush1.msra.mxu0 %v3483
    %3518 = vmatprep.subr.mxu0 0.0
    %3519 = vmatpush1.msra.mxu0 %v3482
    %3520 = vmatprep.subr.mxu0 0.0
    %3521 = vmatpush1.msra.mxu0 %v3481
    %3522 = vmatprep.subr.mxu0 0.0
    %3523 = vmatpush1.msra.mxu0 %v3480
    %3524 = vmatprep.subr.mxu0 0.0
    %3525 = vmatpush1.msra.mxu0 %v3479
    %3526 = vmatprep.subr.mxu0 0.0
    %3527 = vmatpush1.msra.mxu0 %v3478
    %3528 = vmatprep.subr.mxu0 0.0
    %3529 = vmatpush1.msra.mxu0 %v3477
    %3530 = vmatprep.subr.mxu0 0.0
    %3531 = vmatpush1.msra.mxu0 %v3476
    %3532 = vmatprep.subr.mxu0 0.0
    %3533 = vmatpush2.msra.mxu0 0.0
    %3534 = vmatprep.subr.mxu0 0.0
    %3535 = vmatpush2.msra.mxu0 0.0
    %3536 = vmatprep.subr.mxu0 0.0
    %3537 = vmatpush2.msra.mxu0 0.0
    %3538 = vmatprep.subr.mxu0 0.0
    %3539 = vmatpush2.msra.mxu0 0.0
    %3540 = vmatprep.subr.mxu0 0.0
    %3541 = vmatpush2.msra.mxu0 0.0
    %3542 = vmatprep.subr.mxu0 0.0
    %3543 = vmatpush2.msra.mxu0 0.0
    %3544 = vmatprep.subr.mxu0 0.0
    %3545 = vmatpush2.msra.mxu0 0.0
    %3546 = vmatprep.subr.mxu0 0.0
    %3547 = vmatpush2.msra.mxu0 0.0
    %3548 = vmatprep.subr.mxu0 0.0
    %3549 = vmatpush2.msra.mxu0 0.0
    %3550 = vmatprep.subr.mxu0 0.0
    %3551 = vmatpush2.msra.mxu0 0.0
    %3552 = vmatprep.subr.mxu0 0.0
    %3553 = vmatpush2.msra.mxu0 0.0
    %3554 = vmatprep.subr.mxu0 0.0
    %3555 = vmatpush2.msra.mxu0 0.0
    %3556 = vmatprep.subr.mxu0 0.0
    %3557 = vmatpush2.msra.mxu0 0.0
    %3558 = vmatprep.subr.mxu0 0.0
    %3559 = vmatpush2.msra.mxu0 0.0
    %3560 = vmatprep.subr.mxu0 0.0
    %3561 = vmatpush2.msra.mxu0 0.0
    %3562 = vmatprep.subr.mxu0 0.0
    %3563 = vmatpush2.msra.mxu0 0.0
    %3564 = vmatprep.mubr.f32.mxu0 0.0
    %3565 = vmatmul.mubr.f32.gmra.mxu0 %v2326
    %v3566 = vpop.f32.mrf.mxu0
    %v3567 = vadd.f32 %v3498, %v3566
    %v3568 = vpop.f32.mrf.mxu0
    %3569 = vmatprep.mubr.f32.mxu0 0.0
    %3570 = vmatmul.mubr.f32.gmra.mxu0 %v2490
    %v3571 = vpop.f32.mrf.mxu0
    %v3572 = vadd.f32 %v3498, %v3571
    %v3573 = vpop.f32.mrf.mxu0
    %3574 = vmatprep.mubr.f32.mxu0 0.0
    %3575 = vmatmul.mubr.f32.gmra.mxu0 %v2654
    %v3576 = vpop.f32.mrf.mxu0
    %v3577 = vadd.f32 %v3498, %v3576
    %v3578 = vpop.f32.mrf.mxu0
    %3579 = vmatprep.mubr.f32.mxu0 0.0
    %3580 = vmatmul.mubr.f32.gmra.mxu0 %v2818
    %v3581 = vpop.f32.mrf.mxu0
    %v3582 = vadd.f32 %v3498, %v3581
    %v3583 = vpop.f32.mrf.mxu0
    %3584 = vmatprep.mubr.f32.mxu0 0.0
    %3585 = vmatmul.mubr.f32.gmra.mxu0 %v2982
    %v3586 = vpop.f32.mrf.mxu0
    %v3587 = vadd.f32 %v3498, %v3586
    %v3588 = vpop.f32.mrf.mxu0
    %3589 = vmatprep.mubr.f32.mxu0 0.0
    %3590 = vmatmul.mubr.f32.gmra.mxu0 %v3146
    %v3591 = vpop.f32.mrf.mxu0
    %v3592 = vadd.f32 %v3498, %v3591
    %v3593 = vpop.f32.mrf.mxu0
    %3594 = vmatprep.mubr.f32.mxu0 0.0
    %3595 = vmatmul.mubr.f32.gmra.mxu0 %v3310
    %v3596 = vpop.f32.mrf.mxu0
    %v3597 = vadd.f32 %v3498, %v3596
    %v3598 = vpop.f32.mrf.mxu0
    %3599 = vmatprep.mubr.f32.mxu0 0.0
    %3600 = vmatmul.mubr.f32.gmra.mxu0 %v3474
    %v3601 = vpop.f32.mrf.mxu0
    %v3602 = vadd.f32 %v3498, %v3601
    %v3603 = vpop.f32.mrf.mxu0
    %3604 = vdwg.mxu0
    %v3605 = vmax.f32 %v3567, %v3572
    %v3606 = vmax.f32 %v3577, %v3582
    %v3607 = vmax.f32 %v3587, %v3592
    %v3608 = vmax.f32 %v3597, %v3602
    %v3609 = vmax.f32 %v3605, %v3606
    %v3610 = vmax.f32 %v3607, %v3608
    %v3611 = vmax.f32 %v3609, %v3610
    %v3612 = vsub.f32 %v3567, %v3611
    %v3613 = vmul.f32 %v3612, 1.442695
    %v3614 = vpow.pop %v3613
    %v3615 = vsub.f32 %v3572, %v3611
    %v3616 = vmul.f32 %v3615, 1.442695
    %v3617 = vpow.pop %v3616
    %v3618 = vsub.f32 %v3577, %v3611
    %v3619 = vmul.f32 %v3618, 1.442695
    %v3620 = vpow.pop %v3619
    %v3621 = vsub.f32 %v3582, %v3611
    %v3622 = vmul.f32 %v3621, 1.442695
    %v3623 = vpow.pop %v3622
    %v3624 = vsub.f32 %v3587, %v3611
    %v3625 = vmul.f32 %v3624, 1.442695
    %v3626 = vpow.pop %v3625
    %v3627 = vsub.f32 %v3592, %v3611
    %v3628 = vmul.f32 %v3627, 1.442695
    %v3629 = vpow.pop %v3628
    %v3630 = vsub.f32 %v3597, %v3611
    %v3631 = vmul.f32 %v3630, 1.442695
    %v3632 = vpow.pop %v3631
    %v3633 = vsub.f32 %v3602, %v3611
    %v3634 = vmul.f32 %v3633, 1.442695
    %v3635 = vpow.pop %v3634
    %v3636 = vadd.f32 %v3614, %v3617
    %v3637 = vadd.f32 %v3620, %v3623
    %v3638 = vadd.f32 %v3626, %v3629
    %v3639 = vadd.f32 %v3632, %v3635
    %v3640 = vadd.f32 %v3636, %v3637
    %v3641 = vadd.f32 %v3638, %v3639
    %v3642 = vadd.f32 %v3640, %v3641
    %v3643 = vlog2.pop %v3642
    %v3644 = vmul.f32 %v3643, 0.6931472
    %v3645 = vadd.f32 %v3611, %v3644
    %v3646 = vsub.f32 %v3567, %v3645
    %v3647 = vsub.f32 %v3572, %v3645
    %v3648 = vsub.f32 %v3577, %v3645
    %v3649 = vsub.f32 %v3582, %v3645
    %v3650 = vsub.f32 %v3587, %v3645
    %v3651 = vsub.f32 %v3592, %v3645
    %v3652 = vsub.f32 %v3597, %v3645
    %v3653 = vsub.f32 %v3602, %v3645
    %s3654 = scalar_lea.vmem [#allocation6], 256
    %v3655 = vld [vmem:[%s3654] sm:$0xff]
    %v3656 = vld [vmem:[%s3654 + $0x8] sm:$0xff]
    %v3657 = vld [vmem:[%s3654 + $0x10] sm:$0xff]
    %v3658 = vld [vmem:[%s3654 + $0x18] sm:$0xff]
    %v3659 = vld [vmem:[%s3654 + $0x20] sm:$0xff]
    %v3660 = vld [vmem:[%s3654 + $0x28] sm:$0xff]
    %v3661 = vld [vmem:[%s3654 + $0x30] sm:$0xff]
    %v3662 = vld [vmem:[%s3654 + $0x38] sm:$0xff]
    %v3663 = vld [vmem:[%s3654 + $0x40] sm:$0xff]
    %v3664 = vld [vmem:[%s3654 + $0x48] sm:$0xff]
    %v3665 = vld [vmem:[%s3654 + $0x50] sm:$0xff]
    %v3666 = vld [vmem:[%s3654 + $0x58] sm:$0xff]
    %v3667 = vld [vmem:[%s3654 + $0x60] sm:$0xff]
    %v3668 = vld [vmem:[%s3654 + $0x68] sm:$0xff]
    %v3669 = vld [vmem:[%s3654 + $0x70] sm:$0xff]
    %v3670 = vld [vmem:[%s3654 + $0x78] sm:$0xff]
    %s3671 = scalar_lea.vmem %s5, 2
    %v3672 = vld [vmem:[%s3671] sm:$0x1]
    %v3674 = vlaneseq
    %v3675 = vshrl.u32 %v3674, 7
    %v3676 = vsub.s32 0, %v3675
    %v3677 = vrot.slane %v3672, %v3676
    %3679 = vmatprep.subr.mxu0 0.0
    %3680 = vmatpush1.msra.mxu0 %v3670
    %3681 = vmatprep.subr.mxu0 0.0
    %3682 = vmatpush1.msra.mxu0 %v3669
    %3683 = vmatprep.subr.mxu0 0.0
    %3684 = vmatpush1.msra.mxu0 %v3668
    %3685 = vmatprep.subr.mxu0 0.0
    %3686 = vmatpush1.msra.mxu0 %v3667
    %3687 = vmatprep.subr.mxu0 0.0
    %3688 = vmatpush1.msra.mxu0 %v3666
    %3689 = vmatprep.subr.mxu0 0.0
    %3690 = vmatpush1.msra.mxu0 %v3665
    %3691 = vmatprep.subr.mxu0 0.0
    %3692 = vmatpush1.msra.mxu0 %v3664
    %3693 = vmatprep.subr.mxu0 0.0
    %3694 = vmatpush1.msra.mxu0 %v3663
    %3695 = vmatprep.subr.mxu0 0.0
    %3696 = vmatpush1.msra.mxu0 %v3662
    %3697 = vmatprep.subr.mxu0 0.0
    %3698 = vmatpush1.msra.mxu0 %v3661
    %3699 = vmatprep.subr.mxu0 0.0
    %3700 = vmatpush1.msra.mxu0 %v3660
    %3701 = vmatprep.subr.mxu0 0.0
    %3702 = vmatpush1.msra.mxu0 %v3659
    %3703 = vmatprep.subr.mxu0 0.0
    %3704 = vmatpush1.msra.mxu0 %v3658
    %3705 = vmatprep.subr.mxu0 0.0
    %3706 = vmatpush1.msra.mxu0 %v3657
    %3707 = vmatprep.subr.mxu0 0.0
    %3708 = vmatpush1.msra.mxu0 %v3656
    %3709 = vmatprep.subr.mxu0 0.0
    %3710 = vmatpush1.msra.mxu0 %v3655
    %3711 = vmatprep.subr.mxu0 0.0
    %3712 = vmatpush2.msra.mxu0 0.0
    %3713 = vmatprep.subr.mxu0 0.0
    %3714 = vmatpush2.msra.mxu0 0.0
    %3715 = vmatprep.subr.mxu0 0.0
    %3716 = vmatpush2.msra.mxu0 0.0
    %3717 = vmatprep.subr.mxu0 0.0
    %3718 = vmatpush2.msra.mxu0 0.0
    %3719 = vmatprep.subr.mxu0 0.0
    %3720 = vmatpush2.msra.mxu0 0.0
    %3721 = vmatprep.subr.mxu0 0.0
    %3722 = vmatpush2.msra.mxu0 0.0
    %3723 = vmatprep.subr.mxu0 0.0
    %3724 = vmatpush2.msra.mxu0 0.0
    %3725 = vmatprep.subr.mxu0 0.0
    %3726 = vmatpush2.msra.mxu0 0.0
    %3727 = vmatprep.subr.mxu0 0.0
    %3728 = vmatpush2.msra.mxu0 0.0
    %3729 = vmatprep.subr.mxu0 0.0
    %3730 = vmatpush2.msra.mxu0 0.0
    %3731 = vmatprep.subr.mxu0 0.0
    %3732 = vmatpush2.msra.mxu0 0.0
    %3733 = vmatprep.subr.mxu0 0.0
    %3734 = vmatpush2.msra.mxu0 0.0
    %3735 = vmatprep.subr.mxu0 0.0
    %3736 = vmatpush2.msra.mxu0 0.0
    %3737 = vmatprep.subr.mxu0 0.0
    %3738 = vmatpush2.msra.mxu0 0.0
    %3739 = vmatprep.subr.mxu0 0.0
    %3740 = vmatpush2.msra.mxu0 0.0
    %3741 = vmatprep.subr.mxu0 0.0
    %3742 = vmatpush2.msra.mxu0 0.0
    %3743 = vmatprep.mubr.f32.mxu0 0.0
    %3744 = vmatmul.mubr.f32.gmra.mxu0 %v3646
    %v3745 = vpop.f32.mrf.mxu0
    %v3746 = vadd.f32 %v3677, %v3745
    %v3747 = vpop.f32.mrf.mxu0
    %3748 = vmatprep.mubr.f32.mxu0 0.0
    %3749 = vmatmul.mubr.f32.gmra.mxu0 %v3647
    %v3750 = vpop.f32.mrf.mxu0
    %v3751 = vadd.f32 %v3677, %v3750
    %v3752 = vpop.f32.mrf.mxu0
    %3753 = vmatprep.mubr.f32.mxu0 0.0
    %3754 = vmatmul.mubr.f32.gmra.mxu0 %v3648
    %v3755 = vpop.f32.mrf.mxu0
    %v3756 = vadd.f32 %v3677, %v3755
    %v3757 = vpop.f32.mrf.mxu0
    %3758 = vmatprep.mubr.f32.mxu0 0.0
    %3759 = vmatmul.mubr.f32.gmra.mxu0 %v3649
    %v3760 = vpop.f32.mrf.mxu0
    %v3761 = vadd.f32 %v3677, %v3760
    %v3762 = vpop.f32.mrf.mxu0
    %3763 = vmatprep.mubr.f32.mxu0 0.0
    %3764 = vmatmul.mubr.f32.gmra.mxu0 %v3650
    %v3765 = vpop.f32.mrf.mxu0
    %v3766 = vadd.f32 %v3677, %v3765
    %v3767 = vpop.f32.mrf.mxu0
    %3768 = vmatprep.mubr.f32.mxu0 0.0
    %3769 = vmatmul.mubr.f32.gmra.mxu0 %v3651
    %v3770 = vpop.f32.mrf.mxu0
    %v3771 = vadd.f32 %v3677, %v3770
    %v3772 = vpop.f32.mrf.mxu0
    %3773 = vmatprep.mubr.f32.mxu0 0.0
    %3774 = vmatmul.mubr.f32.gmra.mxu0 %v3652
    %v3775 = vpop.f32.mrf.mxu0
    %v3776 = vadd.f32 %v3677, %v3775
    %v3777 = vpop.f32.mrf.mxu0
    %3778 = vmatprep.mubr.f32.mxu0 0.0
    %3779 = vmatmul.mubr.f32.gmra.mxu0 %v3653
    %v3780 = vpop.f32.mrf.mxu0
    %v3781 = vadd.f32 %v3677, %v3780
    %v3782 = vpop.f32.mrf.mxu0
    %3783 = vdwg.mxu0
    %v3784 = vmax.f32 %v3746, %v3751
    %v3785 = vmax.f32 %v3756, %v3761
    %v3786 = vmax.f32 %v3766, %v3771
    %v3787 = vmax.f32 %v3776, %v3781
    %v3788 = vmax.f32 %v3784, %v3785
    %v3789 = vmax.f32 %v3786, %v3787
    %v3790 = vmax.f32 %v3788, %v3789
    %v3791 = vsub.f32 %v3746, %v3790
    %v3792 = vmul.f32 %v3791, 1.442695
    %v3793 = vpow.pop %v3792
    %v3794 = vsub.f32 %v3751, %v3790
    %v3795 = vmul.f32 %v3794, 1.442695
    %v3796 = vpow.pop %v3795
    %v3797 = vsub.f32 %v3756, %v3790
    %v3798 = vmul.f32 %v3797, 1.442695
    %v3799 = vpow.pop %v3798
    %v3800 = vsub.f32 %v3761, %v3790
    %v3801 = vmul.f32 %v3800, 1.442695
    %v3802 = vpow.pop %v3801
    %v3803 = vsub.f32 %v3766, %v3790
    %v3804 = vmul.f32 %v3803, 1.442695
    %v3805 = vpow.pop %v3804
    %v3806 = vsub.f32 %v3771, %v3790
    %v3807 = vmul.f32 %v3806, 1.442695
    %v3808 = vpow.pop %v3807
    %v3809 = vsub.f32 %v3776, %v3790
    %v3810 = vmul.f32 %v3809, 1.442695
    %v3811 = vpow.pop %v3810
    %v3812 = vsub.f32 %v3781, %v3790
    %v3813 = vmul.f32 %v3812, 1.442695
    %v3814 = vpow.pop %v3813
    %v3815 = vadd.f32 %v3793, %v3796
    %v3816 = vadd.f32 %v3799, %v3802
    %v3817 = vadd.f32 %v3805, %v3808
    %v3818 = vadd.f32 %v3811, %v3814
    %v3819 = vadd.f32 %v3815, %v3816
    %v3820 = vadd.f32 %v3817, %v3818
    %v3821 = vadd.f32 %v3819, %v3820
    %v3822 = vlog2.pop %v3821
    %v3823 = vmul.f32 %v3822, 0.6931472
    %v3824 = vadd.f32 %v3790, %v3823
    %v3825 = vsub.f32 %v3746, %v3824
    %v3826 = vsub.f32 %v3751, %v3824
    %v3827 = vsub.f32 %v3756, %v3824
    %v3828 = vsub.f32 %v3761, %v3824
    %v3829 = vsub.f32 %v3766, %v3824
    %v3830 = vsub.f32 %v3771, %v3824
    %v3831 = vsub.f32 %v3776, %v3824
    %v3832 = vsub.f32 %v3781, %v3824
    %s3833 = scalar_lea.vmem [#allocation6], 384
    %v3834 = vld [vmem:[%s3833] sm:$0xff]
    %v3835 = vld [vmem:[%s3833 + $0x8] sm:$0xff]
    %v3836 = vld [vmem:[%s3833 + $0x10] sm:$0xff]
    %v3837 = vld [vmem:[%s3833 + $0x18] sm:$0xff]
    %v3838 = vld [vmem:[%s3833 + $0x20] sm:$0xff]
    %v3839 = vld [vmem:[%s3833 + $0x28] sm:$0xff]
    %v3840 = vld [vmem:[%s3833 + $0x30] sm:$0xff]
    %v3841 = vld [vmem:[%s3833 + $0x38] sm:$0xff]
    %v3842 = vld [vmem:[%s3833 + $0x40] sm:$0xff]
    %v3843 = vld [vmem:[%s3833 + $0x48] sm:$0xff]
    %v3844 = vld [vmem:[%s3833 + $0x50] sm:$0xff]
    %v3845 = vld [vmem:[%s3833 + $0x58] sm:$0xff]
    %v3846 = vld [vmem:[%s3833 + $0x60] sm:$0xff]
    %v3847 = vld [vmem:[%s3833 + $0x68] sm:$0xff]
    %v3848 = vld [vmem:[%s3833 + $0x70] sm:$0xff]
    %v3849 = vld [vmem:[%s3833 + $0x78] sm:$0xff]
    %s3850 = scalar_lea.vmem %s5, 3
    %v3851 = vld [vmem:[%s3850] sm:$0x1]
    %v3853 = vlaneseq
    %v3854 = vshrl.u32 %v3853, 7
    %v3855 = vsub.s32 0, %v3854
    %v3856 = vrot.slane %v3851, %v3855
    %3858 = vmatprep.subr.mxu0 0.0
    %3859 = vmatpush1.msra.mxu0 %v3849
    %3860 = vmatprep.subr.mxu0 0.0
    %3861 = vmatpush1.msra.mxu0 %v3848
    %3862 = vmatprep.subr.mxu0 0.0
    %3863 = vmatpush1.msra.mxu0 %v3847
    %3864 = vmatprep.subr.mxu0 0.0
    %3865 = vmatpush1.msra.mxu0 %v3846
    %3866 = vmatprep.subr.mxu0 0.0
    %3867 = vmatpush1.msra.mxu0 %v3845
    %3868 = vmatprep.subr.mxu0 0.0
    %3869 = vmatpush1.msra.mxu0 %v3844
    %3870 = vmatprep.subr.mxu0 0.0
    %3871 = vmatpush1.msra.mxu0 %v3843
    %3872 = vmatprep.subr.mxu0 0.0
    %3873 = vmatpush1.msra.mxu0 %v3842
    %3874 = vmatprep.subr.mxu0 0.0
    %3875 = vmatpush1.msra.mxu0 %v3841
    %3876 = vmatprep.subr.mxu0 0.0
    %3877 = vmatpush1.msra.mxu0 %v3840
    %3878 = vmatprep.subr.mxu0 0.0
    %3879 = vmatpush1.msra.mxu0 %v3839
    %3880 = vmatprep.subr.mxu0 0.0
    %3881 = vmatpush1.msra.mxu0 %v3838
    %3882 = vmatprep.subr.mxu0 0.0
    %3883 = vmatpush1.msra.mxu0 %v3837
    %3884 = vmatprep.subr.mxu0 0.0
    %3885 = vmatpush1.msra.mxu0 %v3836
    %3886 = vmatprep.subr.mxu0 0.0
    %3887 = vmatpush1.msra.mxu0 %v3835
    %3888 = vmatprep.subr.mxu0 0.0
    %3889 = vmatpush1.msra.mxu0 %v3834
    %3890 = vmatprep.subr.mxu0 0.0
    %3891 = vmatpush2.msra.mxu0 0.0
    %3892 = vmatprep.subr.mxu0 0.0
    %3893 = vmatpush2.msra.mxu0 0.0
    %3894 = vmatprep.subr.mxu0 0.0
    %3895 = vmatpush2.msra.mxu0 0.0
    %3896 = vmatprep.subr.mxu0 0.0
    %3897 = vmatpush2.msra.mxu0 0.0
    %3898 = vmatprep.subr.mxu0 0.0
    %3899 = vmatpush2.msra.mxu0 0.0
    %3900 = vmatprep.subr.mxu0 0.0
    %3901 = vmatpush2.msra.mxu0 0.0
    %3902 = vmatprep.subr.mxu0 0.0
    %3903 = vmatpush2.msra.mxu0 0.0
    %3904 = vmatprep.subr.mxu0 0.0
    %3905 = vmatpush2.msra.mxu0 0.0
    %3906 = vmatprep.subr.mxu0 0.0
    %3907 = vmatpush2.msra.mxu0 0.0
    %3908 = vmatprep.subr.mxu0 0.0
    %3909 = vmatpush2.msra.mxu0 0.0
    %3910 = vmatprep.subr.mxu0 0.0
    %3911 = vmatpush2.msra.mxu0 0.0
    %3912 = vmatprep.subr.mxu0 0.0
    %3913 = vmatpush2.msra.mxu0 0.0
    %3914 = vmatprep.subr.mxu0 0.0
    %3915 = vmatpush2.msra.mxu0 0.0
    %3916 = vmatprep.subr.mxu0 0.0
    %3917 = vmatpush2.msra.mxu0 0.0
    %3918 = vmatprep.subr.mxu0 0.0
    %3919 = vmatpush2.msra.mxu0 0.0
    %3920 = vmatprep.subr.mxu0 0.0
    %3921 = vmatpush2.msra.mxu0 0.0
    %3922 = vmatprep.mubr.f32.mxu0 0.0
    %3923 = vmatmul.mubr.f32.gmra.mxu0 %v3825
    %v3924 = vpop.f32.mrf.mxu0
    %v3925 = vadd.f32 %v3856, %v3924
    %v3926 = vpop.f32.mrf.mxu0
    %3927 = vmatprep.mubr.f32.mxu0 0.0
    %3928 = vmatmul.mubr.f32.gmra.mxu0 %v3826
    %v3929 = vpop.f32.mrf.mxu0
    %v3930 = vadd.f32 %v3856, %v3929
    %v3931 = vpop.f32.mrf.mxu0
    %3932 = vmatprep.mubr.f32.mxu0 0.0
    %3933 = vmatmul.mubr.f32.gmra.mxu0 %v3827
    %v3934 = vpop.f32.mrf.mxu0
    %v3935 = vadd.f32 %v3856, %v3934
    %v3936 = vpop.f32.mrf.mxu0
    %3937 = vmatprep.mubr.f32.mxu0 0.0
    %3938 = vmatmul.mubr.f32.gmra.mxu0 %v3828
    %v3939 = vpop.f32.mrf.mxu0
    %v3940 = vadd.f32 %v3856, %v3939
    %v3941 = vpop.f32.mrf.mxu0
    %3942 = vmatprep.mubr.f32.mxu0 0.0
    %3943 = vmatmul.mubr.f32.gmra.mxu0 %v3829
    %v3944 = vpop.f32.mrf.mxu0
    %v3945 = vadd.f32 %v3856, %v3944
    %v3946 = vpop.f32.mrf.mxu0
    %3947 = vmatprep.mubr.f32.mxu0 0.0
    %3948 = vmatmul.mubr.f32.gmra.mxu0 %v3830
    %v3949 = vpop.f32.mrf.mxu0
    %v3950 = vadd.f32 %v3856, %v3949
    %v3951 = vpop.f32.mrf.mxu0
    %3952 = vmatprep.mubr.f32.mxu0 0.0
    %3953 = vmatmul.mubr.f32.gmra.mxu0 %v3831
    %v3954 = vpop.f32.mrf.mxu0
    %v3955 = vadd.f32 %v3856, %v3954
    %v3956 = vpop.f32.mrf.mxu0
    %3957 = vmatprep.mubr.f32.mxu0 0.0
    %3958 = vmatmul.mubr.f32.gmra.mxu0 %v3832
    %v3959 = vpop.f32.mrf.mxu0
    %v3960 = vadd.f32 %v3856, %v3959
    %v3961 = vpop.f32.mrf.mxu0
    %3962 = vdwg.mxu0
    %v3963 = vmax.f32 %v3925, %v3930
    %v3964 = vmax.f32 %v3935, %v3940
    %v3965 = vmax.f32 %v3945, %v3950
    %v3966 = vmax.f32 %v3955, %v3960
    %v3967 = vmax.f32 %v3963, %v3964
    %v3968 = vmax.f32 %v3965, %v3966
    %v3969 = vmax.f32 %v3967, %v3968
    %v3970 = vsub.f32 %v3925, %v3969
    %v3971 = vmul.f32 %v3970, 1.442695
    %v3972 = vpow.pop %v3971
    %v3973 = vsub.f32 %v3930, %v3969
    %v3974 = vmul.f32 %v3973, 1.442695
    %v3975 = vpow.pop %v3974
    %v3976 = vsub.f32 %v3935, %v3969
    %v3977 = vmul.f32 %v3976, 1.442695
    %v3978 = vpow.pop %v3977
    %v3979 = vsub.f32 %v3940, %v3969
    %v3980 = vmul.f32 %v3979, 1.442695
    %v3981 = vpow.pop %v3980
    %v3982 = vsub.f32 %v3945, %v3969
    %v3983 = vmul.f32 %v3982, 1.442695
    %v3984 = vpow.pop %v3983
    %v3985 = vsub.f32 %v3950, %v3969
    %v3986 = vmul.f32 %v3985, 1.442695
    %v3987 = vpow.pop %v3986
    %v3988 = vsub.f32 %v3955, %v3969
    %v3989 = vmul.f32 %v3988, 1.442695
    %v3990 = vpow.pop %v3989
    %v3991 = vsub.f32 %v3960, %v3969
    %v3992 = vmul.f32 %v3991, 1.442695
    %v3993 = vpow.pop %v3992
    %v3994 = vadd.f32 %v3972, %v3975
    %v3995 = vadd.f32 %v3978, %v3981
    %v3996 = vadd.f32 %v3984, %v3987
    %v3997 = vadd.f32 %v3990, %v3993
    %v3998 = vadd.f32 %v3994, %v3995
    %v3999 = vadd.f32 %v3996, %v3997
    %v4000 = vadd.f32 %v3998, %v3999
    %v4001 = vlog2.pop %v4000
    %v4002 = vmul.f32 %v4001, 0.6931472
    %v4003 = vadd.f32 %v3969, %v4002
    %v4004 = vsub.f32 %v3925, %v4003
    %v4005 = vsub.f32 %v3930, %v4003
    %v4006 = vsub.f32 %v3935, %v4003
    %v4007 = vsub.f32 %v3940, %v4003
    %v4008 = vsub.f32 %v3945, %v4003
    %v4009 = vsub.f32 %v3950, %v4003
    %v4010 = vsub.f32 %v3955, %v4003
    %v4011 = vsub.f32 %v3960, %v4003
    %4012 = vst [vmem:[%s6] sm:$0xff] %v4004
    %4013 = vst [vmem:[%s6 + $0x8] sm:$0xff] %v4005
    %4014 = vst [vmem:[%s6 + $0x10] sm:$0xff] %v4006
    %4015 = vst [vmem:[%s6 + $0x18] sm:$0xff] %v4007
    %4016 = vst [vmem:[%s6 + $0x20] sm:$0xff] %v4008
    %4017 = vst [vmem:[%s6 + $0x28] sm:$0xff] %v4009
    %4018 = vst [vmem:[%s6 + $0x30] sm:$0xff] %v4010
    %4019 = vst [vmem:[%s6 + $0x38] sm:$0xff] %v4011
    // Predicated region
    $region38: #{net_forward.1} parent=1 // pred_check
      _
    $region39: #{net_forward.1} parent=1 // pred_check_branch
      %4021 = sbr.rel (0) target = $region41
    $region40: #{net_forward.1} parent=1 // pred_region
      _
    $region41: #{net_forward.1} parent=1 // pred_fallthru
      _
    // Predicated region
    $region42: #{net_forward.1} parent=1 // pred_check
      _
    $region43: #{net_forward.1} parent=1 // pred_check_branch
      %4023 = sbr.rel (0) target = $region45
    $region44: #{net_forward.1} parent=1 // pred_region
      _
    $region45: #{net_forward.1} parent=1 // pred_fallthru
      _
    %4024 = vsyncpa [#allocation3], 1
    %4025 = vsyncpa [#allocation5], 1

</llo_original>
